<compile_context>
chip_gen: v7x
topology: tpu7x:2x2x1
jax: 0.10.0
libtpu: 0.0.40
codegen_flags: <defaults>
</compile_context>

<pallas_src>
import functools

import numpy as np
import jax
import jax.numpy as jnp
from jax.experimental import pallas as pl
from jax.experimental.pallas import tpu as pltpu

_VMEM = functools.partial(pl.BlockSpec, memory_space=pltpu.MemorySpace.VMEM)


# ---------------------------------------------------------------------------
# Fused forward kernel
# ---------------------------------------------------------------------------
def _fused_cnn_kernel(xp_ref,                      # (32, 32)   padded input image
                      w1e_ref, w1o_ref, b1_ref,    # (5,32,126)x2, (1,126)
                      w2e_ref, w2o_ref, b2_ref,    # (5,126,90)x2, (1,90)
                      wf1_ref, bf1_ref,            # (5,90,120), (1,120)
                      wf2_ref, bf2_ref,            # (120,84),   (1,84)
                      wf3_ref, bf3_ref,            # (84,10),    (1,10)
                      o_ref,                       # (1, 10)
                      s1_ref, a1_ref, s2_ref, p2_ref):
    f32 = jnp.float32

    # ---- conv1 (1->9, 5x5, pad=2) + bias + ReLU + 2x2 max-pool --------------
    # even / odd output columns, each (28 rows, 14*9 lanes)
    c1e = jnp.zeros((28, 126), f32)
    c1o = jnp.zeros((28, 126), f32)
    for dh in range(5):
        rows = xp_ref[pl.ds(dh, 28), :]                               # (28, 32)
        c1e = c1e + jnp.dot(rows, w1e_ref[dh], preferred_element_type=f32)
        c1o = c1o + jnp.dot(rows, w1o_ref[dh], preferred_element_type=f32)
    # width-pool (max over even/odd columns), then bias + relu (both commute
    # with the max since bias depends only on the output channel).
    s1_ref[...] = jnp.maximum(jnp.maximum(c1e, c1o) + b1_ref[...], 0.0)
    # height-pool: stride-2 sublane reads of the scratch
    a1_ref[...] = jnp.maximum(s1_ref[pl.ds(0, 14, 2), :],
                              s1_ref[pl.ds(1, 14, 2), :])             # (14, 126)

    # ---- conv2 (9->18, 5x5, valid) + bias + ReLU + 2x2 max-pool -------------
    c2e = jnp.zeros((10, 90), f32)
    c2o = jnp.zeros((10, 90), f32)
    for dh in range(5):
        rows = a1_ref[pl.ds(dh, 10), :]                               # (10, 126)
        c2e = c2e + jnp.dot(rows, w2e_ref[dh], preferred_element_type=f32)
        c2o = c2o + jnp.dot(rows, w2o_ref[dh], preferred_element_type=f32)
    s2_ref[...] = jnp.maximum(jnp.maximum(c2e, c2o) + b2_ref[...], 0.0)
    p2_ref[...] = jnp.maximum(s2_ref[pl.ds(0, 5, 2), :],
                              s2_ref[pl.ds(1, 5, 2), :])              # (5, 90)

    # ---- fc1 (450 -> 120): contraction over (h, w, c) as 5 row matmuls ------
    f = jnp.dot(p2_ref[pl.ds(0, 1), :], wf1_ref[0], preferred_element_type=f32)
    for h in range(1, 5):
        f = f + jnp.dot(p2_ref[pl.ds(h, 1), :], wf1_ref[h],
                        preferred_element_type=f32)
    f = jnp.maximum(f + bf1_ref[...], 0.0)                            # (1, 120)

    # ---- fc2 (120 -> 84) -----------------------------------------------------
    f = jnp.maximum(jnp.dot(f, wf2_ref[...], preferred_element_type=f32)
                    + bf2_ref[...], 0.0)                              # (1, 84)

    # ---- fc3 (84 -> 10) + log_softmax (dim=1) ---------------------------------
    y = jnp.dot(f, wf3_ref[...], preferred_element_type=f32) + bf3_ref[...]
    m = jnp.max(y, axis=1, keepdims=True)
    s = y - m
    lse = jnp.log(jnp.sum(jnp.exp(s), axis=1, keepdims=True))
    o_ref[...] = s - lse


# ---------------------------------------------------------------------------
# Forward wrapper: one pallas_call for the whole network
# ---------------------------------------------------------------------------
@jax.jit
def pytorch_cnn_forward(x, p):
    """x: (1, 1, 28, 28) float32 -> (1, 10) log-probabilities."""
    xp = jnp.pad(x.reshape(28, 28).astype(jnp.float32), 2)   # (32, 32), pad=2
    return pl.pallas_call(
        _fused_cnn_kernel,
        out_shape=jax.ShapeDtypeStruct((1, 10), jnp.float32),
        in_specs=[_VMEM()] * 13,
        out_specs=_VMEM(),
        scratch_shapes=[
            pltpu.VMEM((28, 126), jnp.float32),   # conv1 width-pooled rows
            pltpu.VMEM((14, 126), jnp.float32),   # layer-1 pooled activation
            pltpu.VMEM((10, 90), jnp.float32),    # conv2 width-pooled rows
            pltpu.VMEM((5, 90), jnp.float32),     # layer-2 pooled activation
        ],
    )(xp,
      p["w1e"], p["w1o"], p["b1t"],
      p["w2e"], p["w2o"], p["b2t"],
      p["wf1p"], p["bf1"],
      p["wf2"], p["bf2"],
      p["wf3"], p["bf3"])


# ---------------------------------------------------------------------------
# Parameters (deterministic PyTorch-default-style init) + one-time packing
# ---------------------------------------------------------------------------
def init_params(key):
    ks = jax.random.split(key, 10)

    def u(k, shape, fan_in):
        bound = 1.0 / np.sqrt(float(fan_in))
        return jax.random.uniform(k, shape, jnp.float32, -bound, bound)

    return {
        "w1":  u(ks[0], (9, 1, 5, 5), 1 * 25),     # conv1 (OC, IC, kh, kw)
        "b1":  u(ks[1], (9,),          1 * 25),
        "w2":  u(ks[2], (18, 9, 5, 5), 9 * 25),    # conv2
        "b2":  u(ks[3], (18,),         9 * 25),
        "wf1": u(ks[4], (450, 120), 450),          # (in, out); in-index = c*25+h*5+w
        "bf1": u(ks[5], (1, 120),   450),
        "wf2": u(ks[6], (120, 84),  120),
        "bf2": u(ks[7], (1, 84),    120),
        "wf3": u(ks[8], (84, 10),    84),
        "bf3": u(ks[9], (1, 10),     84),
    }


def _pack_conv_toeplitz(w, in_width):
    """w: (OC, IC, 5, 5).  Input rows hold (in_width * IC) lanes, channel
    fastest.  Returns (even, odd) slabs of shape (5, in_width*IC, n_out*OC),
    where output lane = (out_col_within_parity * OC + oc)."""
    w = np.asarray(w, np.float32)
    OC, IC, KH, KW = w.shape
    out_w = in_width - KW + 1
    packs = []
    for parity in (0, 1):
        ows = list(range(parity, out_w, 2))
        m = np.zeros((KH, in_width * IC, len(ows) * OC), np.float32)
        for dh in range(KH):
            for j, ow in enumerate(ows):
                for dw in range(KW):
                    for ic in range(IC):
                        m[dh, (ow + dw) * IC + ic, j * OC:(j + 1) * OC] = w[:, ic, dh, dw]
        packs.append(jnp.asarray(m))
    return packs


def _pack_fc1(wf1):
    """wf1: (450, 120) with input index c*25 + h*5 + w (PyTorch CHW flatten).
    Repack to (5, 5*18, 120) so each row h of the pooled (5, w*18+c)
    activation can be matmul'd directly (no in-kernel reshape/transpose)."""
    wf1 = np.asarray(wf1, np.float32)
    m = np.zeros((5, 5 * 18, 120), np.float32)
    for h in range(5):
        for w_ in range(5):
            for c in range(18):
                m[h, w_ * 18 + c, :] = wf1[c * 25 + h * 5 + w_, :]
    return jnp.asarray(m)


def pack_params(rp):
    """One-time weight repacking (init time, outside the jitted forward)."""
    w1e, w1o = _pack_conv_toeplitz(rp["w1"], in_width=32)   # padded width
    w2e, w2o = _pack_conv_toeplitz(rp["w2"], in_width=14)
    return {
        "w1e": w1e, "w1o": w1o,
        "b1t": jnp.tile(rp["b1"], 14).reshape(1, 126),
        "w2e": w2e, "w2o": w2o,
        "b2t": jnp.tile(rp["b2"], 5).reshape(1, 90),
        "wf1p": _pack_fc1(rp["wf1"]), "bf1": rp["bf1"],
        "wf2": rp["wf2"], "bf2": rp["bf2"],
        "wf3": rp["wf3"], "bf3": rp["bf3"],
    }


# ---------------------------------------------------------------------------
# Pure-JAX reference (PyTorch semantics) for validation
# ---------------------------------------------------------------------------
def _reference_forward(x, rp):
    hi = jax.lax.Precision.HIGHEST

    def conv(xhwc, w, b, pad):
        OC, IC, K, _ = w.shape
        H, W, C = xhwc.shape
        xp = jnp.pad(xhwc, ((pad, pad), (pad, pad), (0, 0)))
        Ho = H + 2 * pad - K + 1
        Wo = W + 2 * pad - K + 1
        cols = jnp.stack([xp[dh:dh + Ho, dw:dw + Wo, :]
                          for dh in range(K) for dw in range(K)], axis=2)
        cols = cols.reshape(Ho * Wo, K * K * C)
        wm = jnp.transpose(w, (2, 3, 1, 0)).reshape(K * K * C, OC)
        y = jnp.dot(cols, wm, precision=hi) + b
        return y.reshape(Ho, Wo, OC)

    def pool(xhwc):
        H, W, C = xhwc.shape
        return jnp.max(xhwc.reshape(H // 2, 2, W // 2, 2, C), axis=(1, 3))

    h = x.reshape(28, 28, 1).astype(jnp.float32)
    h = pool(jnp.maximum(conv(h, rp["w1"], rp["b1"], 2), 0.0))
    h = pool(jnp.maximum(conv(h, rp["w2"], rp["b2"], 0), 0.0))
    h = jnp.transpose(h, (2, 0, 1)).reshape(1, 450)          # CHW flatten
    h = jnp.maximum(jnp.dot(h, rp["wf1"], precision=hi) + rp["bf1"], 0.0)
    h = jnp.maximum(jnp.dot(h, rp["wf2"], precision=hi) + rp["bf2"], 0.0)
    y = jnp.dot(h, rp["wf3"], precision=hi) + rp["bf3"]
    return jax.nn.log_softmax(y, axis=1)


if __name__ == "__main__":
    key = jax.random.PRNGKey(0)
    k_x, k_p = jax.random.split(key)
    x = jax.random.normal(k_x, (1, 1, 28, 28), jnp.float32)   # NCHW MNIST-sized input

    raw_params = init_params(k_p)
    params = pack_params(raw_params)

    out = pytorch_cnn_forward(x, params)
    out = jax.block_until_ready(out)

    assert out.shape == (1, 10), out.shape
    assert bool(jnp.all(jnp.isfinite(out)))
    # log_softmax rows must exp-sum to 1
    assert bool(jnp.allclose(jnp.sum(jnp.exp(out), axis=1), 1.0, atol=1e-4))
    # match the pure-JAX reference of the PyTorch module
    ref = _reference_forward(x, raw_params)
    assert bool(jnp.allclose(out, ref, atol=2e-2, rtol=2e-2)), (out, ref)
    print("KERNEL_OK")
</pallas_src>

<mosaic_0001>
module attributes {stable_mosaic.version = 11 : i64} {
  func.func @_fused_cnn_kernel(%arg0: memref<32x32xf32, #tpu.memory_space<vmem>>, %arg1: memref<5x32x126xf32, #tpu.memory_space<vmem>>, %arg2: memref<5x32x126xf32, #tpu.memory_space<vmem>>, %arg3: memref<1x126xf32, #tpu.memory_space<vmem>>, %arg4: memref<5x126x90xf32, #tpu.memory_space<vmem>>, %arg5: memref<5x126x90xf32, #tpu.memory_space<vmem>>, %arg6: memref<1x90xf32, #tpu.memory_space<vmem>>, %arg7: memref<5x90x120xf32, #tpu.memory_space<vmem>>, %arg8: memref<1x120xf32, #tpu.memory_space<vmem>>, %arg9: memref<120x84xf32, #tpu.memory_space<vmem>>, %arg10: memref<1x84xf32, #tpu.memory_space<vmem>>, %arg11: memref<84x10xf32, #tpu.memory_space<vmem>>, %arg12: memref<1x10xf32, #tpu.memory_space<vmem>>, %arg13: memref<1x10xf32, #tpu.memory_space<vmem>>, %arg14: memref<28x126xf32, #tpu.memory_space<vmem>>, %arg15: memref<14x126xf32, #tpu.memory_space<vmem>>, %arg16: memref<10x90xf32, #tpu.memory_space<vmem>>, %arg17: memref<5x90xf32, #tpu.memory_space<vmem>>) attributes {dimension_semantics = [], scalar_prefetch = 0 : i64, scratch_operands = 4 : i64, tpu.core_type = #tpu.core_type<tc>} {
    %cst = arith.constant 0.000000e+00 : f32
    %0 = vector.broadcast %cst : f32 to vector<28x126xf32>
    %cst_0 = arith.constant 0.000000e+00 : f32
    %1 = vector.broadcast %cst_0 : f32 to vector<28x126xf32>
    %c0 = arith.constant 0 : index
    %c0_1 = arith.constant 0 : index
    %2 = vector.load %arg0[%c0, %c0_1] : memref<32x32xf32, #tpu.memory_space<vmem>>, vector<28x32xf32>
    %c0_2 = arith.constant 0 : index
    %c0_3 = arith.constant 0 : index
    %c0_4 = arith.constant 0 : index
    %3 = vector.load %arg1[%c0_2, %c0_3, %c0_4] : memref<5x32x126xf32, #tpu.memory_space<vmem>>, vector<1x32x126xf32>
    %4 = vector.shape_cast %3 : vector<1x32x126xf32> to vector<32x126xf32>
    %cst_5 = arith.constant dense<0.000000e+00> : vector<28x126xf32>
    %5 = tpu.matmul %2, %4, %cst_5 {dimension_numbers = #tpu.dot_dimension_numbers<[1], [0], [0], [1], [0, 0, 1, 1], [], []>} : vector<28x32xf32>, vector<32x126xf32>, vector<28x126xf32> -> vector<28x126xf32>
    %6 = arith.addf %0, %5 : vector<28x126xf32>
    %c0_6 = arith.constant 0 : index
    %c0_7 = arith.constant 0 : index
    %c0_8 = arith.constant 0 : index
    %7 = vector.load %arg2[%c0_6, %c0_7, %c0_8] : memref<5x32x126xf32, #tpu.memory_space<vmem>>, vector<1x32x126xf32>
    %8 = vector.shape_cast %7 : vector<1x32x126xf32> to vector<32x126xf32>
    %cst_9 = arith.constant dense<0.000000e+00> : vector<28x126xf32>
    %9 = tpu.matmul %2, %8, %cst_9 {dimension_numbers = #tpu.dot_dimension_numbers<[1], [0], [0], [1], [0, 0, 1, 1], [], []>} : vector<28x32xf32>, vector<32x126xf32>, vector<28x126xf32> -> vector<28x126xf32>
    %10 = arith.addf %1, %9 : vector<28x126xf32>
    %c1 = arith.constant 1 : index
    %c0_10 = arith.constant 0 : index
    %11 = vector.load %arg0[%c1, %c0_10] : memref<32x32xf32, #tpu.memory_space<vmem>>, vector<28x32xf32>
    %c1_11 = arith.constant 1 : index
    %c0_12 = arith.constant 0 : index
    %c0_13 = arith.constant 0 : index
    %12 = vector.load %arg1[%c1_11, %c0_12, %c0_13] : memref<5x32x126xf32, #tpu.memory_space<vmem>>, vector<1x32x126xf32>
    %13 = vector.shape_cast %12 : vector<1x32x126xf32> to vector<32x126xf32>
    %cst_14 = arith.constant dense<0.000000e+00> : vector<28x126xf32>
    %14 = tpu.matmul %11, %13, %cst_14 {dimension_numbers = #tpu.dot_dimension_numbers<[1], [0], [0], [1], [0, 0, 1, 1], [], []>} : vector<28x32xf32>, vector<32x126xf32>, vector<28x126xf32> -> vector<28x126xf32>
    %15 = arith.addf %6, %14 : vector<28x126xf32>
    %c1_15 = arith.constant 1 : index
    %c0_16 = arith.constant 0 : index
    %c0_17 = arith.constant 0 : index
    %16 = vector.load %arg2[%c1_15, %c0_16, %c0_17] : memref<5x32x126xf32, #tpu.memory_space<vmem>>, vector<1x32x126xf32>
    %17 = vector.shape_cast %16 : vector<1x32x126xf32> to vector<32x126xf32>
    %cst_18 = arith.constant dense<0.000000e+00> : vector<28x126xf32>
    %18 = tpu.matmul %11, %17, %cst_18 {dimension_numbers = #tpu.dot_dimension_numbers<[1], [0], [0], [1], [0, 0, 1, 1], [], []>} : vector<28x32xf32>, vector<32x126xf32>, vector<28x126xf32> -> vector<28x126xf32>
    %19 = arith.addf %10, %18 : vector<28x126xf32>
    %c2 = arith.constant 2 : index
    %c0_19 = arith.constant 0 : index
    %20 = vector.load %arg0[%c2, %c0_19] : memref<32x32xf32, #tpu.memory_space<vmem>>, vector<28x32xf32>
    %c2_20 = arith.constant 2 : index
    %c0_21 = arith.constant 0 : index
    %c0_22 = arith.constant 0 : index
    %21 = vector.load %arg1[%c2_20, %c0_21, %c0_22] : memref<5x32x126xf32, #tpu.memory_space<vmem>>, vector<1x32x126xf32>
    %22 = vector.shape_cast %21 : vector<1x32x126xf32> to vector<32x126xf32>
    %cst_23 = arith.constant dense<0.000000e+00> : vector<28x126xf32>
    %23 = tpu.matmul %20, %22, %cst_23 {dimension_numbers = #tpu.dot_dimension_numbers<[1], [0], [0], [1], [0, 0, 1, 1], [], []>} : vector<28x32xf32>, vector<32x126xf32>, vector<28x126xf32> -> vector<28x126xf32>
    %24 = arith.addf %15, %23 : vector<28x126xf32>
    %c2_24 = arith.constant 2 : index
    %c0_25 = arith.constant 0 : index
    %c0_26 = arith.constant 0 : index
    %25 = vector.load %arg2[%c2_24, %c0_25, %c0_26] : memref<5x32x126xf32, #tpu.memory_space<vmem>>, vector<1x32x126xf32>
    %26 = vector.shape_cast %25 : vector<1x32x126xf32> to vector<32x126xf32>
    %cst_27 = arith.constant dense<0.000000e+00> : vector<28x126xf32>
    %27 = tpu.matmul %20, %26, %cst_27 {dimension_numbers = #tpu.dot_dimension_numbers<[1], [0], [0], [1], [0, 0, 1, 1], [], []>} : vector<28x32xf32>, vector<32x126xf32>, vector<28x126xf32> -> vector<28x126xf32>
    %28 = arith.addf %19, %27 : vector<28x126xf32>
    %c3 = arith.constant 3 : index
    %c0_28 = arith.constant 0 : index
    %29 = vector.load %arg0[%c3, %c0_28] : memref<32x32xf32, #tpu.memory_space<vmem>>, vector<28x32xf32>
    %c3_29 = arith.constant 3 : index
    %c0_30 = arith.constant 0 : index
    %c0_31 = arith.constant 0 : index
    %30 = vector.load %arg1[%c3_29, %c0_30, %c0_31] : memref<5x32x126xf32, #tpu.memory_space<vmem>>, vector<1x32x126xf32>
    %31 = vector.shape_cast %30 : vector<1x32x126xf32> to vector<32x126xf32>
    %cst_32 = arith.constant dense<0.000000e+00> : vector<28x126xf32>
    %32 = tpu.matmul %29, %31, %cst_32 {dimension_numbers = #tpu.dot_dimension_numbers<[1], [0], [0], [1], [0, 0, 1, 1], [], []>} : vector<28x32xf32>, vector<32x126xf32>, vector<28x126xf32> -> vector<28x126xf32>
    %33 = arith.addf %24, %32 : vector<28x126xf32>
    %c3_33 = arith.constant 3 : index
    %c0_34 = arith.constant 0 : index
    %c0_35 = arith.constant 0 : index
    %34 = vector.load %arg2[%c3_33, %c0_34, %c0_35] : memref<5x32x126xf32, #tpu.memory_space<vmem>>, vector<1x32x126xf32>
    %35 = vector.shape_cast %34 : vector<1x32x126xf32> to vector<32x126xf32>
    %cst_36 = arith.constant dense<0.000000e+00> : vector<28x126xf32>
    %36 = tpu.matmul %29, %35, %cst_36 {dimension_numbers = #tpu.dot_dimension_numbers<[1], [0], [0], [1], [0, 0, 1, 1], [], []>} : vector<28x32xf32>, vector<32x126xf32>, vector<28x126xf32> -> vector<28x126xf32>
    %37 = arith.addf %28, %36 : vector<28x126xf32>
    %c4 = arith.constant 4 : index
    %c0_37 = arith.constant 0 : index
    %38 = vector.load %arg0[%c4, %c0_37] : memref<32x32xf32, #tpu.memory_space<vmem>>, vector<28x32xf32>
    %c4_38 = arith.constant 4 : index
    %c0_39 = arith.constant 0 : index
    %c0_40 = arith.constant 0 : index
    %39 = vector.load %arg1[%c4_38, %c0_39, %c0_40] : memref<5x32x126xf32, #tpu.memory_space<vmem>>, vector<1x32x126xf32>
    %40 = vector.shape_cast %39 : vector<1x32x126xf32> to vector<32x126xf32>
    %cst_41 = arith.constant dense<0.000000e+00> : vector<28x126xf32>
    %41 = tpu.matmul %38, %40, %cst_41 {dimension_numbers = #tpu.dot_dimension_numbers<[1], [0], [0], [1], [0, 0, 1, 1], [], []>} : vector<28x32xf32>, vector<32x126xf32>, vector<28x126xf32> -> vector<28x126xf32>
    %42 = arith.addf %33, %41 : vector<28x126xf32>
    %c4_42 = arith.constant 4 : index
    %c0_43 = arith.constant 0 : index
    %c0_44 = arith.constant 0 : index
    %43 = vector.load %arg2[%c4_42, %c0_43, %c0_44] : memref<5x32x126xf32, #tpu.memory_space<vmem>>, vector<1x32x126xf32>
    %44 = vector.shape_cast %43 : vector<1x32x126xf32> to vector<32x126xf32>
    %cst_45 = arith.constant dense<0.000000e+00> : vector<28x126xf32>
    %45 = tpu.matmul %38, %44, %cst_45 {dimension_numbers = #tpu.dot_dimension_numbers<[1], [0], [0], [1], [0, 0, 1, 1], [], []>} : vector<28x32xf32>, vector<32x126xf32>, vector<28x126xf32> -> vector<28x126xf32>
    %46 = arith.addf %37, %45 : vector<28x126xf32>
    %47 = arith.maximumf %42, %46 : vector<28x126xf32>
    %c0_46 = arith.constant 0 : index
    %c0_47 = arith.constant 0 : index
    %48 = vector.load %arg3[%c0_46, %c0_47] : memref<1x126xf32, #tpu.memory_space<vmem>>, vector<1x126xf32>
    %49 = vector.broadcast %48 : vector<1x126xf32> to vector<28x126xf32>
    %50 = arith.addf %47, %49 : vector<28x126xf32>
    %cst_48 = arith.constant 0.000000e+00 : f32
    %51 = vector.broadcast %cst_48 : f32 to vector<28x126xf32>
    %52 = arith.maximumf %50, %51 : vector<28x126xf32>
    %c0_49 = arith.constant 0 : index
    %c0_50 = arith.constant 0 : index
    %53 = vector.load %arg14[%c0_49, %c0_50] : memref<28x126xf32, #tpu.memory_space<vmem>>, vector<28x126xf32>
    tpu.vector_store %arg14[%c0_49, %c0_50], %52 {strides = array<i32>} : memref<28x126xf32, #tpu.memory_space<vmem>>, vector<28x126xf32>,
    %c0_51 = arith.constant 0 : index
    %c0_52 = arith.constant 0 : index
    %54 = tpu.strided_load %arg14[%c0_51, %c0_52] {strides = array<i32: 2, 1>} : memref<28x126xf32, #tpu.memory_space<vmem>>, vector<14x126xf32>
    %c1_53 = arith.constant 1 : index
    %c0_54 = arith.constant 0 : index
    %55 = tpu.strided_load %arg14[%c1_53, %c0_54] {strides = array<i32: 2, 1>} : memref<28x126xf32, #tpu.memory_space<vmem>>, vector<14x126xf32>
    %56 = arith.maximumf %54, %55 : vector<14x126xf32>
    %c0_55 = arith.constant 0 : index
    %c0_56 = arith.constant 0 : index
    %57 = vector.load %arg15[%c0_55, %c0_56] : memref<14x126xf32, #tpu.memory_space<vmem>>, vector<14x126xf32>
    tpu.vector_store %arg15[%c0_55, %c0_56], %56 {strides = array<i32>} : memref<14x126xf32, #tpu.memory_space<vmem>>, vector<14x126xf32>,
    %cst_57 = arith.constant 0.000000e+00 : f32
    %58 = vector.broadcast %cst_57 : f32 to vector<10x90xf32>
    %cst_58 = arith.constant 0.000000e+00 : f32
    %59 = vector.broadcast %cst_58 : f32 to vector<10x90xf32>
    %c0_59 = arith.constant 0 : index
    %c0_60 = arith.constant 0 : index
    %60 = vector.load %arg15[%c0_59, %c0_60] : memref<14x126xf32, #tpu.memory_space<vmem>>, vector<10x126xf32>
    %c0_61 = arith.constant 0 : index
    %c0_62 = arith.constant 0 : index
    %c0_63 = arith.constant 0 : index
    %61 = vector.load %arg4[%c0_61, %c0_62, %c0_63] : memref<5x126x90xf32, #tpu.memory_space<vmem>>, vector<1x126x90xf32>
    %62 = vector.shape_cast %61 : vector<1x126x90xf32> to vector<126x90xf32>
    %cst_64 = arith.constant dense<0.000000e+00> : vector<10x90xf32>
    %63 = tpu.matmul %60, %62, %cst_64 {dimension_numbers = #tpu.dot_dimension_numbers<[1], [0], [0], [1], [0, 0, 1, 1], [], []>} : vector<10x126xf32>, vector<126x90xf32>, vector<10x90xf32> -> vector<10x90xf32>
    %64 = arith.addf %58, %63 : vector<10x90xf32>
    %c0_65 = arith.constant 0 : index
    %c0_66 = arith.constant 0 : index
    %c0_67 = arith.constant 0 : index
    %65 = vector.load %arg5[%c0_65, %c0_66, %c0_67] : memref<5x126x90xf32, #tpu.memory_space<vmem>>, vector<1x126x90xf32>
    %66 = vector.shape_cast %65 : vector<1x126x90xf32> to vector<126x90xf32>
    %cst_68 = arith.constant dense<0.000000e+00> : vector<10x90xf32>
    %67 = tpu.matmul %60, %66, %cst_68 {dimension_numbers = #tpu.dot_dimension_numbers<[1], [0], [0], [1], [0, 0, 1, 1], [], []>} : vector<10x126xf32>, vector<126x90xf32>, vector<10x90xf32> -> vector<10x90xf32>
    %68 = arith.addf %59, %67 : vector<10x90xf32>
    %c1_69 = arith.constant 1 : index
    %c0_70 = arith.constant 0 : index
    %69 = vector.load %arg15[%c1_69, %c0_70] : memref<14x126xf32, #tpu.memory_space<vmem>>, vector<10x126xf32>
    %c1_71 = arith.constant 1 : index
    %c0_72 = arith.constant 0 : index
    %c0_73 = arith.constant 0 : index
    %70 = vector.load %arg4[%c1_71, %c0_72, %c0_73] : memref<5x126x90xf32, #tpu.memory_space<vmem>>, vector<1x126x90xf32>
    %71 = vector.shape_cast %70 : vector<1x126x90xf32> to vector<126x90xf32>
    %cst_74 = arith.constant dense<0.000000e+00> : vector<10x90xf32>
    %72 = tpu.matmul %69, %71, %cst_74 {dimension_numbers = #tpu.dot_dimension_numbers<[1], [0], [0], [1], [0, 0, 1, 1], [], []>} : vector<10x126xf32>, vector<126x90xf32>, vector<10x90xf32> -> vector<10x90xf32>
    %73 = arith.addf %64, %72 : vector<10x90xf32>
    %c1_75 = arith.constant 1 : index
    %c0_76 = arith.constant 0 : index
    %c0_77 = arith.constant 0 : index
    %74 = vector.load %arg5[%c1_75, %c0_76, %c0_77] : memref<5x126x90xf32, #tpu.memory_space<vmem>>, vector<1x126x90xf32>
    %75 = vector.shape_cast %74 : vector<1x126x90xf32> to vector<126x90xf32>
    %cst_78 = arith.constant dense<0.000000e+00> : vector<10x90xf32>
    %76 = tpu.matmul %69, %75, %cst_78 {dimension_numbers = #tpu.dot_dimension_numbers<[1], [0], [0], [1], [0, 0, 1, 1], [], []>} : vector<10x126xf32>, vector<126x90xf32>, vector<10x90xf32> -> vector<10x90xf32>
    %77 = arith.addf %68, %76 : vector<10x90xf32>
    %c2_79 = arith.constant 2 : index
    %c0_80 = arith.constant 0 : index
    %78 = vector.load %arg15[%c2_79, %c0_80] : memref<14x126xf32, #tpu.memory_space<vmem>>, vector<10x126xf32>
    %c2_81 = arith.constant 2 : index
    %c0_82 = arith.constant 0 : index
    %c0_83 = arith.constant 0 : index
    %79 = vector.load %arg4[%c2_81, %c0_82, %c0_83] : memref<5x126x90xf32, #tpu.memory_space<vmem>>, vector<1x126x90xf32>
    %80 = vector.shape_cast %79 : vector<1x126x90xf32> to vector<126x90xf32>
    %cst_84 = arith.constant dense<0.000000e+00> : vector<10x90xf32>
    %81 = tpu.matmul %78, %80, %cst_84 {dimension_numbers = #tpu.dot_dimension_numbers<[1], [0], [0], [1], [0, 0, 1, 1], [], []>} : vector<10x126xf32>, vector<126x90xf32>, vector<10x90xf32> -> vector<10x90xf32>
    %82 = arith.addf %73, %81 : vector<10x90xf32>
    %c2_85 = arith.constant 2 : index
    %c0_86 = arith.constant 0 : index
    %c0_87 = arith.constant 0 : index
    %83 = vector.load %arg5[%c2_85, %c0_86, %c0_87] : memref<5x126x90xf32, #tpu.memory_space<vmem>>, vector<1x126x90xf32>
    %84 = vector.shape_cast %83 : vector<1x126x90xf32> to vector<126x90xf32>
    %cst_88 = arith.constant dense<0.000000e+00> : vector<10x90xf32>
    %85 = tpu.matmul %78, %84, %cst_88 {dimension_numbers = #tpu.dot_dimension_numbers<[1], [0], [0], [1], [0, 0, 1, 1], [], []>} : vector<10x126xf32>, vector<126x90xf32>, vector<10x90xf32> -> vector<10x90xf32>
    %86 = arith.addf %77, %85 : vector<10x90xf32>
    %c3_89 = arith.constant 3 : index
    %c0_90 = arith.constant 0 : index
    %87 = vector.load %arg15[%c3_89, %c0_90] : memref<14x126xf32, #tpu.memory_space<vmem>>, vector<10x126xf32>
    %c3_91 = arith.constant 3 : index
    %c0_92 = arith.constant 0 : index
    %c0_93 = arith.constant 0 : index
    %88 = vector.load %arg4[%c3_91, %c0_92, %c0_93] : memref<5x126x90xf32, #tpu.memory_space<vmem>>, vector<1x126x90xf32>
    %89 = vector.shape_cast %88 : vector<1x126x90xf32> to vector<126x90xf32>
    %cst_94 = arith.constant dense<0.000000e+00> : vector<10x90xf32>
    %90 = tpu.matmul %87, %89, %cst_94 {dimension_numbers = #tpu.dot_dimension_numbers<[1], [0], [0], [1], [0, 0, 1, 1], [], []>} : vector<10x126xf32>, vector<126x90xf32>, vector<10x90xf32> -> vector<10x90xf32>
    %91 = arith.addf %82, %90 : vector<10x90xf32>
    %c3_95 = arith.constant 3 : index
    %c0_96 = arith.constant 0 : index
    %c0_97 = arith.constant 0 : index
    %92 = vector.load %arg5[%c3_95, %c0_96, %c0_97] : memref<5x126x90xf32, #tpu.memory_space<vmem>>, vector<1x126x90xf32>
    %93 = vector.shape_cast %92 : vector<1x126x90xf32> to vector<126x90xf32>
    %cst_98 = arith.constant dense<0.000000e+00> : vector<10x90xf32>
    %94 = tpu.matmul %87, %93, %cst_98 {dimension_numbers = #tpu.dot_dimension_numbers<[1], [0], [0], [1], [0, 0, 1, 1], [], []>} : vector<10x126xf32>, vector<126x90xf32>, vector<10x90xf32> -> vector<10x90xf32>
    %95 = arith.addf %86, %94 : vector<10x90xf32>
    %c4_99 = arith.constant 4 : index
    %c0_100 = arith.constant 0 : index
    %96 = vector.load %arg15[%c4_99, %c0_100] : memref<14x126xf32, #tpu.memory_space<vmem>>, vector<10x126xf32>
    %c4_101 = arith.constant 4 : index
    %c0_102 = arith.constant 0 : index
    %c0_103 = arith.constant 0 : index
    %97 = vector.load %arg4[%c4_101, %c0_102, %c0_103] : memref<5x126x90xf32, #tpu.memory_space<vmem>>, vector<1x126x90xf32>
    %98 = vector.shape_cast %97 : vector<1x126x90xf32> to vector<126x90xf32>
    %cst_104 = arith.constant dense<0.000000e+00> : vector<10x90xf32>
    %99 = tpu.matmul %96, %98, %cst_104 {dimension_numbers = #tpu.dot_dimension_numbers<[1], [0], [0], [1], [0, 0, 1, 1], [], []>} : vector<10x126xf32>, vector<126x90xf32>, vector<10x90xf32> -> vector<10x90xf32>
    %100 = arith.addf %91, %99 : vector<10x90xf32>
    %c4_105 = arith.constant 4 : index
    %c0_106 = arith.constant 0 : index
    %c0_107 = arith.constant 0 : index
    %101 = vector.load %arg5[%c4_105, %c0_106, %c0_107] : memref<5x126x90xf32, #tpu.memory_space<vmem>>, vector<1x126x90xf32>
    %102 = vector.shape_cast %101 : vector<1x126x90xf32> to vector<126x90xf32>
    %cst_108 = arith.constant dense<0.000000e+00> : vector<10x90xf32>
    %103 = tpu.matmul %96, %102, %cst_108 {dimension_numbers = #tpu.dot_dimension_numbers<[1], [0], [0], [1], [0, 0, 1, 1], [], []>} : vector<10x126xf32>, vector<126x90xf32>, vector<10x90xf32> -> vector<10x90xf32>
    %104 = arith.addf %95, %103 : vector<10x90xf32>
    %105 = arith.maximumf %100, %104 : vector<10x90xf32>
    %c0_109 = arith.constant 0 : index
    %c0_110 = arith.constant 0 : index
    %106 = vector.load %arg6[%c0_109, %c0_110] : memref<1x90xf32, #tpu.memory_space<vmem>>, vector<1x90xf32>
    %107 = vector.broadcast %106 : vector<1x90xf32> to vector<10x90xf32>
    %108 = arith.addf %105, %107 : vector<10x90xf32>
    %cst_111 = arith.constant 0.000000e+00 : f32
    %109 = vector.broadcast %cst_111 : f32 to vector<10x90xf32>
    %110 = arith.maximumf %108, %109 : vector<10x90xf32>
    %c0_112 = arith.constant 0 : index
    %c0_113 = arith.constant 0 : index
    %111 = vector.load %arg16[%c0_112, %c0_113] : memref<10x90xf32, #tpu.memory_space<vmem>>, vector<10x90xf32>
    tpu.vector_store %arg16[%c0_112, %c0_113], %110 {strides = array<i32>} : memref<10x90xf32, #tpu.memory_space<vmem>>, vector<10x90xf32>,
    %c0_114 = arith.constant 0 : index
    %c0_115 = arith.constant 0 : index
    %112 = tpu.strided_load %arg16[%c0_114, %c0_115] {strides = array<i32: 2, 1>} : memref<10x90xf32, #tpu.memory_space<vmem>>, vector<5x90xf32>
    %c1_116 = arith.constant 1 : index
    %c0_117 = arith.constant 0 : index
    %113 = tpu.strided_load %arg16[%c1_116, %c0_117] {strides = array<i32: 2, 1>} : memref<10x90xf32, #tpu.memory_space<vmem>>, vector<5x90xf32>
    %114 = arith.maximumf %112, %113 : vector<5x90xf32>
    %c0_118 = arith.constant 0 : index
    %c0_119 = arith.constant 0 : index
    %115 = vector.load %arg17[%c0_118, %c0_119] : memref<5x90xf32, #tpu.memory_space<vmem>>, vector<5x90xf32>
    tpu.vector_store %arg17[%c0_118, %c0_119], %114 {strides = array<i32>} : memref<5x90xf32, #tpu.memory_space<vmem>>, vector<5x90xf32>,
    %c0_120 = arith.constant 0 : index
    %c0_121 = arith.constant 0 : index
    %116 = vector.load %arg17[%c0_120, %c0_121] : memref<5x90xf32, #tpu.memory_space<vmem>>, vector<1x90xf32>
    %c0_122 = arith.constant 0 : index
    %c0_123 = arith.constant 0 : index
    %c0_124 = arith.constant 0 : index
    %117 = vector.load %arg7[%c0_122, %c0_123, %c0_124] : memref<5x90x120xf32, #tpu.memory_space<vmem>>, vector<1x90x120xf32>
    %118 = vector.shape_cast %117 : vector<1x90x120xf32> to vector<90x120xf32>
    %cst_125 = arith.constant dense<0.000000e+00> : vector<1x120xf32>
    %119 = tpu.matmul %116, %118, %cst_125 {dimension_numbers = #tpu.dot_dimension_numbers<[1], [0], [0], [1], [0, 0, 1, 1], [], []>} : vector<1x90xf32>, vector<90x120xf32>, vector<1x120xf32> -> vector<1x120xf32>
    %c1_126 = arith.constant 1 : index
    %c0_127 = arith.constant 0 : index
    %120 = vector.load %arg17[%c1_126, %c0_127] : memref<5x90xf32, #tpu.memory_space<vmem>>, vector<1x90xf32>
    %c1_128 = arith.constant 1 : index
    %c0_129 = arith.constant 0 : index
    %c0_130 = arith.constant 0 : index
    %121 = vector.load %arg7[%c1_128, %c0_129, %c0_130] : memref<5x90x120xf32, #tpu.memory_space<vmem>>, vector<1x90x120xf32>
    %122 = vector.shape_cast %121 : vector<1x90x120xf32> to vector<90x120xf32>
    %cst_131 = arith.constant dense<0.000000e+00> : vector<1x120xf32>
    %123 = tpu.matmul %120, %122, %cst_131 {dimension_numbers = #tpu.dot_dimension_numbers<[1], [0], [0], [1], [0, 0, 1, 1], [], []>} : vector<1x90xf32>, vector<90x120xf32>, vector<1x120xf32> -> vector<1x120xf32>
    %124 = arith.addf %119, %123 : vector<1x120xf32>
    %c2_132 = arith.constant 2 : index
    %c0_133 = arith.constant 0 : index
    %125 = vector.load %arg17[%c2_132, %c0_133] : memref<5x90xf32, #tpu.memory_space<vmem>>, vector<1x90xf32>
    %c2_134 = arith.constant 2 : index
    %c0_135 = arith.constant 0 : index
    %c0_136 = arith.constant 0 : index
    %126 = vector.load %arg7[%c2_134, %c0_135, %c0_136] : memref<5x90x120xf32, #tpu.memory_space<vmem>>, vector<1x90x120xf32>
    %127 = vector.shape_cast %126 : vector<1x90x120xf32> to vector<90x120xf32>
    %cst_137 = arith.constant dense<0.000000e+00> : vector<1x120xf32>
    %128 = tpu.matmul %125, %127, %cst_137 {dimension_numbers = #tpu.dot_dimension_numbers<[1], [0], [0], [1], [0, 0, 1, 1], [], []>} : vector<1x90xf32>, vector<90x120xf32>, vector<1x120xf32> -> vector<1x120xf32>
    %129 = arith.addf %124, %128 : vector<1x120xf32>
    %c3_138 = arith.constant 3 : index
    %c0_139 = arith.constant 0 : index
    %130 = vector.load %arg17[%c3_138, %c0_139] : memref<5x90xf32, #tpu.memory_space<vmem>>, vector<1x90xf32>
    %c3_140 = arith.constant 3 : index
    %c0_141 = arith.constant 0 : index
    %c0_142 = arith.constant 0 : index
    %131 = vector.load %arg7[%c3_140, %c0_141, %c0_142] : memref<5x90x120xf32, #tpu.memory_space<vmem>>, vector<1x90x120xf32>
    %132 = vector.shape_cast %131 : vector<1x90x120xf32> to vector<90x120xf32>
    %cst_143 = arith.constant dense<0.000000e+00> : vector<1x120xf32>
    %133 = tpu.matmul %130, %132, %cst_143 {dimension_numbers = #tpu.dot_dimension_numbers<[1], [0], [0], [1], [0, 0, 1, 1], [], []>} : vector<1x90xf32>, vector<90x120xf32>, vector<1x120xf32> -> vector<1x120xf32>
    %134 = arith.addf %129, %133 : vector<1x120xf32>
    %c4_144 = arith.constant 4 : index
    %c0_145 = arith.constant 0 : index
    %135 = vector.load %arg17[%c4_144, %c0_145] : memref<5x90xf32, #tpu.memory_space<vmem>>, vector<1x90xf32>
    %c4_146 = arith.constant 4 : index
    %c0_147 = arith.constant 0 : index
    %c0_148 = arith.constant 0 : index
    %136 = vector.load %arg7[%c4_146, %c0_147, %c0_148] : memref<5x90x120xf32, #tpu.memory_space<vmem>>, vector<1x90x120xf32>
    %137 = vector.shape_cast %136 : vector<1x90x120xf32> to vector<90x120xf32>
    %cst_149 = arith.constant dense<0.000000e+00> : vector<1x120xf32>
    %138 = tpu.matmul %135, %137, %cst_149 {dimension_numbers = #tpu.dot_dimension_numbers<[1], [0], [0], [1], [0, 0, 1, 1], [], []>} : vector<1x90xf32>, vector<90x120xf32>, vector<1x120xf32> -> vector<1x120xf32>
    %139 = arith.addf %134, %138 : vector<1x120xf32>
    %c0_150 = arith.constant 0 : index
    %c0_151 = arith.constant 0 : index
    %140 = vector.load %arg8[%c0_150, %c0_151] : memref<1x120xf32, #tpu.memory_space<vmem>>, vector<1x120xf32>
    %141 = arith.addf %139, %140 : vector<1x120xf32>
    %cst_152 = arith.constant 0.000000e+00 : f32
    %142 = vector.broadcast %cst_152 : f32 to vector<1x120xf32>
    %143 = arith.maximumf %141, %142 : vector<1x120xf32>
    %c0_153 = arith.constant 0 : index
    %c0_154 = arith.constant 0 : index
    %144 = vector.load %arg9[%c0_153, %c0_154] : memref<120x84xf32, #tpu.memory_space<vmem>>, vector<120x84xf32>
    %cst_155 = arith.constant dense<0.000000e+00> : vector<1x84xf32>
    %145 = tpu.matmul %143, %144, %cst_155 {dimension_numbers = #tpu.dot_dimension_numbers<[1], [0], [0], [1], [0, 0, 1, 1], [], []>} : vector<1x120xf32>, vector<120x84xf32>, vector<1x84xf32> -> vector<1x84xf32>
    %c0_156 = arith.constant 0 : index
    %c0_157 = arith.constant 0 : index
    %146 = vector.load %arg10[%c0_156, %c0_157] : memref<1x84xf32, #tpu.memory_space<vmem>>, vector<1x84xf32>
    %147 = arith.addf %145, %146 : vector<1x84xf32>
    %cst_158 = arith.constant 0.000000e+00 : f32
    %148 = vector.broadcast %cst_158 : f32 to vector<1x84xf32>
    %149 = arith.maximumf %147, %148 : vector<1x84xf32>
    %c0_159 = arith.constant 0 : index
    %c0_160 = arith.constant 0 : index
    %150 = vector.load %arg11[%c0_159, %c0_160] : memref<84x10xf32, #tpu.memory_space<vmem>>, vector<84x10xf32>
    %cst_161 = arith.constant dense<0.000000e+00> : vector<1x10xf32>
    %151 = tpu.matmul %149, %150, %cst_161 {dimension_numbers = #tpu.dot_dimension_numbers<[1], [0], [0], [1], [0, 0, 1, 1], [], []>} : vector<1x84xf32>, vector<84x10xf32>, vector<1x10xf32> -> vector<1x10xf32>
    %c0_162 = arith.constant 0 : index
    %c0_163 = arith.constant 0 : index
    %152 = vector.load %arg12[%c0_162, %c0_163] : memref<1x10xf32, #tpu.memory_space<vmem>>, vector<1x10xf32>
    %153 = arith.addf %151, %152 : vector<1x10xf32>
    %cst_164 = arith.constant dense<0xFF800000> : vector<1xf32>
    %154 = vector.multi_reduction <maximumf>, %153, %cst_164 [1] : vector<1x10xf32> to vector<1xf32>
    %155 = vector.shape_cast %154 : vector<1xf32> to vector<1x1xf32>
    %156 = vector.broadcast %155 : vector<1x1xf32> to vector<1x10xf32>
    %157 = arith.subf %153, %156 : vector<1x10xf32>
    %158 = math.exp %157 : vector<1x10xf32>
    %cst_165 = arith.constant dense<0.000000e+00> : vector<1xf32>
    %159 = vector.multi_reduction <add>, %158, %cst_165 [1] : vector<1x10xf32> to vector<1xf32>
    %160 = vector.shape_cast %159 : vector<1xf32> to vector<1x1xf32>
    %161 = math.log %160 : vector<1x1xf32>
    %162 = vector.broadcast %161 : vector<1x1xf32> to vector<1x10xf32>
    %163 = arith.subf %157, %162 : vector<1x10xf32>
    %c0_166 = arith.constant 0 : index
    %c0_167 = arith.constant 0 : index
    %164 = vector.load %arg13[%c0_166, %c0_167] : memref<1x10xf32, #tpu.memory_space<vmem>>, vector<1x10xf32>
    tpu.vector_store %arg13[%c0_166, %c0_167], %163 {strides = array<i32>} : memref<1x10xf32, #tpu.memory_space<vmem>>, vector<1x10xf32>,
    return
  }
}

</mosaic_0001>

<llo_original>
// kernel: pytorch_cnn_forward.1
$region0: #{pytorch_cnn_forward.1}
  #allocation0 [shape = 'u32[]', space=smem, size = 0x4, offset = 0x4, fixed_abs, tag = 'smem constant byte address 0x4 - core index']
  #allocation1 [shape = 'u32[144,128]{1,0:T(1,128)}', space=vmem, size = 0x12000, scoped, tag = 'internal scratch']
  #allocation2 [shape = 'f32[28,126]{1,0:T(8,128)}', space=vmem, size = 0x4000, scoped, tag = 'scratch operand']
  #allocation3 [shape = 'f32[14,126]{1,0:T(8,128)}', space=vmem, size = 0x2000, scoped, tag = 'scratch operand']
  #allocation4 [shape = 'f32[10,90]{1,0:T(8,128)}', space=vmem, size = 0x2000, scoped, tag = 'scratch operand']
  #allocation5 [shape = 'f32[5,90]{1,0:T(8,128)}', space=vmem, size = 0x1000, scoped, tag = 'scratch operand']
  %s0 = inlined_call_operand.vmem [shape: f32[32,32], index: 0, kind: input, shape index: {}]
  %s1 = inlined_call_operand.vmem [shape: f32[5,32,126], index: 1, kind: input, shape index: {}]
  %s2 = inlined_call_operand.vmem [shape: f32[5,32,126], index: 2, kind: input, shape index: {}]
  %s3 = inlined_call_operand.vmem [shape: f32[1,126], index: 3, kind: input, shape index: {}]
  %s4 = inlined_call_operand.vmem [shape: f32[5,126,90], index: 4, kind: input, shape index: {}]
  %s5 = inlined_call_operand.vmem [shape: f32[5,126,90], index: 5, kind: input, shape index: {}]
  %s6 = inlined_call_operand.vmem [shape: f32[1,90], index: 6, kind: input, shape index: {}]
  %s7 = inlined_call_operand.vmem [shape: f32[5,90,120], index: 7, kind: input, shape index: {}]
  %s8 = inlined_call_operand.vmem [shape: f32[1,120], index: 8, kind: input, shape index: {}]
  %s9 = inlined_call_operand.vmem [shape: f32[120,84], index: 9, kind: input, shape index: {}]
  %s10 = inlined_call_operand.vmem [shape: f32[1,84], index: 10, kind: input, shape index: {}]
  %s11 = inlined_call_operand.vmem [shape: f32[84,10], index: 11, kind: input, shape index: {}]
  %s12 = inlined_call_operand.vmem [shape: f32[1,10], index: 12, kind: input, shape index: {}]
  %s13 = inlined_call_operand.hbm [shape: f32[1,10], index: 13, kind: output, shape index: {}]
  %s14 = sld [smem:[#allocation0]]
  $region62: #{pytorch_cnn_forward.1} parent=0
    _
  %s16 = ssub.s32 1, %s14
  %s17 = scalar_select 0, %s16, %s14
  $region1: #{pytorch_cnn_forward.1} parent=0
    #allocation6 [shape = 'u8[512]{0}', space=vmem, size = 0x400, scoped, tag = 'output window, operand 0, single buffered']
    #allocation7 [shape = 's32[1]{0}', space=sflag, size = 0x4, scoped, tag = 'scoped memory for pytorch_cnn_forward.1']
    %18 = vsyncpa [#allocation7], 0
    // Predicated region
    $region2: #{pytorch_cnn_forward.1} parent=1 // pred_check
      _
    $region3: #{pytorch_cnn_forward.1} parent=1 // pred_check_branch
      %20 = sbr.rel (0) target = $region5
    $region4: #{pytorch_cnn_forward.1} parent=1 // pred_region
      _
    $region5: #{pytorch_cnn_forward.1} parent=1 // pred_fallthru
      _
    // Predicated region
    $region6: #{pytorch_cnn_forward.1} parent=1 // pred_check
      _
    $region7: #{pytorch_cnn_forward.1} parent=1 // pred_check_branch
      %22 = sbr.rel (0) target = $region9
    $region8: #{pytorch_cnn_forward.1} parent=1 // pred_region
      _
    $region9: #{pytorch_cnn_forward.1} parent=1 // pred_fallthru
      _
    // Predicated region
    $region10: #{pytorch_cnn_forward.1} parent=1 // pred_check
      _
    $region11: #{pytorch_cnn_forward.1} parent=1 // pred_check_branch
      %24 = sbr.rel (0) target = $region13
    $region12: #{pytorch_cnn_forward.1} parent=1 // pred_region
      _
    $region13: #{pytorch_cnn_forward.1} parent=1 // pred_fallthru
      _
    // Predicated region
    $region14: #{pytorch_cnn_forward.1} parent=1 // pred_check
      _
    $region15: #{pytorch_cnn_forward.1} parent=1 // pred_check_branch
      %26 = sbr.rel (0) target = $region17
    $region16: #{pytorch_cnn_forward.1} parent=1 // pred_region
      _
    $region17: #{pytorch_cnn_forward.1} parent=1 // pred_fallthru
      _
    // Predicated region
    $region18: #{pytorch_cnn_forward.1} parent=1 // pred_check
      _
    $region19: #{pytorch_cnn_forward.1} parent=1 // pred_check_branch
      %28 = sbr.rel (0) target = $region21
    $region20: #{pytorch_cnn_forward.1} parent=1 // pred_region
      _
    $region21: #{pytorch_cnn_forward.1} parent=1 // pred_fallthru
      _
    // Predicated region
    $region22: #{pytorch_cnn_forward.1} parent=1 // pred_check
      _
    $region23: #{pytorch_cnn_forward.1} parent=1 // pred_check_branch
      %30 = sbr.rel (0) target = $region25
    $region24: #{pytorch_cnn_forward.1} parent=1 // pred_region
      _
    $region25: #{pytorch_cnn_forward.1} parent=1 // pred_fallthru
      _
    // Predicated region
    $region26: #{pytorch_cnn_forward.1} parent=1 // pred_check
      _
    $region27: #{pytorch_cnn_forward.1} parent=1 // pred_check_branch
      %32 = sbr.rel (0) target = $region29
    $region28: #{pytorch_cnn_forward.1} parent=1 // pred_region
      _
    $region29: #{pytorch_cnn_forward.1} parent=1 // pred_fallthru
      _
    // Predicated region
    $region30: #{pytorch_cnn_forward.1} parent=1 // pred_check
      _
    $region31: #{pytorch_cnn_forward.1} parent=1 // pred_check_branch
      %34 = sbr.rel (0) target = $region33
    $region32: #{pytorch_cnn_forward.1} parent=1 // pred_region
      _
    $region33: #{pytorch_cnn_forward.1} parent=1 // pred_fallthru
      _
    // Predicated region
    $region34: #{pytorch_cnn_forward.1} parent=1 // pred_check
      _
    $region35: #{pytorch_cnn_forward.1} parent=1 // pred_check_branch
      %36 = sbr.rel (0) target = $region37
    $region36: #{pytorch_cnn_forward.1} parent=1 // pred_region
      _
    $region37: #{pytorch_cnn_forward.1} parent=1 // pred_fallthru
      _
    // Predicated region
    $region38: #{pytorch_cnn_forward.1} parent=1 // pred_check
      _
    $region39: #{pytorch_cnn_forward.1} parent=1 // pred_check_branch
      %38 = sbr.rel (0) target = $region41
    $region40: #{pytorch_cnn_forward.1} parent=1 // pred_region
      _
    $region41: #{pytorch_cnn_forward.1} parent=1 // pred_fallthru
      _
    // Predicated region
    $region42: #{pytorch_cnn_forward.1} parent=1 // pred_check
      _
    $region43: #{pytorch_cnn_forward.1} parent=1 // pred_check_branch
      %40 = sbr.rel (0) target = $region45
    $region44: #{pytorch_cnn_forward.1} parent=1 // pred_region
      _
    $region45: #{pytorch_cnn_forward.1} parent=1 // pred_fallthru
      _
    // Predicated region
    $region46: #{pytorch_cnn_forward.1} parent=1 // pred_check
      _
    $region47: #{pytorch_cnn_forward.1} parent=1 // pred_check_branch
      %42 = sbr.rel (0) target = $region49
    $region48: #{pytorch_cnn_forward.1} parent=1 // pred_region
      _
    $region49: #{pytorch_cnn_forward.1} parent=1 // pred_fallthru
      _
    // Predicated region
    $region50: #{pytorch_cnn_forward.1} parent=1 // pred_check
      _
    $region51: #{pytorch_cnn_forward.1} parent=1 // pred_check_branch
      %44 = sbr.rel (0) target = $region53
    $region52: #{pytorch_cnn_forward.1} parent=1 // pred_region
      _
    $region53: #{pytorch_cnn_forward.1} parent=1 // pred_fallthru
      _
    %v45 = vld [vmem:[%s0] sm:$0xff]
    %v46 = vld [vmem:[%s0 + $0x8] sm:$0xff]
    %v47 = vld [vmem:[%s0 + $0x10] sm:$0xff]
    %v48 = vld [vmem:[%s0 + $0x18] sm:$0xf]
    %v49 = vld [vmem:[%s1] sm:$0xff]
    %v50 = vld [vmem:[%s1 + $0x8] sm:$0xff]
    %v51 = vld [vmem:[%s1 + $0x10] sm:$0xff]
    %v52 = vld [vmem:[%s1 + $0x18] sm:$0xff]
    %v53 = vld [vmem:[%s2] sm:$0xff]
    %v54 = vld [vmem:[%s2 + $0x8] sm:$0xff]
    %v55 = vld [vmem:[%s2 + $0x10] sm:$0xff]
    %v56 = vld [vmem:[%s2 + $0x18] sm:$0xff]
    %v57 = vld [vmem:[%s0 + $0x1] sm:$0xff]
    %v58 = vld [vmem:[%s0 + $0x9] sm:$0xff]
    %v59 = vld [vmem:[%s0 + $0x11] sm:$0xff]
    %v60 = vld [vmem:[%s0 + $0x19] sm:$0xf]
    %s61 = scalar_lea.vmem %s1, 32
    %v62 = vld [vmem:[%s61] sm:$0xff]
    %v63 = vld [vmem:[%s61 + $0x8] sm:$0xff]
    %v64 = vld [vmem:[%s61 + $0x10] sm:$0xff]
    %v65 = vld [vmem:[%s61 + $0x18] sm:$0xff]
    %vm66 = vcmask 261120
    %v68 = vsel %vm66, %v57, 0
    %v71 = vsel %vm66, %v58, 0
    %v74 = vsel %vm66, %v59, 0
    %v77 = vsel %vm66, %v60, 0
    %79 = vmatprep.subr.mxu0 0.0
    %80 = vmatpush1.msra.mxu0 %v62
    %81 = vmatprep.subr.mxu0 0.0
    %82 = vmatpush1.msra.mxu0 %v63
    %83 = vmatprep.subr.mxu0 0.0
    %84 = vmatpush1.msra.mxu0 %v64
    %85 = vmatprep.subr.mxu0 0.0
    %86 = vmatpush1.msra.mxu0 %v65
    %87 = vmatprep.subr.mxu0 0.0
    %88 = vmatpush1.msra.mxu0 0.0
    %89 = vmatprep.subr.mxu0 0.0
    %90 = vmatpush1.msra.mxu0 0.0
    %91 = vmatprep.subr.mxu0 0.0
    %92 = vmatpush1.msra.mxu0 0.0
    %93 = vmatprep.subr.mxu0 0.0
    %94 = vmatpush1.msra.mxu0 0.0
    %95 = vmatprep.subr.mxu0 0.0
    %96 = vmatpush1.msra.mxu0 0.0
    %97 = vmatprep.subr.mxu0 0.0
    %98 = vmatpush1.msra.mxu0 0.0
    %99 = vmatprep.subr.mxu0 0.0
    %100 = vmatpush1.msra.mxu0 0.0
    %101 = vmatprep.subr.mxu0 0.0
    %102 = vmatpush1.msra.mxu0 0.0
    %103 = vmatprep.subr.mxu0 0.0
    %104 = vmatpush1.msra.mxu0 0.0
    %105 = vmatprep.subr.mxu0 0.0
    %106 = vmatpush1.msra.mxu0 0.0
    %107 = vmatprep.subr.mxu0 0.0
    %108 = vmatpush1.msra.mxu0 0.0
    %109 = vmatprep.subr.mxu0 0.0
    %110 = vmatpush1.msra.mxu0 0.0
    %111 = vmatprep.subr.mxu0 0.0
    %112 = vmatpush1.msra.mxu0 0.0
    %113 = vmatprep.subr.mxu0 0.0
    %114 = vmatpush1.msra.mxu0 0.0
    %115 = vmatprep.subr.mxu0 0.0
    %116 = vmatpush1.msra.mxu0 0.0
    %117 = vmatprep.subr.mxu0 0.0
    %118 = vmatpush1.msra.mxu0 0.0
    %119 = vmatprep.subr.mxu0 0.0
    %120 = vmatpush1.msra.mxu0 0.0
    %121 = vmatprep.subr.mxu0 0.0
    %122 = vmatpush1.msra.mxu0 0.0
    %123 = vmatprep.subr.mxu0 0.0
    %124 = vmatpush1.msra.mxu0 0.0
    %125 = vmatprep.subr.mxu0 0.0
    %126 = vmatpush1.msra.mxu0 0.0
    %127 = vmatprep.subr.mxu0 0.0
    %128 = vmatpush1.msra.mxu0 0.0
    %129 = vmatprep.subr.mxu0 0.0
    %130 = vmatpush1.msra.mxu0 0.0
    %131 = vmatprep.subr.mxu0 0.0
    %132 = vmatpush1.msra.mxu0 0.0
    %133 = vmatprep.subr.mxu0 0.0
    %134 = vmatpush1.msra.mxu0 0.0
    %135 = vmatprep.subr.mxu0 0.0
    %136 = vmatpush1.msra.mxu0 0.0
    %137 = vmatprep.subr.mxu0 0.0
    %138 = vmatpush1.msra.mxu0 0.0
    %139 = vmatprep.subr.mxu0 0.0
    %140 = vmatpush1.msra.mxu0 0.0
    %141 = vmatprep.subr.mxu0 0.0
    %142 = vmatpush1.msra.mxu0 0.0
    %143 = vmatprep.mubr.f32.mxu0 0.0
    %144 = vmatmul.mubr.f32.gmra.mrb[0].mxu0 %v68
    %v145 = vpop.f32.mrb[0].mxu0
    %v146 = vadd.f32 0.0, %v145
    %v147 = vpop.f32.mrb[0].mxu0
    %148 = vmatprep.mubr.f32.mxu0 0.0
    %149 = vmatmul.mubr.f32.gmra.mrb[0].mxu0 %v71
    %v150 = vpop.f32.mrb[0].mxu0
    %v151 = vadd.f32 0.0, %v150
    %v152 = vpop.f32.mrb[0].mxu0
    %153 = vmatprep.mubr.f32.mxu0 0.0
    %154 = vmatmul.mubr.f32.gmra.mrb[0].mxu0 %v74
    %v155 = vpop.f32.mrb[0].mxu0
    %v156 = vadd.f32 0.0, %v155
    %v157 = vpop.f32.mrb[0].mxu0
    %158 = vmatprep.mubr.f32.mxu0 0.0
    %159 = vmatmul.mubr.f32.gmra.mrb[0].mxu0 %v77
    %v160 = vpop.f32.mrb[0].mxu0
    %v161 = vadd.f32 0.0, %v160
    %v162 = vpop.f32.mrb[0].mxu0
    %163 = vdwg.mxu0
    %v165 = vsel %vm66, %v45, 0
    %v168 = vsel %vm66, %v46, 0
    %v171 = vsel %vm66, %v47, 0
    %v174 = vsel %vm66, %v48, 0
    %176 = vmatprep.subr.mxu0 0.0
    %177 = vmatpush1.msra.mxu0 %v49
    %178 = vmatprep.subr.mxu0 0.0
    %179 = vmatpush1.msra.mxu0 %v50
    %180 = vmatprep.subr.mxu0 0.0
    %181 = vmatpush1.msra.mxu0 %v51
    %182 = vmatprep.subr.mxu0 0.0
    %183 = vmatpush1.msra.mxu0 %v52
    %184 = vmatprep.subr.mxu0 0.0
    %185 = vmatpush1.msra.mxu0 0.0
    %186 = vmatprep.subr.mxu0 0.0
    %187 = vmatpush1.msra.mxu0 0.0
    %188 = vmatprep.subr.mxu0 0.0
    %189 = vmatpush1.msra.mxu0 0.0
    %190 = vmatprep.subr.mxu0 0.0
    %191 = vmatpush1.msra.mxu0 0.0
    %192 = vmatprep.subr.mxu0 0.0
    %193 = vmatpush1.msra.mxu0 0.0
    %194 = vmatprep.subr.mxu0 0.0
    %195 = vmatpush1.msra.mxu0 0.0
    %196 = vmatprep.subr.mxu0 0.0
    %197 = vmatpush1.msra.mxu0 0.0
    %198 = vmatprep.subr.mxu0 0.0
    %199 = vmatpush1.msra.mxu0 0.0
    %200 = vmatprep.subr.mxu0 0.0
    %201 = vmatpush1.msra.mxu0 0.0
    %202 = vmatprep.subr.mxu0 0.0
    %203 = vmatpush1.msra.mxu0 0.0
    %204 = vmatprep.subr.mxu0 0.0
    %205 = vmatpush1.msra.mxu0 0.0
    %206 = vmatprep.subr.mxu0 0.0
    %207 = vmatpush1.msra.mxu0 0.0
    %208 = vmatprep.subr.mxu0 0.0
    %209 = vmatpush1.msra.mxu0 0.0
    %210 = vmatprep.subr.mxu0 0.0
    %211 = vmatpush1.msra.mxu0 0.0
    %212 = vmatprep.subr.mxu0 0.0
    %213 = vmatpush1.msra.mxu0 0.0
    %214 = vmatprep.subr.mxu0 0.0
    %215 = vmatpush1.msra.mxu0 0.0
    %216 = vmatprep.subr.mxu0 0.0
    %217 = vmatpush1.msra.mxu0 0.0
    %218 = vmatprep.subr.mxu0 0.0
    %219 = vmatpush1.msra.mxu0 0.0
    %220 = vmatprep.subr.mxu0 0.0
    %221 = vmatpush1.msra.mxu0 0.0
    %222 = vmatprep.subr.mxu0 0.0
    %223 = vmatpush1.msra.mxu0 0.0
    %224 = vmatprep.subr.mxu0 0.0
    %225 = vmatpush1.msra.mxu0 0.0
    %226 = vmatprep.subr.mxu0 0.0
    %227 = vmatpush1.msra.mxu0 0.0
    %228 = vmatprep.subr.mxu0 0.0
    %229 = vmatpush1.msra.mxu0 0.0
    %230 = vmatprep.subr.mxu0 0.0
    %231 = vmatpush1.msra.mxu0 0.0
    %232 = vmatprep.subr.mxu0 0.0
    %233 = vmatpush1.msra.mxu0 0.0
    %234 = vmatprep.subr.mxu0 0.0
    %235 = vmatpush1.msra.mxu0 0.0
    %236 = vmatprep.subr.mxu0 0.0
    %237 = vmatpush1.msra.mxu0 0.0
    %238 = vmatprep.subr.mxu0 0.0
    %239 = vmatpush1.msra.mxu0 0.0
    %240 = vmatprep.mubr.f32.mxu0 0.0
    %241 = vmatmul.mubr.f32.gmra.mrb[0].mxu0 %v165
    %v242 = vpop.f32.mrb[0].mxu0
    %v243 = vadd.f32 %v146, %v242
    %v244 = vpop.f32.mrb[0].mxu0
    %245 = vmatprep.mubr.f32.mxu0 0.0
    %246 = vmatmul.mubr.f32.gmra.mrb[0].mxu0 %v168
    %v247 = vpop.f32.mrb[0].mxu0
    %v248 = vadd.f32 %v151, %v247
    %v249 = vpop.f32.mrb[0].mxu0
    %250 = vmatprep.mubr.f32.mxu0 0.0
    %251 = vmatmul.mubr.f32.gmra.mrb[0].mxu0 %v171
    %v252 = vpop.f32.mrb[0].mxu0
    %v253 = vadd.f32 %v156, %v252
    %v254 = vpop.f32.mrb[0].mxu0
    %255 = vmatprep.mubr.f32.mxu0 0.0
    %256 = vmatmul.mubr.f32.gmra.mrb[0].mxu0 %v174
    %v257 = vpop.f32.mrb[0].mxu0
    %v258 = vadd.f32 %v161, %v257
    %v259 = vpop.f32.mrb[0].mxu0
    %260 = vdwg.mxu0
    %s261 = scalar_lea.vmem %s2, 32
    %v262 = vld [vmem:[%s261] sm:$0xff]
    %v263 = vld [vmem:[%s261 + $0x8] sm:$0xff]
    %v264 = vld [vmem:[%s261 + $0x10] sm:$0xff]
    %v265 = vld [vmem:[%s261 + $0x18] sm:$0xff]
    %266 = vmatprep.subr.mxu0 0.0
    %267 = vmatpush1.msra.mxu0 %v262
    %268 = vmatprep.subr.mxu0 0.0
    %269 = vmatpush1.msra.mxu0 %v263
    %270 = vmatprep.subr.mxu0 0.0
    %271 = vmatpush1.msra.mxu0 %v264
    %272 = vmatprep.subr.mxu0 0.0
    %273 = vmatpush1.msra.mxu0 %v265
    %274 = vmatprep.subr.mxu0 0.0
    %275 = vmatpush1.msra.mxu0 0.0
    %276 = vmatprep.subr.mxu0 0.0
    %277 = vmatpush1.msra.mxu0 0.0
    %278 = vmatprep.subr.mxu0 0.0
    %279 = vmatpush1.msra.mxu0 0.0
    %280 = vmatprep.subr.mxu0 0.0
    %281 = vmatpush1.msra.mxu0 0.0
    %282 = vmatprep.subr.mxu0 0.0
    %283 = vmatpush1.msra.mxu0 0.0
    %284 = vmatprep.subr.mxu0 0.0
    %285 = vmatpush1.msra.mxu0 0.0
    %286 = vmatprep.subr.mxu0 0.0
    %287 = vmatpush1.msra.mxu0 0.0
    %288 = vmatprep.subr.mxu0 0.0
    %289 = vmatpush1.msra.mxu0 0.0
    %290 = vmatprep.subr.mxu0 0.0
    %291 = vmatpush1.msra.mxu0 0.0
    %292 = vmatprep.subr.mxu0 0.0
    %293 = vmatpush1.msra.mxu0 0.0
    %294 = vmatprep.subr.mxu0 0.0
    %295 = vmatpush1.msra.mxu0 0.0
    %296 = vmatprep.subr.mxu0 0.0
    %297 = vmatpush1.msra.mxu0 0.0
    %298 = vmatprep.subr.mxu0 0.0
    %299 = vmatpush1.msra.mxu0 0.0
    %300 = vmatprep.subr.mxu0 0.0
    %301 = vmatpush1.msra.mxu0 0.0
    %302 = vmatprep.subr.mxu0 0.0
    %303 = vmatpush1.msra.mxu0 0.0
    %304 = vmatprep.subr.mxu0 0.0
    %305 = vmatpush1.msra.mxu0 0.0
    %306 = vmatprep.subr.mxu0 0.0
    %307 = vmatpush1.msra.mxu0 0.0
    %308 = vmatprep.subr.mxu0 0.0
    %309 = vmatpush1.msra.mxu0 0.0
    %310 = vmatprep.subr.mxu0 0.0
    %311 = vmatpush1.msra.mxu0 0.0
    %312 = vmatprep.subr.mxu0 0.0
    %313 = vmatpush1.msra.mxu0 0.0
    %314 = vmatprep.subr.mxu0 0.0
    %315 = vmatpush1.msra.mxu0 0.0
    %316 = vmatprep.subr.mxu0 0.0
    %317 = vmatpush1.msra.mxu0 0.0
    %318 = vmatprep.subr.mxu0 0.0
    %319 = vmatpush1.msra.mxu0 0.0
    %320 = vmatprep.subr.mxu0 0.0
    %321 = vmatpush1.msra.mxu0 0.0
    %322 = vmatprep.subr.mxu0 0.0
    %323 = vmatpush1.msra.mxu0 0.0
    %324 = vmatprep.subr.mxu0 0.0
    %325 = vmatpush1.msra.mxu0 0.0
    %326 = vmatprep.subr.mxu0 0.0
    %327 = vmatpush1.msra.mxu0 0.0
    %328 = vmatprep.subr.mxu0 0.0
    %329 = vmatpush1.msra.mxu0 0.0
    %330 = vmatprep.mubr.f32.mxu0 0.0
    %331 = vmatmul.mubr.f32.gmra.mrb[0].mxu0 %v68
    %v332 = vpop.f32.mrb[0].mxu0
    %v333 = vadd.f32 0.0, %v332
    %v334 = vpop.f32.mrb[0].mxu0
    %335 = vmatprep.mubr.f32.mxu0 0.0
    %336 = vmatmul.mubr.f32.gmra.mrb[0].mxu0 %v71
    %v337 = vpop.f32.mrb[0].mxu0
    %v338 = vadd.f32 0.0, %v337
    %v339 = vpop.f32.mrb[0].mxu0
    %340 = vmatprep.mubr.f32.mxu0 0.0
    %341 = vmatmul.mubr.f32.gmra.mrb[0].mxu0 %v74
    %v342 = vpop.f32.mrb[0].mxu0
    %v343 = vadd.f32 0.0, %v342
    %v344 = vpop.f32.mrb[0].mxu0
    %345 = vmatprep.mubr.f32.mxu0 0.0
    %346 = vmatmul.mubr.f32.gmra.mrb[0].mxu0 %v77
    %v347 = vpop.f32.mrb[0].mxu0
    %v348 = vadd.f32 0.0, %v347
    %v349 = vpop.f32.mrb[0].mxu0
    %350 = vdwg.mxu0
    %351 = vmatprep.subr.mxu0 0.0
    %352 = vmatpush1.msra.mxu0 %v53
    %353 = vmatprep.subr.mxu0 0.0
    %354 = vmatpush1.msra.mxu0 %v54
    %355 = vmatprep.subr.mxu0 0.0
    %356 = vmatpush1.msra.mxu0 %v55
    %357 = vmatprep.subr.mxu0 0.0
    %358 = vmatpush1.msra.mxu0 %v56
    %359 = vmatprep.subr.mxu0 0.0
    %360 = vmatpush1.msra.mxu0 0.0
    %361 = vmatprep.subr.mxu0 0.0
    %362 = vmatpush1.msra.mxu0 0.0
    %363 = vmatprep.subr.mxu0 0.0
    %364 = vmatpush1.msra.mxu0 0.0
    %365 = vmatprep.subr.mxu0 0.0
    %366 = vmatpush1.msra.mxu0 0.0
    %367 = vmatprep.subr.mxu0 0.0
    %368 = vmatpush1.msra.mxu0 0.0
    %369 = vmatprep.subr.mxu0 0.0
    %370 = vmatpush1.msra.mxu0 0.0
    %371 = vmatprep.subr.mxu0 0.0
    %372 = vmatpush1.msra.mxu0 0.0
    %373 = vmatprep.subr.mxu0 0.0
    %374 = vmatpush1.msra.mxu0 0.0
    %375 = vmatprep.subr.mxu0 0.0
    %376 = vmatpush1.msra.mxu0 0.0
    %377 = vmatprep.subr.mxu0 0.0
    %378 = vmatpush1.msra.mxu0 0.0
    %379 = vmatprep.subr.mxu0 0.0
    %380 = vmatpush1.msra.mxu0 0.0
    %381 = vmatprep.subr.mxu0 0.0
    %382 = vmatpush1.msra.mxu0 0.0
    %383 = vmatprep.subr.mxu0 0.0
    %384 = vmatpush1.msra.mxu0 0.0
    %385 = vmatprep.subr.mxu0 0.0
    %386 = vmatpush1.msra.mxu0 0.0
    %387 = vmatprep.subr.mxu0 0.0
    %388 = vmatpush1.msra.mxu0 0.0
    %389 = vmatprep.subr.mxu0 0.0
    %390 = vmatpush1.msra.mxu0 0.0
    %391 = vmatprep.subr.mxu0 0.0
    %392 = vmatpush1.msra.mxu0 0.0
    %393 = vmatprep.subr.mxu0 0.0
    %394 = vmatpush1.msra.mxu0 0.0
    %395 = vmatprep.subr.mxu0 0.0
    %396 = vmatpush1.msra.mxu0 0.0
    %397 = vmatprep.subr.mxu0 0.0
    %398 = vmatpush1.msra.mxu0 0.0
    %399 = vmatprep.subr.mxu0 0.0
    %400 = vmatpush1.msra.mxu0 0.0
    %401 = vmatprep.subr.mxu0 0.0
    %402 = vmatpush1.msra.mxu0 0.0
    %403 = vmatprep.subr.mxu0 0.0
    %404 = vmatpush1.msra.mxu0 0.0
    %405 = vmatprep.subr.mxu0 0.0
    %406 = vmatpush1.msra.mxu0 0.0
    %407 = vmatprep.subr.mxu0 0.0
    %408 = vmatpush1.msra.mxu0 0.0
    %409 = vmatprep.subr.mxu0 0.0
    %410 = vmatpush1.msra.mxu0 0.0
    %411 = vmatprep.subr.mxu0 0.0
    %412 = vmatpush1.msra.mxu0 0.0
    %413 = vmatprep.subr.mxu0 0.0
    %414 = vmatpush1.msra.mxu0 0.0
    %415 = vmatprep.mubr.f32.mxu0 0.0
    %416 = vmatmul.mubr.f32.gmra.mrb[0].mxu0 %v165
    %v417 = vpop.f32.mrb[0].mxu0
    %v418 = vadd.f32 %v333, %v417
    %v419 = vpop.f32.mrb[0].mxu0
    %420 = vmatprep.mubr.f32.mxu0 0.0
    %421 = vmatmul.mubr.f32.gmra.mrb[0].mxu0 %v168
    %v422 = vpop.f32.mrb[0].mxu0
    %v423 = vadd.f32 %v338, %v422
    %v424 = vpop.f32.mrb[0].mxu0
    %425 = vmatprep.mubr.f32.mxu0 0.0
    %426 = vmatmul.mubr.f32.gmra.mrb[0].mxu0 %v171
    %v427 = vpop.f32.mrb[0].mxu0
    %v428 = vadd.f32 %v343, %v427
    %v429 = vpop.f32.mrb[0].mxu0
    %430 = vmatprep.mubr.f32.mxu0 0.0
    %431 = vmatmul.mubr.f32.gmra.mrb[0].mxu0 %v174
    %v432 = vpop.f32.mrb[0].mxu0
    %v433 = vadd.f32 %v348, %v432
    %v434 = vpop.f32.mrb[0].mxu0
    %435 = vdwg.mxu0
    %v436 = vld [vmem:[%s0 + $0x2] sm:$0xff]
    %v437 = vld [vmem:[%s0 + $0xa] sm:$0xff]
    %v438 = vld [vmem:[%s0 + $0x12] sm:$0xff]
    %v439 = vld [vmem:[%s0 + $0x1a] sm:$0xf]
    %s440 = scalar_lea.vmem %s1, 64
    %v441 = vld [vmem:[%s440] sm:$0xff]
    %v442 = vld [vmem:[%s440 + $0x8] sm:$0xff]
    %v443 = vld [vmem:[%s440 + $0x10] sm:$0xff]
    %v444 = vld [vmem:[%s440 + $0x18] sm:$0xff]
    %v446 = vsel %vm66, %v436, 0
    %v449 = vsel %vm66, %v437, 0
    %v452 = vsel %vm66, %v438, 0
    %v455 = vsel %vm66, %v439, 0
    %457 = vmatprep.subr.mxu0 0.0
    %458 = vmatpush1.msra.mxu0 %v441
    %459 = vmatprep.subr.mxu0 0.0
    %460 = vmatpush1.msra.mxu0 %v442
    %461 = vmatprep.subr.mxu0 0.0
    %462 = vmatpush1.msra.mxu0 %v443
    %463 = vmatprep.subr.mxu0 0.0
    %464 = vmatpush1.msra.mxu0 %v444
    %465 = vmatprep.subr.mxu0 0.0
    %466 = vmatpush1.msra.mxu0 0.0
    %467 = vmatprep.subr.mxu0 0.0
    %468 = vmatpush1.msra.mxu0 0.0
    %469 = vmatprep.subr.mxu0 0.0
    %470 = vmatpush1.msra.mxu0 0.0
    %471 = vmatprep.subr.mxu0 0.0
    %472 = vmatpush1.msra.mxu0 0.0
    %473 = vmatprep.subr.mxu0 0.0
    %474 = vmatpush1.msra.mxu0 0.0
    %475 = vmatprep.subr.mxu0 0.0
    %476 = vmatpush1.msra.mxu0 0.0
    %477 = vmatprep.subr.mxu0 0.0
    %478 = vmatpush1.msra.mxu0 0.0
    %479 = vmatprep.subr.mxu0 0.0
    %480 = vmatpush1.msra.mxu0 0.0
    %481 = vmatprep.subr.mxu0 0.0
    %482 = vmatpush1.msra.mxu0 0.0
    %483 = vmatprep.subr.mxu0 0.0
    %484 = vmatpush1.msra.mxu0 0.0
    %485 = vmatprep.subr.mxu0 0.0
    %486 = vmatpush1.msra.mxu0 0.0
    %487 = vmatprep.subr.mxu0 0.0
    %488 = vmatpush1.msra.mxu0 0.0
    %489 = vmatprep.subr.mxu0 0.0
    %490 = vmatpush1.msra.mxu0 0.0
    %491 = vmatprep.subr.mxu0 0.0
    %492 = vmatpush1.msra.mxu0 0.0
    %493 = vmatprep.subr.mxu0 0.0
    %494 = vmatpush1.msra.mxu0 0.0
    %495 = vmatprep.subr.mxu0 0.0
    %496 = vmatpush1.msra.mxu0 0.0
    %497 = vmatprep.subr.mxu0 0.0
    %498 = vmatpush1.msra.mxu0 0.0
    %499 = vmatprep.subr.mxu0 0.0
    %500 = vmatpush1.msra.mxu0 0.0
    %501 = vmatprep.subr.mxu0 0.0
    %502 = vmatpush1.msra.mxu0 0.0
    %503 = vmatprep.subr.mxu0 0.0
    %504 = vmatpush1.msra.mxu0 0.0
    %505 = vmatprep.subr.mxu0 0.0
    %506 = vmatpush1.msra.mxu0 0.0
    %507 = vmatprep.subr.mxu0 0.0
    %508 = vmatpush1.msra.mxu0 0.0
    %509 = vmatprep.subr.mxu0 0.0
    %510 = vmatpush1.msra.mxu0 0.0
    %511 = vmatprep.subr.mxu0 0.0
    %512 = vmatpush1.msra.mxu0 0.0
    %513 = vmatprep.subr.mxu0 0.0
    %514 = vmatpush1.msra.mxu0 0.0
    %515 = vmatprep.subr.mxu0 0.0
    %516 = vmatpush1.msra.mxu0 0.0
    %517 = vmatprep.subr.mxu0 0.0
    %518 = vmatpush1.msra.mxu0 0.0
    %519 = vmatprep.subr.mxu0 0.0
    %520 = vmatpush1.msra.mxu0 0.0
    %521 = vmatprep.mubr.f32.mxu0 0.0
    %522 = vmatmul.mubr.f32.gmra.mrb[0].mxu0 %v446
    %v523 = vpop.f32.mrb[0].mxu0
    %v524 = vadd.f32 0.0, %v523
    %v525 = vpop.f32.mrb[0].mxu0
    %526 = vmatprep.mubr.f32.mxu0 0.0
    %527 = vmatmul.mubr.f32.gmra.mrb[0].mxu0 %v449
    %v528 = vpop.f32.mrb[0].mxu0
    %v529 = vadd.f32 0.0, %v528
    %v530 = vpop.f32.mrb[0].mxu0
    %531 = vmatprep.mubr.f32.mxu0 0.0
    %532 = vmatmul.mubr.f32.gmra.mrb[0].mxu0 %v452
    %v533 = vpop.f32.mrb[0].mxu0
    %v534 = vadd.f32 0.0, %v533
    %v535 = vpop.f32.mrb[0].mxu0
    %536 = vmatprep.mubr.f32.mxu0 0.0
    %537 = vmatmul.mubr.f32.gmra.mrb[0].mxu0 %v455
    %v538 = vpop.f32.mrb[0].mxu0
    %v539 = vadd.f32 0.0, %v538
    %v540 = vpop.f32.mrb[0].mxu0
    %541 = vdwg.mxu0
    %v542 = vadd.f32 %v243, %v524
    %v543 = vadd.f32 %v248, %v529
    %v544 = vadd.f32 %v253, %v534
    %v545 = vadd.f32 %v258, %v539
    %s546 = scalar_lea.vmem %s2, 64
    %v547 = vld [vmem:[%s546] sm:$0xff]
    %v548 = vld [vmem:[%s546 + $0x8] sm:$0xff]
    %v549 = vld [vmem:[%s546 + $0x10] sm:$0xff]
    %v550 = vld [vmem:[%s546 + $0x18] sm:$0xff]
    %551 = vmatprep.subr.mxu0 0.0
    %552 = vmatpush1.msra.mxu0 %v547
    %553 = vmatprep.subr.mxu0 0.0
    %554 = vmatpush1.msra.mxu0 %v548
    %555 = vmatprep.subr.mxu0 0.0
    %556 = vmatpush1.msra.mxu0 %v549
    %557 = vmatprep.subr.mxu0 0.0
    %558 = vmatpush1.msra.mxu0 %v550
    %559 = vmatprep.subr.mxu0 0.0
    %560 = vmatpush1.msra.mxu0 0.0
    %561 = vmatprep.subr.mxu0 0.0
    %562 = vmatpush1.msra.mxu0 0.0
    %563 = vmatprep.subr.mxu0 0.0
    %564 = vmatpush1.msra.mxu0 0.0
    %565 = vmatprep.subr.mxu0 0.0
    %566 = vmatpush1.msra.mxu0 0.0
    %567 = vmatprep.subr.mxu0 0.0
    %568 = vmatpush1.msra.mxu0 0.0
    %569 = vmatprep.subr.mxu0 0.0
    %570 = vmatpush1.msra.mxu0 0.0
    %571 = vmatprep.subr.mxu0 0.0
    %572 = vmatpush1.msra.mxu0 0.0
    %573 = vmatprep.subr.mxu0 0.0
    %574 = vmatpush1.msra.mxu0 0.0
    %575 = vmatprep.subr.mxu0 0.0
    %576 = vmatpush1.msra.mxu0 0.0
    %577 = vmatprep.subr.mxu0 0.0
    %578 = vmatpush1.msra.mxu0 0.0
    %579 = vmatprep.subr.mxu0 0.0
    %580 = vmatpush1.msra.mxu0 0.0
    %581 = vmatprep.subr.mxu0 0.0
    %582 = vmatpush1.msra.mxu0 0.0
    %583 = vmatprep.subr.mxu0 0.0
    %584 = vmatpush1.msra.mxu0 0.0
    %585 = vmatprep.subr.mxu0 0.0
    %586 = vmatpush1.msra.mxu0 0.0
    %587 = vmatprep.subr.mxu0 0.0
    %588 = vmatpush1.msra.mxu0 0.0
    %589 = vmatprep.subr.mxu0 0.0
    %590 = vmatpush1.msra.mxu0 0.0
    %591 = vmatprep.subr.mxu0 0.0
    %592 = vmatpush1.msra.mxu0 0.0
    %593 = vmatprep.subr.mxu0 0.0
    %594 = vmatpush1.msra.mxu0 0.0
    %595 = vmatprep.subr.mxu0 0.0
    %596 = vmatpush1.msra.mxu0 0.0
    %597 = vmatprep.subr.mxu0 0.0
    %598 = vmatpush1.msra.mxu0 0.0
    %599 = vmatprep.subr.mxu0 0.0
    %600 = vmatpush1.msra.mxu0 0.0
    %601 = vmatprep.subr.mxu0 0.0
    %602 = vmatpush1.msra.mxu0 0.0
    %603 = vmatprep.subr.mxu0 0.0
    %604 = vmatpush1.msra.mxu0 0.0
    %605 = vmatprep.subr.mxu0 0.0
    %606 = vmatpush1.msra.mxu0 0.0
    %607 = vmatprep.subr.mxu0 0.0
    %608 = vmatpush1.msra.mxu0 0.0
    %609 = vmatprep.subr.mxu0 0.0
    %610 = vmatpush1.msra.mxu0 0.0
    %611 = vmatprep.subr.mxu0 0.0
    %612 = vmatpush1.msra.mxu0 0.0
    %613 = vmatprep.subr.mxu0 0.0
    %614 = vmatpush1.msra.mxu0 0.0
    %615 = vmatprep.mubr.f32.mxu0 0.0
    %616 = vmatmul.mubr.f32.gmra.mrb[0].mxu0 %v446
    %v617 = vpop.f32.mrb[0].mxu0
    %v618 = vadd.f32 0.0, %v617
    %v619 = vpop.f32.mrb[0].mxu0
    %620 = vmatprep.mubr.f32.mxu0 0.0
    %621 = vmatmul.mubr.f32.gmra.mrb[0].mxu0 %v449
    %v622 = vpop.f32.mrb[0].mxu0
    %v623 = vadd.f32 0.0, %v622
    %v624 = vpop.f32.mrb[0].mxu0
    %625 = vmatprep.mubr.f32.mxu0 0.0
    %626 = vmatmul.mubr.f32.gmra.mrb[0].mxu0 %v452
    %v627 = vpop.f32.mrb[0].mxu0
    %v628 = vadd.f32 0.0, %v627
    %v629 = vpop.f32.mrb[0].mxu0
    %630 = vmatprep.mubr.f32.mxu0 0.0
    %631 = vmatmul.mubr.f32.gmra.mrb[0].mxu0 %v455
    %v632 = vpop.f32.mrb[0].mxu0
    %v633 = vadd.f32 0.0, %v632
    %v634 = vpop.f32.mrb[0].mxu0
    %635 = vdwg.mxu0
    %v636 = vadd.f32 %v418, %v618
    %v637 = vadd.f32 %v423, %v623
    %v638 = vadd.f32 %v428, %v628
    %v639 = vadd.f32 %v433, %v633
    %v640 = vld [vmem:[%s0 + $0x3] sm:$0xff]
    %v641 = vld [vmem:[%s0 + $0xb] sm:$0xff]
    %v642 = vld [vmem:[%s0 + $0x13] sm:$0xff]
    %v643 = vld [vmem:[%s0 + $0x1b] sm:$0xf]
    %s644 = scalar_lea.vmem %s1, 96
    %v645 = vld [vmem:[%s644] sm:$0xff]
    %v646 = vld [vmem:[%s644 + $0x8] sm:$0xff]
    %v647 = vld [vmem:[%s644 + $0x10] sm:$0xff]
    %v648 = vld [vmem:[%s644 + $0x18] sm:$0xff]
    %v650 = vsel %vm66, %v640, 0
    %v653 = vsel %vm66, %v641, 0
    %v656 = vsel %vm66, %v642, 0
    %v659 = vsel %vm66, %v643, 0
    %661 = vmatprep.subr.mxu0 0.0
    %662 = vmatpush1.msra.mxu0 %v645
    %663 = vmatprep.subr.mxu0 0.0
    %664 = vmatpush1.msra.mxu0 %v646
    %665 = vmatprep.subr.mxu0 0.0
    %666 = vmatpush1.msra.mxu0 %v647
    %667 = vmatprep.subr.mxu0 0.0
    %668 = vmatpush1.msra.mxu0 %v648
    %669 = vmatprep.subr.mxu0 0.0
    %670 = vmatpush1.msra.mxu0 0.0
    %671 = vmatprep.subr.mxu0 0.0
    %672 = vmatpush1.msra.mxu0 0.0
    %673 = vmatprep.subr.mxu0 0.0
    %674 = vmatpush1.msra.mxu0 0.0
    %675 = vmatprep.subr.mxu0 0.0
    %676 = vmatpush1.msra.mxu0 0.0
    %677 = vmatprep.subr.mxu0 0.0
    %678 = vmatpush1.msra.mxu0 0.0
    %679 = vmatprep.subr.mxu0 0.0
    %680 = vmatpush1.msra.mxu0 0.0
    %681 = vmatprep.subr.mxu0 0.0
    %682 = vmatpush1.msra.mxu0 0.0
    %683 = vmatprep.subr.mxu0 0.0
    %684 = vmatpush1.msra.mxu0 0.0
    %685 = vmatprep.subr.mxu0 0.0
    %686 = vmatpush1.msra.mxu0 0.0
    %687 = vmatprep.subr.mxu0 0.0
    %688 = vmatpush1.msra.mxu0 0.0
    %689 = vmatprep.subr.mxu0 0.0
    %690 = vmatpush1.msra.mxu0 0.0
    %691 = vmatprep.subr.mxu0 0.0
    %692 = vmatpush1.msra.mxu0 0.0
    %693 = vmatprep.subr.mxu0 0.0
    %694 = vmatpush1.msra.mxu0 0.0
    %695 = vmatprep.subr.mxu0 0.0
    %696 = vmatpush1.msra.mxu0 0.0
    %697 = vmatprep.subr.mxu0 0.0
    %698 = vmatpush1.msra.mxu0 0.0
    %699 = vmatprep.subr.mxu0 0.0
    %700 = vmatpush1.msra.mxu0 0.0
    %701 = vmatprep.subr.mxu0 0.0
    %702 = vmatpush1.msra.mxu0 0.0
    %703 = vmatprep.subr.mxu0 0.0
    %704 = vmatpush1.msra.mxu0 0.0
    %705 = vmatprep.subr.mxu0 0.0
    %706 = vmatpush1.msra.mxu0 0.0
    %707 = vmatprep.subr.mxu0 0.0
    %708 = vmatpush1.msra.mxu0 0.0
    %709 = vmatprep.subr.mxu0 0.0
    %710 = vmatpush1.msra.mxu0 0.0
    %711 = vmatprep.subr.mxu0 0.0
    %712 = vmatpush1.msra.mxu0 0.0
    %713 = vmatprep.subr.mxu0 0.0
    %714 = vmatpush1.msra.mxu0 0.0
    %715 = vmatprep.subr.mxu0 0.0
    %716 = vmatpush1.msra.mxu0 0.0
    %717 = vmatprep.subr.mxu0 0.0
    %718 = vmatpush1.msra.mxu0 0.0
    %719 = vmatprep.subr.mxu0 0.0
    %720 = vmatpush1.msra.mxu0 0.0
    %721 = vmatprep.subr.mxu0 0.0
    %722 = vmatpush1.msra.mxu0 0.0
    %723 = vmatprep.subr.mxu0 0.0
    %724 = vmatpush1.msra.mxu0 0.0
    %725 = vmatprep.mubr.f32.mxu0 0.0
    %726 = vmatmul.mubr.f32.gmra.mrb[0].mxu0 %v650
    %v727 = vpop.f32.mrb[0].mxu0
    %v728 = vadd.f32 0.0, %v727
    %v729 = vpop.f32.mrb[0].mxu0
    %730 = vmatprep.mubr.f32.mxu0 0.0
    %731 = vmatmul.mubr.f32.gmra.mrb[0].mxu0 %v653
    %v732 = vpop.f32.mrb[0].mxu0
    %v733 = vadd.f32 0.0, %v732
    %v734 = vpop.f32.mrb[0].mxu0
    %735 = vmatprep.mubr.f32.mxu0 0.0
    %736 = vmatmul.mubr.f32.gmra.mrb[0].mxu0 %v656
    %v737 = vpop.f32.mrb[0].mxu0
    %v738 = vadd.f32 0.0, %v737
    %v739 = vpop.f32.mrb[0].mxu0
    %740 = vmatprep.mubr.f32.mxu0 0.0
    %741 = vmatmul.mubr.f32.gmra.mrb[0].mxu0 %v659
    %v742 = vpop.f32.mrb[0].mxu0
    %v743 = vadd.f32 0.0, %v742
    %v744 = vpop.f32.mrb[0].mxu0
    %745 = vdwg.mxu0
    %v746 = vadd.f32 %v542, %v728
    %v747 = vadd.f32 %v543, %v733
    %v748 = vadd.f32 %v544, %v738
    %v749 = vadd.f32 %v545, %v743
    %s750 = scalar_lea.vmem %s2, 96
    %v751 = vld [vmem:[%s750] sm:$0xff]
    %v752 = vld [vmem:[%s750 + $0x8] sm:$0xff]
    %v753 = vld [vmem:[%s750 + $0x10] sm:$0xff]
    %v754 = vld [vmem:[%s750 + $0x18] sm:$0xff]
    %755 = vmatprep.subr.mxu0 0.0
    %756 = vmatpush1.msra.mxu0 %v751
    %757 = vmatprep.subr.mxu0 0.0
    %758 = vmatpush1.msra.mxu0 %v752
    %759 = vmatprep.subr.mxu0 0.0
    %760 = vmatpush1.msra.mxu0 %v753
    %761 = vmatprep.subr.mxu0 0.0
    %762 = vmatpush1.msra.mxu0 %v754
    %763 = vmatprep.subr.mxu0 0.0
    %764 = vmatpush1.msra.mxu0 0.0
    %765 = vmatprep.subr.mxu0 0.0
    %766 = vmatpush1.msra.mxu0 0.0
    %767 = vmatprep.subr.mxu0 0.0
    %768 = vmatpush1.msra.mxu0 0.0
    %769 = vmatprep.subr.mxu0 0.0
    %770 = vmatpush1.msra.mxu0 0.0
    %771 = vmatprep.subr.mxu0 0.0
    %772 = vmatpush1.msra.mxu0 0.0
    %773 = vmatprep.subr.mxu0 0.0
    %774 = vmatpush1.msra.mxu0 0.0
    %775 = vmatprep.subr.mxu0 0.0
    %776 = vmatpush1.msra.mxu0 0.0
    %777 = vmatprep.subr.mxu0 0.0
    %778 = vmatpush1.msra.mxu0 0.0
    %779 = vmatprep.subr.mxu0 0.0
    %780 = vmatpush1.msra.mxu0 0.0
    %781 = vmatprep.subr.mxu0 0.0
    %782 = vmatpush1.msra.mxu0 0.0
    %783 = vmatprep.subr.mxu0 0.0
    %784 = vmatpush1.msra.mxu0 0.0
    %785 = vmatprep.subr.mxu0 0.0
    %786 = vmatpush1.msra.mxu0 0.0
    %787 = vmatprep.subr.mxu0 0.0
    %788 = vmatpush1.msra.mxu0 0.0
    %789 = vmatprep.subr.mxu0 0.0
    %790 = vmatpush1.msra.mxu0 0.0
    %791 = vmatprep.subr.mxu0 0.0
    %792 = vmatpush1.msra.mxu0 0.0
    %793 = vmatprep.subr.mxu0 0.0
    %794 = vmatpush1.msra.mxu0 0.0
    %795 = vmatprep.subr.mxu0 0.0
    %796 = vmatpush1.msra.mxu0 0.0
    %797 = vmatprep.subr.mxu0 0.0
    %798 = vmatpush1.msra.mxu0 0.0
    %799 = vmatprep.subr.mxu0 0.0
    %800 = vmatpush1.msra.mxu0 0.0
    %801 = vmatprep.subr.mxu0 0.0
    %802 = vmatpush1.msra.mxu0 0.0
    %803 = vmatprep.subr.mxu0 0.0
    %804 = vmatpush1.msra.mxu0 0.0
    %805 = vmatprep.subr.mxu0 0.0
    %806 = vmatpush1.msra.mxu0 0.0
    %807 = vmatprep.subr.mxu0 0.0
    %808 = vmatpush1.msra.mxu0 0.0
    %809 = vmatprep.subr.mxu0 0.0
    %810 = vmatpush1.msra.mxu0 0.0
    %811 = vmatprep.subr.mxu0 0.0
    %812 = vmatpush1.msra.mxu0 0.0
    %813 = vmatprep.subr.mxu0 0.0
    %814 = vmatpush1.msra.mxu0 0.0
    %815 = vmatprep.subr.mxu0 0.0
    %816 = vmatpush1.msra.mxu0 0.0
    %817 = vmatprep.subr.mxu0 0.0
    %818 = vmatpush1.msra.mxu0 0.0
    %819 = vmatprep.mubr.f32.mxu0 0.0
    %820 = vmatmul.mubr.f32.gmra.mrb[0].mxu0 %v650
    %v821 = vpop.f32.mrb[0].mxu0
    %v822 = vadd.f32 0.0, %v821
    %v823 = vpop.f32.mrb[0].mxu0
    %824 = vmatprep.mubr.f32.mxu0 0.0
    %825 = vmatmul.mubr.f32.gmra.mrb[0].mxu0 %v653
    %v826 = vpop.f32.mrb[0].mxu0
    %v827 = vadd.f32 0.0, %v826
    %v828 = vpop.f32.mrb[0].mxu0
    %829 = vmatprep.mubr.f32.mxu0 0.0
    %830 = vmatmul.mubr.f32.gmra.mrb[0].mxu0 %v656
    %v831 = vpop.f32.mrb[0].mxu0
    %v832 = vadd.f32 0.0, %v831
    %v833 = vpop.f32.mrb[0].mxu0
    %834 = vmatprep.mubr.f32.mxu0 0.0
    %835 = vmatmul.mubr.f32.gmra.mrb[0].mxu0 %v659
    %v836 = vpop.f32.mrb[0].mxu0
    %v837 = vadd.f32 0.0, %v836
    %v838 = vpop.f32.mrb[0].mxu0
    %839 = vdwg.mxu0
    %v840 = vadd.f32 %v636, %v822
    %v841 = vadd.f32 %v637, %v827
    %v842 = vadd.f32 %v638, %v832
    %v843 = vadd.f32 %v639, %v837
    %v844 = vld [vmem:[%s0 + $0x4] sm:$0xff]
    %v845 = vld [vmem:[%s0 + $0xc] sm:$0xff]
    %v846 = vld [vmem:[%s0 + $0x14] sm:$0xff]
    %v847 = vld [vmem:[%s0 + $0x1c] sm:$0xf]
    %s848 = scalar_lea.vmem %s1, 128
    %v849 = vld [vmem:[%s848] sm:$0xff]
    %v850 = vld [vmem:[%s848 + $0x8] sm:$0xff]
    %v851 = vld [vmem:[%s848 + $0x10] sm:$0xff]
    %v852 = vld [vmem:[%s848 + $0x18] sm:$0xff]
    %v854 = vsel %vm66, %v844, 0
    %v857 = vsel %vm66, %v845, 0
    %v860 = vsel %vm66, %v846, 0
    %v863 = vsel %vm66, %v847, 0
    %865 = vmatprep.subr.mxu0 0.0
    %866 = vmatpush1.msra.mxu0 %v849
    %867 = vmatprep.subr.mxu0 0.0
    %868 = vmatpush1.msra.mxu0 %v850
    %869 = vmatprep.subr.mxu0 0.0
    %870 = vmatpush1.msra.mxu0 %v851
    %871 = vmatprep.subr.mxu0 0.0
    %872 = vmatpush1.msra.mxu0 %v852
    %873 = vmatprep.subr.mxu0 0.0
    %874 = vmatpush1.msra.mxu0 0.0
    %875 = vmatprep.subr.mxu0 0.0
    %876 = vmatpush1.msra.mxu0 0.0
    %877 = vmatprep.subr.mxu0 0.0
    %878 = vmatpush1.msra.mxu0 0.0
    %879 = vmatprep.subr.mxu0 0.0
    %880 = vmatpush1.msra.mxu0 0.0
    %881 = vmatprep.subr.mxu0 0.0
    %882 = vmatpush1.msra.mxu0 0.0
    %883 = vmatprep.subr.mxu0 0.0
    %884 = vmatpush1.msra.mxu0 0.0
    %885 = vmatprep.subr.mxu0 0.0
    %886 = vmatpush1.msra.mxu0 0.0
    %887 = vmatprep.subr.mxu0 0.0
    %888 = vmatpush1.msra.mxu0 0.0
    %889 = vmatprep.subr.mxu0 0.0
    %890 = vmatpush1.msra.mxu0 0.0
    %891 = vmatprep.subr.mxu0 0.0
    %892 = vmatpush1.msra.mxu0 0.0
    %893 = vmatprep.subr.mxu0 0.0
    %894 = vmatpush1.msra.mxu0 0.0
    %895 = vmatprep.subr.mxu0 0.0
    %896 = vmatpush1.msra.mxu0 0.0
    %897 = vmatprep.subr.mxu0 0.0
    %898 = vmatpush1.msra.mxu0 0.0
    %899 = vmatprep.subr.mxu0 0.0
    %900 = vmatpush1.msra.mxu0 0.0
    %901 = vmatprep.subr.mxu0 0.0
    %902 = vmatpush1.msra.mxu0 0.0
    %903 = vmatprep.subr.mxu0 0.0
    %904 = vmatpush1.msra.mxu0 0.0
    %905 = vmatprep.subr.mxu0 0.0
    %906 = vmatpush1.msra.mxu0 0.0
    %907 = vmatprep.subr.mxu0 0.0
    %908 = vmatpush1.msra.mxu0 0.0
    %909 = vmatprep.subr.mxu0 0.0
    %910 = vmatpush1.msra.mxu0 0.0
    %911 = vmatprep.subr.mxu0 0.0
    %912 = vmatpush1.msra.mxu0 0.0
    %913 = vmatprep.subr.mxu0 0.0
    %914 = vmatpush1.msra.mxu0 0.0
    %915 = vmatprep.subr.mxu0 0.0
    %916 = vmatpush1.msra.mxu0 0.0
    %917 = vmatprep.subr.mxu0 0.0
    %918 = vmatpush1.msra.mxu0 0.0
    %919 = vmatprep.subr.mxu0 0.0
    %920 = vmatpush1.msra.mxu0 0.0
    %921 = vmatprep.subr.mxu0 0.0
    %922 = vmatpush1.msra.mxu0 0.0
    %923 = vmatprep.subr.mxu0 0.0
    %924 = vmatpush1.msra.mxu0 0.0
    %925 = vmatprep.subr.mxu0 0.0
    %926 = vmatpush1.msra.mxu0 0.0
    %927 = vmatprep.subr.mxu0 0.0
    %928 = vmatpush1.msra.mxu0 0.0
    %929 = vmatprep.mubr.f32.mxu0 0.0
    %930 = vmatmul.mubr.f32.gmra.mrb[0].mxu0 %v854
    %v931 = vpop.f32.mrb[0].mxu0
    %v932 = vadd.f32 0.0, %v931
    %v933 = vpop.f32.mrb[0].mxu0
    %934 = vmatprep.mubr.f32.mxu0 0.0
    %935 = vmatmul.mubr.f32.gmra.mrb[0].mxu0 %v857
    %v936 = vpop.f32.mrb[0].mxu0
    %v937 = vadd.f32 0.0, %v936
    %v938 = vpop.f32.mrb[0].mxu0
    %939 = vmatprep.mubr.f32.mxu0 0.0
    %940 = vmatmul.mubr.f32.gmra.mrb[0].mxu0 %v860
    %v941 = vpop.f32.mrb[0].mxu0
    %v942 = vadd.f32 0.0, %v941
    %v943 = vpop.f32.mrb[0].mxu0
    %944 = vmatprep.mubr.f32.mxu0 0.0
    %945 = vmatmul.mubr.f32.gmra.mrb[0].mxu0 %v863
    %v946 = vpop.f32.mrb[0].mxu0
    %v947 = vadd.f32 0.0, %v946
    %v948 = vpop.f32.mrb[0].mxu0
    %949 = vdwg.mxu0
    %v950 = vadd.f32 %v746, %v932
    %v951 = vadd.f32 %v747, %v937
    %v952 = vadd.f32 %v748, %v942
    %v953 = vadd.f32 %v749, %v947
    %s954 = scalar_lea.vmem %s2, 128
    %v955 = vld [vmem:[%s954] sm:$0xff]
    %v956 = vld [vmem:[%s954 + $0x8] sm:$0xff]
    %v957 = vld [vmem:[%s954 + $0x10] sm:$0xff]
    %v958 = vld [vmem:[%s954 + $0x18] sm:$0xff]
    %959 = vmatprep.subr.mxu0 0.0
    %960 = vmatpush1.msra.mxu0 %v955
    %961 = vmatprep.subr.mxu0 0.0
    %962 = vmatpush1.msra.mxu0 %v956
    %963 = vmatprep.subr.mxu0 0.0
    %964 = vmatpush1.msra.mxu0 %v957
    %965 = vmatprep.subr.mxu0 0.0
    %966 = vmatpush1.msra.mxu0 %v958
    %967 = vmatprep.subr.mxu0 0.0
    %968 = vmatpush1.msra.mxu0 0.0
    %969 = vmatprep.subr.mxu0 0.0
    %970 = vmatpush1.msra.mxu0 0.0
    %971 = vmatprep.subr.mxu0 0.0
    %972 = vmatpush1.msra.mxu0 0.0
    %973 = vmatprep.subr.mxu0 0.0
    %974 = vmatpush1.msra.mxu0 0.0
    %975 = vmatprep.subr.mxu0 0.0
    %976 = vmatpush1.msra.mxu0 0.0
    %977 = vmatprep.subr.mxu0 0.0
    %978 = vmatpush1.msra.mxu0 0.0
    %979 = vmatprep.subr.mxu0 0.0
    %980 = vmatpush1.msra.mxu0 0.0
    %981 = vmatprep.subr.mxu0 0.0
    %982 = vmatpush1.msra.mxu0 0.0
    %983 = vmatprep.subr.mxu0 0.0
    %984 = vmatpush1.msra.mxu0 0.0
    %985 = vmatprep.subr.mxu0 0.0
    %986 = vmatpush1.msra.mxu0 0.0
    %987 = vmatprep.subr.mxu0 0.0
    %988 = vmatpush1.msra.mxu0 0.0
    %989 = vmatprep.subr.mxu0 0.0
    %990 = vmatpush1.msra.mxu0 0.0
    %991 = vmatprep.subr.mxu0 0.0
    %992 = vmatpush1.msra.mxu0 0.0
    %993 = vmatprep.subr.mxu0 0.0
    %994 = vmatpush1.msra.mxu0 0.0
    %995 = vmatprep.subr.mxu0 0.0
    %996 = vmatpush1.msra.mxu0 0.0
    %997 = vmatprep.subr.mxu0 0.0
    %998 = vmatpush1.msra.mxu0 0.0
    %999 = vmatprep.subr.mxu0 0.0
    %1000 = vmatpush1.msra.mxu0 0.0
    %1001 = vmatprep.subr.mxu0 0.0
    %1002 = vmatpush1.msra.mxu0 0.0
    %1003 = vmatprep.subr.mxu0 0.0
    %1004 = vmatpush1.msra.mxu0 0.0
    %1005 = vmatprep.subr.mxu0 0.0
    %1006 = vmatpush1.msra.mxu0 0.0
    %1007 = vmatprep.subr.mxu0 0.0
    %1008 = vmatpush1.msra.mxu0 0.0
    %1009 = vmatprep.subr.mxu0 0.0
    %1010 = vmatpush1.msra.mxu0 0.0
    %1011 = vmatprep.subr.mxu0 0.0
    %1012 = vmatpush1.msra.mxu0 0.0
    %1013 = vmatprep.subr.mxu0 0.0
    %1014 = vmatpush1.msra.mxu0 0.0
    %1015 = vmatprep.subr.mxu0 0.0
    %1016 = vmatpush1.msra.mxu0 0.0
    %1017 = vmatprep.subr.mxu0 0.0
    %1018 = vmatpush1.msra.mxu0 0.0
    %1019 = vmatprep.subr.mxu0 0.0
    %1020 = vmatpush1.msra.mxu0 0.0
    %1021 = vmatprep.subr.mxu0 0.0
    %1022 = vmatpush1.msra.mxu0 0.0
    %1023 = vmatprep.mubr.f32.mxu0 0.0
    %1024 = vmatmul.mubr.f32.gmra.mrb[0].mxu0 %v854
    %v1025 = vpop.f32.mrb[0].mxu0
    %v1026 = vadd.f32 0.0, %v1025
    %v1027 = vpop.f32.mrb[0].mxu0
    %1028 = vmatprep.mubr.f32.mxu0 0.0
    %1029 = vmatmul.mubr.f32.gmra.mrb[0].mxu0 %v857
    %v1030 = vpop.f32.mrb[0].mxu0
    %v1031 = vadd.f32 0.0, %v1030
    %v1032 = vpop.f32.mrb[0].mxu0
    %1033 = vmatprep.mubr.f32.mxu0 0.0
    %1034 = vmatmul.mubr.f32.gmra.mrb[0].mxu0 %v860
    %v1035 = vpop.f32.mrb[0].mxu0
    %v1036 = vadd.f32 0.0, %v1035
    %v1037 = vpop.f32.mrb[0].mxu0
    %1038 = vmatprep.mubr.f32.mxu0 0.0
    %1039 = vmatmul.mubr.f32.gmra.mrb[0].mxu0 %v863
    %v1040 = vpop.f32.mrb[0].mxu0
    %v1041 = vadd.f32 0.0, %v1040
    %v1042 = vpop.f32.mrb[0].mxu0
    %1043 = vdwg.mxu0
    %v1044 = vadd.f32 %v840, %v1026
    %v1045 = vadd.f32 %v841, %v1031
    %v1046 = vadd.f32 %v842, %v1036
    %v1047 = vadd.f32 %v843, %v1041
    %v1048 = vmax.f32 %v950, %v1044
    %v1049 = vmax.f32 %v951, %v1045
    %v1050 = vmax.f32 %v952, %v1046
    %v1051 = vmax.f32 %v953, %v1047
    %v1052 = vld [vmem:[%s3] sm:$0x1]
    %v1054 = vlaneseq
    %v1055 = vshrl.u32 %v1054, 7
    %v1056 = vsub.s32 0, %v1055
    %v1057 = vrot.slane %v1052, %v1056
    %v1059 = vadd.f32 %v1048, %v1057
    %v1060 = vadd.f32 %v1049, %v1057
    %v1061 = vadd.f32 %v1050, %v1057
    %v1062 = vadd.f32 %v1051, %v1057
    %v1063 = vmax.f32 %v1059, 0.0
    %v1064 = vmax.f32 %v1060, 0.0
    %v1065 = vmax.f32 %v1061, 0.0
    %v1066 = vmax.f32 %v1062, 0.0
    %vm1067 = vcmask 1031168
    %1068 = vst.msk [vmem:[#allocation2] sm:$0xff] %vm1067, %v1063
    %1069 = vst.msk [vmem:[#allocation2 + $0x8] sm:$0xff] %vm1067, %v1064
    %1070 = vst.msk [vmem:[#allocation2 + $0x10] sm:$0xff] %vm1067, %v1065
    %vm1071 = vcmask 1027072
    %1072 = vst.msk [vmem:[#allocation2 + $0x18] sm:$0xf] %vm1071, %v1066
    %v1073 = vld [vmem:[#allocation2] ss:$2 sm:$0xff]
    %s1074 = scalar_lea.vmem [#allocation2], 16
    %v1075 = vld [vmem:[%s1074] ss:$2 sm:$0x3f]
    %s1076 = scalar_lea.vmem [#allocation2], 1
    %v1077 = vld [vmem:[%s1076] ss:$2 sm:$0xff]
    %s1078 = scalar_lea.vmem [#allocation2], 17
    %v1079 = vld [vmem:[%s1078] ss:$2 sm:$0x3f]
    %v1080 = vmax.f32 %v1073, %v1077
    %v1081 = vmax.f32 %v1075, %v1079
    %1082 = vst.msk [vmem:[#allocation3] sm:$0xff] %vm1067, %v1080
    %vm1083 = vcmask 1029120
    %1084 = vst.msk [vmem:[#allocation3 + $0x8] sm:$0x3f] %vm1083, %v1081
    %v1085 = vld [vmem:[#allocation3] sm:$0xff]
    %v1086 = vld [vmem:[#allocation3 + $0x8] sm:$0x3]
    %v1087 = vld [vmem:[%s4] sm:$0xff]
    %v1088 = vld [vmem:[%s4 + $0x8] sm:$0xff]
    %v1089 = vld [vmem:[%s4 + $0x10] sm:$0xff]
    %v1090 = vld [vmem:[%s4 + $0x18] sm:$0xff]
    %v1091 = vld [vmem:[%s4 + $0x20] sm:$0xff]
    %v1092 = vld [vmem:[%s4 + $0x28] sm:$0xff]
    %v1093 = vld [vmem:[%s4 + $0x30] sm:$0xff]
    %v1094 = vld [vmem:[%s4 + $0x38] sm:$0xff]
    %v1095 = vld [vmem:[%s4 + $0x40] sm:$0xff]
    %v1096 = vld [vmem:[%s4 + $0x48] sm:$0xff]
    %v1097 = vld [vmem:[%s4 + $0x50] sm:$0xff]
    %v1098 = vld [vmem:[%s4 + $0x58] sm:$0xff]
    %v1099 = vld [vmem:[%s4 + $0x60] sm:$0xff]
    %v1100 = vld [vmem:[%s4 + $0x68] sm:$0xff]
    %v1101 = vld [vmem:[%s4 + $0x70] sm:$0xff]
    %v1102 = vld [vmem:[%s4 + $0x78] sm:$0x3f]
    %v1103 = vld [vmem:[%s5] sm:$0xff]
    %v1104 = vld [vmem:[%s5 + $0x8] sm:$0xff]
    %v1105 = vld [vmem:[%s5 + $0x10] sm:$0xff]
    %v1106 = vld [vmem:[%s5 + $0x18] sm:$0xff]
    %v1107 = vld [vmem:[%s5 + $0x20] sm:$0xff]
    %v1108 = vld [vmem:[%s5 + $0x28] sm:$0xff]
    %v1109 = vld [vmem:[%s5 + $0x30] sm:$0xff]
    %v1110 = vld [vmem:[%s5 + $0x38] sm:$0xff]
    %v1111 = vld [vmem:[%s5 + $0x40] sm:$0xff]
    %v1112 = vld [vmem:[%s5 + $0x48] sm:$0xff]
    %v1113 = vld [vmem:[%s5 + $0x50] sm:$0xff]
    %v1114 = vld [vmem:[%s5 + $0x58] sm:$0xff]
    %v1115 = vld [vmem:[%s5 + $0x60] sm:$0xff]
    %v1116 = vld [vmem:[%s5 + $0x68] sm:$0xff]
    %v1117 = vld [vmem:[%s5 + $0x70] sm:$0xff]
    %v1118 = vld [vmem:[%s5 + $0x78] sm:$0x3f]
    %v1119 = vld [vmem:[#allocation3 + $0x1] sm:$0xff]
    %v1120 = vld [vmem:[#allocation3 + $0x9] sm:$0x3]
    %s1121 = scalar_lea.vmem %s4, 128
    %v1122 = vld [vmem:[%s1121] sm:$0xff]
    %v1123 = vld [vmem:[%s1121 + $0x8] sm:$0xff]
    %v1124 = vld [vmem:[%s1121 + $0x10] sm:$0xff]
    %v1125 = vld [vmem:[%s1121 + $0x18] sm:$0xff]
    %v1126 = vld [vmem:[%s1121 + $0x20] sm:$0xff]
    %v1127 = vld [vmem:[%s1121 + $0x28] sm:$0xff]
    %v1128 = vld [vmem:[%s1121 + $0x30] sm:$0xff]
    %v1129 = vld [vmem:[%s1121 + $0x38] sm:$0xff]
    %v1130 = vld [vmem:[%s1121 + $0x40] sm:$0xff]
    %v1131 = vld [vmem:[%s1121 + $0x48] sm:$0xff]
    %v1132 = vld [vmem:[%s1121 + $0x50] sm:$0xff]
    %v1133 = vld [vmem:[%s1121 + $0x58] sm:$0xff]
    %v1134 = vld [vmem:[%s1121 + $0x60] sm:$0xff]
    %v1135 = vld [vmem:[%s1121 + $0x68] sm:$0xff]
    %v1136 = vld [vmem:[%s1121 + $0x70] sm:$0xff]
    %v1137 = vld [vmem:[%s1121 + $0x78] sm:$0x3f]
    %v1139 = vsel %vm1067, %v1119, 0
    %v1142 = vsel %vm1067, %v1120, 0
    %vm1144 = vcmask 1045504
    %v1146 = vsel %vm1144, %v1137, 0
    %1148 = vmatprep.subr.mxu0 0.0
    %1149 = vmatpush1.msra.mxu0 %v1122
    %1150 = vmatprep.subr.mxu0 0.0
    %1151 = vmatpush1.msra.mxu0 %v1123
    %1152 = vmatprep.subr.mxu0 0.0
    %1153 = vmatpush1.msra.mxu0 %v1124
    %1154 = vmatprep.subr.mxu0 0.0
    %1155 = vmatpush1.msra.mxu0 %v1125
    %1156 = vmatprep.subr.mxu0 0.0
    %1157 = vmatpush1.msra.mxu0 %v1126
    %1158 = vmatprep.subr.mxu0 0.0
    %1159 = vmatpush1.msra.mxu0 %v1127
    %1160 = vmatprep.subr.mxu0 0.0
    %1161 = vmatpush1.msra.mxu0 %v1128
    %1162 = vmatprep.subr.mxu0 0.0
    %1163 = vmatpush1.msra.mxu0 %v1129
    %1164 = vmatprep.subr.mxu0 0.0
    %1165 = vmatpush1.msra.mxu0 %v1130
    %1166 = vmatprep.subr.mxu0 0.0
    %1167 = vmatpush1.msra.mxu0 %v1131
    %1168 = vmatprep.subr.mxu0 0.0
    %1169 = vmatpush1.msra.mxu0 %v1132
    %1170 = vmatprep.subr.mxu0 0.0
    %1171 = vmatpush1.msra.mxu0 %v1133
    %1172 = vmatprep.subr.mxu0 0.0
    %1173 = vmatpush1.msra.mxu0 %v1134
    %1174 = vmatprep.subr.mxu0 0.0
    %1175 = vmatpush1.msra.mxu0 %v1135
    %1176 = vmatprep.subr.mxu0 0.0
    %1177 = vmatpush1.msra.mxu0 %v1136
    %1178 = vmatprep.subr.mxu0 0.0
    %1179 = vmatpush1.msra.mxu0 %v1146
    %1180 = vmatprep.subr.mxu0 0.0
    %1181 = vmatpush1.msra.mxu0 0.0
    %1182 = vmatprep.subr.mxu0 0.0
    %1183 = vmatpush1.msra.mxu0 0.0
    %1184 = vmatprep.subr.mxu0 0.0
    %1185 = vmatpush1.msra.mxu0 0.0
    %1186 = vmatprep.subr.mxu0 0.0
    %1187 = vmatpush1.msra.mxu0 0.0
    %1188 = vmatprep.subr.mxu0 0.0
    %1189 = vmatpush1.msra.mxu0 0.0
    %1190 = vmatprep.subr.mxu0 0.0
    %1191 = vmatpush1.msra.mxu0 0.0
    %1192 = vmatprep.subr.mxu0 0.0
    %1193 = vmatpush1.msra.mxu0 0.0
    %1194 = vmatprep.subr.mxu0 0.0
    %1195 = vmatpush1.msra.mxu0 0.0
    %1196 = vmatprep.subr.mxu0 0.0
    %1197 = vmatpush1.msra.mxu0 0.0
    %1198 = vmatprep.subr.mxu0 0.0
    %1199 = vmatpush1.msra.mxu0 0.0
    %1200 = vmatprep.subr.mxu0 0.0
    %1201 = vmatpush1.msra.mxu0 0.0
    %1202 = vmatprep.subr.mxu0 0.0
    %1203 = vmatpush1.msra.mxu0 0.0
    %1204 = vmatprep.subr.mxu0 0.0
    %1205 = vmatpush1.msra.mxu0 0.0
    %1206 = vmatprep.subr.mxu0 0.0
    %1207 = vmatpush1.msra.mxu0 0.0
    %1208 = vmatprep.subr.mxu0 0.0
    %1209 = vmatpush1.msra.mxu0 0.0
    %1210 = vmatprep.subr.mxu0 0.0
    %1211 = vmatpush1.msra.mxu0 0.0
    %1212 = vmatprep.mubr.f32.mxu0 0.0
    %1213 = vmatmul.mubr.f32.gmra.mrb[0].mxu0 %v1139
    %v1214 = vpop.f32.mrb[0].mxu0
    %v1215 = vadd.f32 0.0, %v1214
    %v1216 = vpop.f32.mrb[0].mxu0
    %1217 = vmatprep.mubr.f32.mxu0 0.0
    %1218 = vmatmul.mubr.f32.gmra.mrb[0].mxu0 %v1142
    %v1219 = vpop.f32.mrb[0].mxu0
    %v1220 = vadd.f32 0.0, %v1219
    %v1221 = vpop.f32.mrb[0].mxu0
    %1222 = vdwg.mxu0
    %v1224 = vsel %vm1067, %v1085, 0
    %v1227 = vsel %vm1067, %v1086, 0
    %v1230 = vsel %vm1144, %v1102, 0
    %1232 = vmatprep.subr.mxu0 0.0
    %1233 = vmatpush1.msra.mxu0 %v1087
    %1234 = vmatprep.subr.mxu0 0.0
    %1235 = vmatpush1.msra.mxu0 %v1088
    %1236 = vmatprep.subr.mxu0 0.0
    %1237 = vmatpush1.msra.mxu0 %v1089
    %1238 = vmatprep.subr.mxu0 0.0
    %1239 = vmatpush1.msra.mxu0 %v1090
    %1240 = vmatprep.subr.mxu0 0.0
    %1241 = vmatpush1.msra.mxu0 %v1091
    %1242 = vmatprep.subr.mxu0 0.0
    %1243 = vmatpush1.msra.mxu0 %v1092
    %1244 = vmatprep.subr.mxu0 0.0
    %1245 = vmatpush1.msra.mxu0 %v1093
    %1246 = vmatprep.subr.mxu0 0.0
    %1247 = vmatpush1.msra.mxu0 %v1094
    %1248 = vmatprep.subr.mxu0 0.0
    %1249 = vmatpush1.msra.mxu0 %v1095
    %1250 = vmatprep.subr.mxu0 0.0
    %1251 = vmatpush1.msra.mxu0 %v1096
    %1252 = vmatprep.subr.mxu0 0.0
    %1253 = vmatpush1.msra.mxu0 %v1097
    %1254 = vmatprep.subr.mxu0 0.0
    %1255 = vmatpush1.msra.mxu0 %v1098
    %1256 = vmatprep.subr.mxu0 0.0
    %1257 = vmatpush1.msra.mxu0 %v1099
    %1258 = vmatprep.subr.mxu0 0.0
    %1259 = vmatpush1.msra.mxu0 %v1100
    %1260 = vmatprep.subr.mxu0 0.0
    %1261 = vmatpush1.msra.mxu0 %v1101
    %1262 = vmatprep.subr.mxu0 0.0
    %1263 = vmatpush1.msra.mxu0 %v1230
    %1264 = vmatprep.subr.mxu0 0.0
    %1265 = vmatpush1.msra.mxu0 0.0
    %1266 = vmatprep.subr.mxu0 0.0
    %1267 = vmatpush1.msra.mxu0 0.0
    %1268 = vmatprep.subr.mxu0 0.0
    %1269 = vmatpush1.msra.mxu0 0.0
    %1270 = vmatprep.subr.mxu0 0.0
    %1271 = vmatpush1.msra.mxu0 0.0
    %1272 = vmatprep.subr.mxu0 0.0
    %1273 = vmatpush1.msra.mxu0 0.0
    %1274 = vmatprep.subr.mxu0 0.0
    %1275 = vmatpush1.msra.mxu0 0.0
    %1276 = vmatprep.subr.mxu0 0.0
    %1277 = vmatpush1.msra.mxu0 0.0
    %1278 = vmatprep.subr.mxu0 0.0
    %1279 = vmatpush1.msra.mxu0 0.0
    %1280 = vmatprep.subr.mxu0 0.0
    %1281 = vmatpush1.msra.mxu0 0.0
    %1282 = vmatprep.subr.mxu0 0.0
    %1283 = vmatpush1.msra.mxu0 0.0
    %1284 = vmatprep.subr.mxu0 0.0
    %1285 = vmatpush1.msra.mxu0 0.0
    %1286 = vmatprep.subr.mxu0 0.0
    %1287 = vmatpush1.msra.mxu0 0.0
    %1288 = vmatprep.subr.mxu0 0.0
    %1289 = vmatpush1.msra.mxu0 0.0
    %1290 = vmatprep.subr.mxu0 0.0
    %1291 = vmatpush1.msra.mxu0 0.0
    %1292 = vmatprep.subr.mxu0 0.0
    %1293 = vmatpush1.msra.mxu0 0.0
    %1294 = vmatprep.subr.mxu0 0.0
    %1295 = vmatpush1.msra.mxu0 0.0
    %1296 = vmatprep.mubr.f32.mxu0 0.0
    %1297 = vmatmul.mubr.f32.gmra.mrb[0].mxu0 %v1224
    %v1298 = vpop.f32.mrb[0].mxu0
    %v1299 = vadd.f32 %v1215, %v1298
    %v1300 = vpop.f32.mrb[0].mxu0
    %1301 = vmatprep.mubr.f32.mxu0 0.0
    %1302 = vmatmul.mubr.f32.gmra.mrb[0].mxu0 %v1227
    %v1303 = vpop.f32.mrb[0].mxu0
    %v1304 = vadd.f32 %v1220, %v1303
    %v1305 = vpop.f32.mrb[0].mxu0
    %1306 = vdwg.mxu0
    %s1307 = scalar_lea.vmem %s5, 128
    %v1308 = vld [vmem:[%s1307] sm:$0xff]
    %v1309 = vld [vmem:[%s1307 + $0x8] sm:$0xff]
    %v1310 = vld [vmem:[%s1307 + $0x10] sm:$0xff]
    %v1311 = vld [vmem:[%s1307 + $0x18] sm:$0xff]
    %v1312 = vld [vmem:[%s1307 + $0x20] sm:$0xff]
    %v1313 = vld [vmem:[%s1307 + $0x28] sm:$0xff]
    %v1314 = vld [vmem:[%s1307 + $0x30] sm:$0xff]
    %v1315 = vld [vmem:[%s1307 + $0x38] sm:$0xff]
    %v1316 = vld [vmem:[%s1307 + $0x40] sm:$0xff]
    %v1317 = vld [vmem:[%s1307 + $0x48] sm:$0xff]
    %v1318 = vld [vmem:[%s1307 + $0x50] sm:$0xff]
    %v1319 = vld [vmem:[%s1307 + $0x58] sm:$0xff]
    %v1320 = vld [vmem:[%s1307 + $0x60] sm:$0xff]
    %v1321 = vld [vmem:[%s1307 + $0x68] sm:$0xff]
    %v1322 = vld [vmem:[%s1307 + $0x70] sm:$0xff]
    %v1323 = vld [vmem:[%s1307 + $0x78] sm:$0x3f]
    %v1325 = vsel %vm1144, %v1323, 0
    %1327 = vmatprep.subr.mxu0 0.0
    %1328 = vmatpush1.msra.mxu0 %v1308
    %1329 = vmatprep.subr.mxu0 0.0
    %1330 = vmatpush1.msra.mxu0 %v1309
    %1331 = vmatprep.subr.mxu0 0.0
    %1332 = vmatpush1.msra.mxu0 %v1310
    %1333 = vmatprep.subr.mxu0 0.0
    %1334 = vmatpush1.msra.mxu0 %v1311
    %1335 = vmatprep.subr.mxu0 0.0
    %1336 = vmatpush1.msra.mxu0 %v1312
    %1337 = vmatprep.subr.mxu0 0.0
    %1338 = vmatpush1.msra.mxu0 %v1313
    %1339 = vmatprep.subr.mxu0 0.0
    %1340 = vmatpush1.msra.mxu0 %v1314
    %1341 = vmatprep.subr.mxu0 0.0
    %1342 = vmatpush1.msra.mxu0 %v1315
    %1343 = vmatprep.subr.mxu0 0.0
    %1344 = vmatpush1.msra.mxu0 %v1316
    %1345 = vmatprep.subr.mxu0 0.0
    %1346 = vmatpush1.msra.mxu0 %v1317
    %1347 = vmatprep.subr.mxu0 0.0
    %1348 = vmatpush1.msra.mxu0 %v1318
    %1349 = vmatprep.subr.mxu0 0.0
    %1350 = vmatpush1.msra.mxu0 %v1319
    %1351 = vmatprep.subr.mxu0 0.0
    %1352 = vmatpush1.msra.mxu0 %v1320
    %1353 = vmatprep.subr.mxu0 0.0
    %1354 = vmatpush1.msra.mxu0 %v1321
    %1355 = vmatprep.subr.mxu0 0.0
    %1356 = vmatpush1.msra.mxu0 %v1322
    %1357 = vmatprep.subr.mxu0 0.0
    %1358 = vmatpush1.msra.mxu0 %v1325
    %1359 = vmatprep.subr.mxu0 0.0
    %1360 = vmatpush1.msra.mxu0 0.0
    %1361 = vmatprep.subr.mxu0 0.0
    %1362 = vmatpush1.msra.mxu0 0.0
    %1363 = vmatprep.subr.mxu0 0.0
    %1364 = vmatpush1.msra.mxu0 0.0
    %1365 = vmatprep.subr.mxu0 0.0
    %1366 = vmatpush1.msra.mxu0 0.0
    %1367 = vmatprep.subr.mxu0 0.0
    %1368 = vmatpush1.msra.mxu0 0.0
    %1369 = vmatprep.subr.mxu0 0.0
    %1370 = vmatpush1.msra.mxu0 0.0
    %1371 = vmatprep.subr.mxu0 0.0
    %1372 = vmatpush1.msra.mxu0 0.0
    %1373 = vmatprep.subr.mxu0 0.0
    %1374 = vmatpush1.msra.mxu0 0.0
    %1375 = vmatprep.subr.mxu0 0.0
    %1376 = vmatpush1.msra.mxu0 0.0
    %1377 = vmatprep.subr.mxu0 0.0
    %1378 = vmatpush1.msra.mxu0 0.0
    %1379 = vmatprep.subr.mxu0 0.0
    %1380 = vmatpush1.msra.mxu0 0.0
    %1381 = vmatprep.subr.mxu0 0.0
    %1382 = vmatpush1.msra.mxu0 0.0
    %1383 = vmatprep.subr.mxu0 0.0
    %1384 = vmatpush1.msra.mxu0 0.0
    %1385 = vmatprep.subr.mxu0 0.0
    %1386 = vmatpush1.msra.mxu0 0.0
    %1387 = vmatprep.subr.mxu0 0.0
    %1388 = vmatpush1.msra.mxu0 0.0
    %1389 = vmatprep.subr.mxu0 0.0
    %1390 = vmatpush1.msra.mxu0 0.0
    %1391 = vmatprep.mubr.f32.mxu0 0.0
    %1392 = vmatmul.mubr.f32.gmra.mrb[0].mxu0 %v1139
    %v1393 = vpop.f32.mrb[0].mxu0
    %v1394 = vadd.f32 0.0, %v1393
    %v1395 = vpop.f32.mrb[0].mxu0
    %1396 = vmatprep.mubr.f32.mxu0 0.0
    %1397 = vmatmul.mubr.f32.gmra.mrb[0].mxu0 %v1142
    %v1398 = vpop.f32.mrb[0].mxu0
    %v1399 = vadd.f32 0.0, %v1398
    %v1400 = vpop.f32.mrb[0].mxu0
    %1401 = vdwg.mxu0
    %v1403 = vsel %vm1144, %v1118, 0
    %1405 = vmatprep.subr.mxu0 0.0
    %1406 = vmatpush1.msra.mxu0 %v1103
    %1407 = vmatprep.subr.mxu0 0.0
    %1408 = vmatpush1.msra.mxu0 %v1104
    %1409 = vmatprep.subr.mxu0 0.0
    %1410 = vmatpush1.msra.mxu0 %v1105
    %1411 = vmatprep.subr.mxu0 0.0
    %1412 = vmatpush1.msra.mxu0 %v1106
    %1413 = vmatprep.subr.mxu0 0.0
    %1414 = vmatpush1.msra.mxu0 %v1107
    %1415 = vmatprep.subr.mxu0 0.0
    %1416 = vmatpush1.msra.mxu0 %v1108
    %1417 = vmatprep.subr.mxu0 0.0
    %1418 = vmatpush1.msra.mxu0 %v1109
    %1419 = vmatprep.subr.mxu0 0.0
    %1420 = vmatpush1.msra.mxu0 %v1110
    %1421 = vmatprep.subr.mxu0 0.0
    %1422 = vmatpush1.msra.mxu0 %v1111
    %1423 = vmatprep.subr.mxu0 0.0
    %1424 = vmatpush1.msra.mxu0 %v1112
    %1425 = vmatprep.subr.mxu0 0.0
    %1426 = vmatpush1.msra.mxu0 %v1113
    %1427 = vmatprep.subr.mxu0 0.0
    %1428 = vmatpush1.msra.mxu0 %v1114
    %1429 = vmatprep.subr.mxu0 0.0
    %1430 = vmatpush1.msra.mxu0 %v1115
    %1431 = vmatprep.subr.mxu0 0.0
    %1432 = vmatpush1.msra.mxu0 %v1116
    %1433 = vmatprep.subr.mxu0 0.0
    %1434 = vmatpush1.msra.mxu0 %v1117
    %1435 = vmatprep.subr.mxu0 0.0
    %1436 = vmatpush1.msra.mxu0 %v1403
    %1437 = vmatprep.subr.mxu0 0.0
    %1438 = vmatpush1.msra.mxu0 0.0
    %1439 = vmatprep.subr.mxu0 0.0
    %1440 = vmatpush1.msra.mxu0 0.0
    %1441 = vmatprep.subr.mxu0 0.0
    %1442 = vmatpush1.msra.mxu0 0.0
    %1443 = vmatprep.subr.mxu0 0.0
    %1444 = vmatpush1.msra.mxu0 0.0
    %1445 = vmatprep.subr.mxu0 0.0
    %1446 = vmatpush1.msra.mxu0 0.0
    %1447 = vmatprep.subr.mxu0 0.0
    %1448 = vmatpush1.msra.mxu0 0.0
    %1449 = vmatprep.subr.mxu0 0.0
    %1450 = vmatpush1.msra.mxu0 0.0
    %1451 = vmatprep.subr.mxu0 0.0
    %1452 = vmatpush1.msra.mxu0 0.0
    %1453 = vmatprep.subr.mxu0 0.0
    %1454 = vmatpush1.msra.mxu0 0.0
    %1455 = vmatprep.subr.mxu0 0.0
    %1456 = vmatpush1.msra.mxu0 0.0
    %1457 = vmatprep.subr.mxu0 0.0
    %1458 = vmatpush1.msra.mxu0 0.0
    %1459 = vmatprep.subr.mxu0 0.0
    %1460 = vmatpush1.msra.mxu0 0.0
    %1461 = vmatprep.subr.mxu0 0.0
    %1462 = vmatpush1.msra.mxu0 0.0
    %1463 = vmatprep.subr.mxu0 0.0
    %1464 = vmatpush1.msra.mxu0 0.0
    %1465 = vmatprep.subr.mxu0 0.0
    %1466 = vmatpush1.msra.mxu0 0.0
    %1467 = vmatprep.subr.mxu0 0.0
    %1468 = vmatpush1.msra.mxu0 0.0
    %1469 = vmatprep.mubr.f32.mxu0 0.0
    %1470 = vmatmul.mubr.f32.gmra.mrb[0].mxu0 %v1224
    %v1471 = vpop.f32.mrb[0].mxu0
    %v1472 = vadd.f32 %v1394, %v1471
    %v1473 = vpop.f32.mrb[0].mxu0
    %1474 = vmatprep.mubr.f32.mxu0 0.0
    %1475 = vmatmul.mubr.f32.gmra.mrb[0].mxu0 %v1227
    %v1476 = vpop.f32.mrb[0].mxu0
    %v1477 = vadd.f32 %v1399, %v1476
    %v1478 = vpop.f32.mrb[0].mxu0
    %1479 = vdwg.mxu0
    %v1480 = vld [vmem:[#allocation3 + $0x2] sm:$0xff]
    %v1481 = vld [vmem:[#allocation3 + $0xa] sm:$0x3]
    %s1482 = scalar_lea.vmem %s4, 256
    %v1483 = vld [vmem:[%s1482] sm:$0xff]
    %v1484 = vld [vmem:[%s1482 + $0x8] sm:$0xff]
    %v1485 = vld [vmem:[%s1482 + $0x10] sm:$0xff]
    %v1486 = vld [vmem:[%s1482 + $0x18] sm:$0xff]
    %v1487 = vld [vmem:[%s1482 + $0x20] sm:$0xff]
    %v1488 = vld [vmem:[%s1482 + $0x28] sm:$0xff]
    %v1489 = vld [vmem:[%s1482 + $0x30] sm:$0xff]
    %v1490 = vld [vmem:[%s1482 + $0x38] sm:$0xff]
    %v1491 = vld [vmem:[%s1482 + $0x40] sm:$0xff]
    %v1492 = vld [vmem:[%s1482 + $0x48] sm:$0xff]
    %v1493 = vld [vmem:[%s1482 + $0x50] sm:$0xff]
    %v1494 = vld [vmem:[%s1482 + $0x58] sm:$0xff]
    %v1495 = vld [vmem:[%s1482 + $0x60] sm:$0xff]
    %v1496 = vld [vmem:[%s1482 + $0x68] sm:$0xff]
    %v1497 = vld [vmem:[%s1482 + $0x70] sm:$0xff]
    %v1498 = vld [vmem:[%s1482 + $0x78] sm:$0x3f]
    %v1500 = vsel %vm1067, %v1480, 0
    %v1503 = vsel %vm1067, %v1481, 0
    %v1506 = vsel %vm1144, %v1498, 0
    %1508 = vmatprep.subr.mxu0 0.0
    %1509 = vmatpush1.msra.mxu0 %v1483
    %1510 = vmatprep.subr.mxu0 0.0
    %1511 = vmatpush1.msra.mxu0 %v1484
    %1512 = vmatprep.subr.mxu0 0.0
    %1513 = vmatpush1.msra.mxu0 %v1485
    %1514 = vmatprep.subr.mxu0 0.0
    %1515 = vmatpush1.msra.mxu0 %v1486
    %1516 = vmatprep.subr.mxu0 0.0
    %1517 = vmatpush1.msra.mxu0 %v1487
    %1518 = vmatprep.subr.mxu0 0.0
    %1519 = vmatpush1.msra.mxu0 %v1488
    %1520 = vmatprep.subr.mxu0 0.0
    %1521 = vmatpush1.msra.mxu0 %v1489
    %1522 = vmatprep.subr.mxu0 0.0
    %1523 = vmatpush1.msra.mxu0 %v1490
    %1524 = vmatprep.subr.mxu0 0.0
    %1525 = vmatpush1.msra.mxu0 %v1491
    %1526 = vmatprep.subr.mxu0 0.0
    %1527 = vmatpush1.msra.mxu0 %v1492
    %1528 = vmatprep.subr.mxu0 0.0
    %1529 = vmatpush1.msra.mxu0 %v1493
    %1530 = vmatprep.subr.mxu0 0.0
    %1531 = vmatpush1.msra.mxu0 %v1494
    %1532 = vmatprep.subr.mxu0 0.0
    %1533 = vmatpush1.msra.mxu0 %v1495
    %1534 = vmatprep.subr.mxu0 0.0
    %1535 = vmatpush1.msra.mxu0 %v1496
    %1536 = vmatprep.subr.mxu0 0.0
    %1537 = vmatpush1.msra.mxu0 %v1497
    %1538 = vmatprep.subr.mxu0 0.0
    %1539 = vmatpush1.msra.mxu0 %v1506
    %1540 = vmatprep.subr.mxu0 0.0
    %1541 = vmatpush1.msra.mxu0 0.0
    %1542 = vmatprep.subr.mxu0 0.0
    %1543 = vmatpush1.msra.mxu0 0.0
    %1544 = vmatprep.subr.mxu0 0.0
    %1545 = vmatpush1.msra.mxu0 0.0
    %1546 = vmatprep.subr.mxu0 0.0
    %1547 = vmatpush1.msra.mxu0 0.0
    %1548 = vmatprep.subr.mxu0 0.0
    %1549 = vmatpush1.msra.mxu0 0.0
    %1550 = vmatprep.subr.mxu0 0.0
    %1551 = vmatpush1.msra.mxu0 0.0
    %1552 = vmatprep.subr.mxu0 0.0
    %1553 = vmatpush1.msra.mxu0 0.0
    %1554 = vmatprep.subr.mxu0 0.0
    %1555 = vmatpush1.msra.mxu0 0.0
    %1556 = vmatprep.subr.mxu0 0.0
    %1557 = vmatpush1.msra.mxu0 0.0
    %1558 = vmatprep.subr.mxu0 0.0
    %1559 = vmatpush1.msra.mxu0 0.0
    %1560 = vmatprep.subr.mxu0 0.0
    %1561 = vmatpush1.msra.mxu0 0.0
    %1562 = vmatprep.subr.mxu0 0.0
    %1563 = vmatpush1.msra.mxu0 0.0
    %1564 = vmatprep.subr.mxu0 0.0
    %1565 = vmatpush1.msra.mxu0 0.0
    %1566 = vmatprep.subr.mxu0 0.0
    %1567 = vmatpush1.msra.mxu0 0.0
    %1568 = vmatprep.subr.mxu0 0.0
    %1569 = vmatpush1.msra.mxu0 0.0
    %1570 = vmatprep.subr.mxu0 0.0
    %1571 = vmatpush1.msra.mxu0 0.0
    %1572 = vmatprep.mubr.f32.mxu0 0.0
    %1573 = vmatmul.mubr.f32.gmra.mrb[0].mxu0 %v1500
    %v1574 = vpop.f32.mrb[0].mxu0
    %v1575 = vadd.f32 0.0, %v1574
    %v1576 = vpop.f32.mrb[0].mxu0
    %1577 = vmatprep.mubr.f32.mxu0 0.0
    %1578 = vmatmul.mubr.f32.gmra.mrb[0].mxu0 %v1503
    %v1579 = vpop.f32.mrb[0].mxu0
    %v1580 = vadd.f32 0.0, %v1579
    %v1581 = vpop.f32.mrb[0].mxu0
    %1582 = vdwg.mxu0
    %v1583 = vadd.f32 %v1299, %v1575
    %v1584 = vadd.f32 %v1304, %v1580
    %s1585 = scalar_lea.vmem %s5, 256
    %v1586 = vld [vmem:[%s1585] sm:$0xff]
    %v1587 = vld [vmem:[%s1585 + $0x8] sm:$0xff]
    %v1588 = vld [vmem:[%s1585 + $0x10] sm:$0xff]
    %v1589 = vld [vmem:[%s1585 + $0x18] sm:$0xff]
    %v1590 = vld [vmem:[%s1585 + $0x20] sm:$0xff]
    %v1591 = vld [vmem:[%s1585 + $0x28] sm:$0xff]
    %v1592 = vld [vmem:[%s1585 + $0x30] sm:$0xff]
    %v1593 = vld [vmem:[%s1585 + $0x38] sm:$0xff]
    %v1594 = vld [vmem:[%s1585 + $0x40] sm:$0xff]
    %v1595 = vld [vmem:[%s1585 + $0x48] sm:$0xff]
    %v1596 = vld [vmem:[%s1585 + $0x50] sm:$0xff]
    %v1597 = vld [vmem:[%s1585 + $0x58] sm:$0xff]
    %v1598 = vld [vmem:[%s1585 + $0x60] sm:$0xff]
    %v1599 = vld [vmem:[%s1585 + $0x68] sm:$0xff]
    %v1600 = vld [vmem:[%s1585 + $0x70] sm:$0xff]
    %v1601 = vld [vmem:[%s1585 + $0x78] sm:$0x3f]
    %v1603 = vsel %vm1144, %v1601, 0
    %1605 = vmatprep.subr.mxu0 0.0
    %1606 = vmatpush1.msra.mxu0 %v1586
    %1607 = vmatprep.subr.mxu0 0.0
    %1608 = vmatpush1.msra.mxu0 %v1587
    %1609 = vmatprep.subr.mxu0 0.0
    %1610 = vmatpush1.msra.mxu0 %v1588
    %1611 = vmatprep.subr.mxu0 0.0
    %1612 = vmatpush1.msra.mxu0 %v1589
    %1613 = vmatprep.subr.mxu0 0.0
    %1614 = vmatpush1.msra.mxu0 %v1590
    %1615 = vmatprep.subr.mxu0 0.0
    %1616 = vmatpush1.msra.mxu0 %v1591
    %1617 = vmatprep.subr.mxu0 0.0
    %1618 = vmatpush1.msra.mxu0 %v1592
    %1619 = vmatprep.subr.mxu0 0.0
    %1620 = vmatpush1.msra.mxu0 %v1593
    %1621 = vmatprep.subr.mxu0 0.0
    %1622 = vmatpush1.msra.mxu0 %v1594
    %1623 = vmatprep.subr.mxu0 0.0
    %1624 = vmatpush1.msra.mxu0 %v1595
    %1625 = vmatprep.subr.mxu0 0.0
    %1626 = vmatpush1.msra.mxu0 %v1596
    %1627 = vmatprep.subr.mxu0 0.0
    %1628 = vmatpush1.msra.mxu0 %v1597
    %1629 = vmatprep.subr.mxu0 0.0
    %1630 = vmatpush1.msra.mxu0 %v1598
    %1631 = vmatprep.subr.mxu0 0.0
    %1632 = vmatpush1.msra.mxu0 %v1599
    %1633 = vmatprep.subr.mxu0 0.0
    %1634 = vmatpush1.msra.mxu0 %v1600
    %1635 = vmatprep.subr.mxu0 0.0
    %1636 = vmatpush1.msra.mxu0 %v1603
    %1637 = vmatprep.subr.mxu0 0.0
    %1638 = vmatpush1.msra.mxu0 0.0
    %1639 = vmatprep.subr.mxu0 0.0
    %1640 = vmatpush1.msra.mxu0 0.0
    %1641 = vmatprep.subr.mxu0 0.0
    %1642 = vmatpush1.msra.mxu0 0.0
    %1643 = vmatprep.subr.mxu0 0.0
    %1644 = vmatpush1.msra.mxu0 0.0
    %1645 = vmatprep.subr.mxu0 0.0
    %1646 = vmatpush1.msra.mxu0 0.0
    %1647 = vmatprep.subr.mxu0 0.0
    %1648 = vmatpush1.msra.mxu0 0.0
    %1649 = vmatprep.subr.mxu0 0.0
    %1650 = vmatpush1.msra.mxu0 0.0
    %1651 = vmatprep.subr.mxu0 0.0
    %1652 = vmatpush1.msra.mxu0 0.0
    %1653 = vmatprep.subr.mxu0 0.0
    %1654 = vmatpush1.msra.mxu0 0.0
    %1655 = vmatprep.subr.mxu0 0.0
    %1656 = vmatpush1.msra.mxu0 0.0
    %1657 = vmatprep.subr.mxu0 0.0
    %1658 = vmatpush1.msra.mxu0 0.0
    %1659 = vmatprep.subr.mxu0 0.0
    %1660 = vmatpush1.msra.mxu0 0.0
    %1661 = vmatprep.subr.mxu0 0.0
    %1662 = vmatpush1.msra.mxu0 0.0
    %1663 = vmatprep.subr.mxu0 0.0
    %1664 = vmatpush1.msra.mxu0 0.0
    %1665 = vmatprep.subr.mxu0 0.0
    %1666 = vmatpush1.msra.mxu0 0.0
    %1667 = vmatprep.subr.mxu0 0.0
    %1668 = vmatpush1.msra.mxu0 0.0
    %1669 = vmatprep.mubr.f32.mxu0 0.0
    %1670 = vmatmul.mubr.f32.gmra.mrb[0].mxu0 %v1500
    %v1671 = vpop.f32.mrb[0].mxu0
    %v1672 = vadd.f32 0.0, %v1671
    %v1673 = vpop.f32.mrb[0].mxu0
    %1674 = vmatprep.mubr.f32.mxu0 0.0
    %1675 = vmatmul.mubr.f32.gmra.mrb[0].mxu0 %v1503
    %v1676 = vpop.f32.mrb[0].mxu0
    %v1677 = vadd.f32 0.0, %v1676
    %v1678 = vpop.f32.mrb[0].mxu0
    %1679 = vdwg.mxu0
    %v1680 = vadd.f32 %v1472, %v1672
    %v1681 = vadd.f32 %v1477, %v1677
    %v1682 = vld [vmem:[#allocation3 + $0x3] sm:$0xff]
    %v1683 = vld [vmem:[#allocation3 + $0xb] sm:$0x3]
    %s1684 = scalar_lea.vmem %s4, 384
    %v1685 = vld [vmem:[%s1684] sm:$0xff]
    %v1686 = vld [vmem:[%s1684 + $0x8] sm:$0xff]
    %v1687 = vld [vmem:[%s1684 + $0x10] sm:$0xff]
    %v1688 = vld [vmem:[%s1684 + $0x18] sm:$0xff]
    %v1689 = vld [vmem:[%s1684 + $0x20] sm:$0xff]
    %v1690 = vld [vmem:[%s1684 + $0x28] sm:$0xff]
    %v1691 = vld [vmem:[%s1684 + $0x30] sm:$0xff]
    %v1692 = vld [vmem:[%s1684 + $0x38] sm:$0xff]
    %v1693 = vld [vmem:[%s1684 + $0x40] sm:$0xff]
    %v1694 = vld [vmem:[%s1684 + $0x48] sm:$0xff]
    %v1695 = vld [vmem:[%s1684 + $0x50] sm:$0xff]
    %v1696 = vld [vmem:[%s1684 + $0x58] sm:$0xff]
    %v1697 = vld [vmem:[%s1684 + $0x60] sm:$0xff]
    %v1698 = vld [vmem:[%s1684 + $0x68] sm:$0xff]
    %v1699 = vld [vmem:[%s1684 + $0x70] sm:$0xff]
    %v1700 = vld [vmem:[%s1684 + $0x78] sm:$0x3f]
    %v1702 = vsel %vm1067, %v1682, 0
    %v1705 = vsel %vm1067, %v1683, 0
    %v1708 = vsel %vm1144, %v1700, 0
    %1710 = vmatprep.subr.mxu0 0.0
    %1711 = vmatpush1.msra.mxu0 %v1685
    %1712 = vmatprep.subr.mxu0 0.0
    %1713 = vmatpush1.msra.mxu0 %v1686
    %1714 = vmatprep.subr.mxu0 0.0
    %1715 = vmatpush1.msra.mxu0 %v1687
    %1716 = vmatprep.subr.mxu0 0.0
    %1717 = vmatpush1.msra.mxu0 %v1688
    %1718 = vmatprep.subr.mxu0 0.0
    %1719 = vmatpush1.msra.mxu0 %v1689
    %1720 = vmatprep.subr.mxu0 0.0
    %1721 = vmatpush1.msra.mxu0 %v1690
    %1722 = vmatprep.subr.mxu0 0.0
    %1723 = vmatpush1.msra.mxu0 %v1691
    %1724 = vmatprep.subr.mxu0 0.0
    %1725 = vmatpush1.msra.mxu0 %v1692
    %1726 = vmatprep.subr.mxu0 0.0
    %1727 = vmatpush1.msra.mxu0 %v1693
    %1728 = vmatprep.subr.mxu0 0.0
    %1729 = vmatpush1.msra.mxu0 %v1694
    %1730 = vmatprep.subr.mxu0 0.0
    %1731 = vmatpush1.msra.mxu0 %v1695
    %1732 = vmatprep.subr.mxu0 0.0
    %1733 = vmatpush1.msra.mxu0 %v1696
    %1734 = vmatprep.subr.mxu0 0.0
    %1735 = vmatpush1.msra.mxu0 %v1697
    %1736 = vmatprep.subr.mxu0 0.0
    %1737 = vmatpush1.msra.mxu0 %v1698
    %1738 = vmatprep.subr.mxu0 0.0
    %1739 = vmatpush1.msra.mxu0 %v1699
    %1740 = vmatprep.subr.mxu0 0.0
    %1741 = vmatpush1.msra.mxu0 %v1708
    %1742 = vmatprep.subr.mxu0 0.0
    %1743 = vmatpush1.msra.mxu0 0.0
    %1744 = vmatprep.subr.mxu0 0.0
    %1745 = vmatpush1.msra.mxu0 0.0
    %1746 = vmatprep.subr.mxu0 0.0
    %1747 = vmatpush1.msra.mxu0 0.0
    %1748 = vmatprep.subr.mxu0 0.0
    %1749 = vmatpush1.msra.mxu0 0.0
    %1750 = vmatprep.subr.mxu0 0.0
    %1751 = vmatpush1.msra.mxu0 0.0
    %1752 = vmatprep.subr.mxu0 0.0
    %1753 = vmatpush1.msra.mxu0 0.0
    %1754 = vmatprep.subr.mxu0 0.0
    %1755 = vmatpush1.msra.mxu0 0.0
    %1756 = vmatprep.subr.mxu0 0.0
    %1757 = vmatpush1.msra.mxu0 0.0
    %1758 = vmatprep.subr.mxu0 0.0
    %1759 = vmatpush1.msra.mxu0 0.0
    %1760 = vmatprep.subr.mxu0 0.0
    %1761 = vmatpush1.msra.mxu0 0.0
    %1762 = vmatprep.subr.mxu0 0.0
    %1763 = vmatpush1.msra.mxu0 0.0
    %1764 = vmatprep.subr.mxu0 0.0
    %1765 = vmatpush1.msra.mxu0 0.0
    %1766 = vmatprep.subr.mxu0 0.0
    %1767 = vmatpush1.msra.mxu0 0.0
    %1768 = vmatprep.subr.mxu0 0.0
    %1769 = vmatpush1.msra.mxu0 0.0
    %1770 = vmatprep.subr.mxu0 0.0
    %1771 = vmatpush1.msra.mxu0 0.0
    %1772 = vmatprep.subr.mxu0 0.0
    %1773 = vmatpush1.msra.mxu0 0.0
    %1774 = vmatprep.mubr.f32.mxu0 0.0
    %1775 = vmatmul.mubr.f32.gmra.mrb[0].mxu0 %v1702
    %v1776 = vpop.f32.mrb[0].mxu0
    %v1777 = vadd.f32 0.0, %v1776
    %v1778 = vpop.f32.mrb[0].mxu0
    %1779 = vmatprep.mubr.f32.mxu0 0.0
    %1780 = vmatmul.mubr.f32.gmra.mrb[0].mxu0 %v1705
    %v1781 = vpop.f32.mrb[0].mxu0
    %v1782 = vadd.f32 0.0, %v1781
    %v1783 = vpop.f32.mrb[0].mxu0
    %1784 = vdwg.mxu0
    %v1785 = vadd.f32 %v1583, %v1777
    %v1786 = vadd.f32 %v1584, %v1782
    %s1787 = scalar_lea.vmem %s5, 384
    %v1788 = vld [vmem:[%s1787] sm:$0xff]
    %v1789 = vld [vmem:[%s1787 + $0x8] sm:$0xff]
    %v1790 = vld [vmem:[%s1787 + $0x10] sm:$0xff]
    %v1791 = vld [vmem:[%s1787 + $0x18] sm:$0xff]
    %v1792 = vld [vmem:[%s1787 + $0x20] sm:$0xff]
    %v1793 = vld [vmem:[%s1787 + $0x28] sm:$0xff]
    %v1794 = vld [vmem:[%s1787 + $0x30] sm:$0xff]
    %v1795 = vld [vmem:[%s1787 + $0x38] sm:$0xff]
    %v1796 = vld [vmem:[%s1787 + $0x40] sm:$0xff]
    %v1797 = vld [vmem:[%s1787 + $0x48] sm:$0xff]
    %v1798 = vld [vmem:[%s1787 + $0x50] sm:$0xff]
    %v1799 = vld [vmem:[%s1787 + $0x58] sm:$0xff]
    %v1800 = vld [vmem:[%s1787 + $0x60] sm:$0xff]
    %v1801 = vld [vmem:[%s1787 + $0x68] sm:$0xff]
    %v1802 = vld [vmem:[%s1787 + $0x70] sm:$0xff]
    %v1803 = vld [vmem:[%s1787 + $0x78] sm:$0x3f]
    %v1805 = vsel %vm1144, %v1803, 0
    %1807 = vmatprep.subr.mxu0 0.0
    %1808 = vmatpush1.msra.mxu0 %v1788
    %1809 = vmatprep.subr.mxu0 0.0
    %1810 = vmatpush1.msra.mxu0 %v1789
    %1811 = vmatprep.subr.mxu0 0.0
    %1812 = vmatpush1.msra.mxu0 %v1790
    %1813 = vmatprep.subr.mxu0 0.0
    %1814 = vmatpush1.msra.mxu0 %v1791
    %1815 = vmatprep.subr.mxu0 0.0
    %1816 = vmatpush1.msra.mxu0 %v1792
    %1817 = vmatprep.subr.mxu0 0.0
    %1818 = vmatpush1.msra.mxu0 %v1793
    %1819 = vmatprep.subr.mxu0 0.0
    %1820 = vmatpush1.msra.mxu0 %v1794
    %1821 = vmatprep.subr.mxu0 0.0
    %1822 = vmatpush1.msra.mxu0 %v1795
    %1823 = vmatprep.subr.mxu0 0.0
    %1824 = vmatpush1.msra.mxu0 %v1796
    %1825 = vmatprep.subr.mxu0 0.0
    %1826 = vmatpush1.msra.mxu0 %v1797
    %1827 = vmatprep.subr.mxu0 0.0
    %1828 = vmatpush1.msra.mxu0 %v1798
    %1829 = vmatprep.subr.mxu0 0.0
    %1830 = vmatpush1.msra.mxu0 %v1799
    %1831 = vmatprep.subr.mxu0 0.0
    %1832 = vmatpush1.msra.mxu0 %v1800
    %1833 = vmatprep.subr.mxu0 0.0
    %1834 = vmatpush1.msra.mxu0 %v1801
    %1835 = vmatprep.subr.mxu0 0.0
    %1836 = vmatpush1.msra.mxu0 %v1802
    %1837 = vmatprep.subr.mxu0 0.0
    %1838 = vmatpush1.msra.mxu0 %v1805
    %1839 = vmatprep.subr.mxu0 0.0
    %1840 = vmatpush1.msra.mxu0 0.0
    %1841 = vmatprep.subr.mxu0 0.0
    %1842 = vmatpush1.msra.mxu0 0.0
    %1843 = vmatprep.subr.mxu0 0.0
    %1844 = vmatpush1.msra.mxu0 0.0
    %1845 = vmatprep.subr.mxu0 0.0
    %1846 = vmatpush1.msra.mxu0 0.0
    %1847 = vmatprep.subr.mxu0 0.0
    %1848 = vmatpush1.msra.mxu0 0.0
    %1849 = vmatprep.subr.mxu0 0.0
    %1850 = vmatpush1.msra.mxu0 0.0
    %1851 = vmatprep.subr.mxu0 0.0
    %1852 = vmatpush1.msra.mxu0 0.0
    %1853 = vmatprep.subr.mxu0 0.0
    %1854 = vmatpush1.msra.mxu0 0.0
    %1855 = vmatprep.subr.mxu0 0.0
    %1856 = vmatpush1.msra.mxu0 0.0
    %1857 = vmatprep.subr.mxu0 0.0
    %1858 = vmatpush1.msra.mxu0 0.0
    %1859 = vmatprep.subr.mxu0 0.0
    %1860 = vmatpush1.msra.mxu0 0.0
    %1861 = vmatprep.subr.mxu0 0.0
    %1862 = vmatpush1.msra.mxu0 0.0
    %1863 = vmatprep.subr.mxu0 0.0
    %1864 = vmatpush1.msra.mxu0 0.0
    %1865 = vmatprep.subr.mxu0 0.0
    %1866 = vmatpush1.msra.mxu0 0.0
    %1867 = vmatprep.subr.mxu0 0.0
    %1868 = vmatpush1.msra.mxu0 0.0
    %1869 = vmatprep.subr.mxu0 0.0
    %1870 = vmatpush1.msra.mxu0 0.0
    %1871 = vmatprep.mubr.f32.mxu0 0.0
    %1872 = vmatmul.mubr.f32.gmra.mrb[0].mxu0 %v1702
    %v1873 = vpop.f32.mrb[0].mxu0
    %v1874 = vadd.f32 0.0, %v1873
    %v1875 = vpop.f32.mrb[0].mxu0
    %1876 = vmatprep.mubr.f32.mxu0 0.0
    %1877 = vmatmul.mubr.f32.gmra.mrb[0].mxu0 %v1705
    %v1878 = vpop.f32.mrb[0].mxu0
    %v1879 = vadd.f32 0.0, %v1878
    %v1880 = vpop.f32.mrb[0].mxu0
    %1881 = vdwg.mxu0
    %v1882 = vadd.f32 %v1680, %v1874
    %v1883 = vadd.f32 %v1681, %v1879
    %v1884 = vld [vmem:[#allocation3 + $0x4] sm:$0xff]
    %v1885 = vld [vmem:[#allocation3 + $0xc] sm:$0x3]
    %s1886 = scalar_lea.vmem %s4, 512
    %v1887 = vld [vmem:[%s1886] sm:$0xff]
    %v1888 = vld [vmem:[%s1886 + $0x8] sm:$0xff]
    %v1889 = vld [vmem:[%s1886 + $0x10] sm:$0xff]
    %v1890 = vld [vmem:[%s1886 + $0x18] sm:$0xff]
    %v1891 = vld [vmem:[%s1886 + $0x20] sm:$0xff]
    %v1892 = vld [vmem:[%s1886 + $0x28] sm:$0xff]
    %v1893 = vld [vmem:[%s1886 + $0x30] sm:$0xff]
    %v1894 = vld [vmem:[%s1886 + $0x38] sm:$0xff]
    %v1895 = vld [vmem:[%s1886 + $0x40] sm:$0xff]
    %v1896 = vld [vmem:[%s1886 + $0x48] sm:$0xff]
    %v1897 = vld [vmem:[%s1886 + $0x50] sm:$0xff]
    %v1898 = vld [vmem:[%s1886 + $0x58] sm:$0xff]
    %v1899 = vld [vmem:[%s1886 + $0x60] sm:$0xff]
    %v1900 = vld [vmem:[%s1886 + $0x68] sm:$0xff]
    %v1901 = vld [vmem:[%s1886 + $0x70] sm:$0xff]
    %v1902 = vld [vmem:[%s1886 + $0x78] sm:$0x3f]
    %v1904 = vsel %vm1067, %v1884, 0
    %v1907 = vsel %vm1067, %v1885, 0
    %v1910 = vsel %vm1144, %v1902, 0
    %1912 = vmatprep.subr.mxu0 0.0
    %1913 = vmatpush1.msra.mxu0 %v1887
    %1914 = vmatprep.subr.mxu0 0.0
    %1915 = vmatpush1.msra.mxu0 %v1888
    %1916 = vmatprep.subr.mxu0 0.0
    %1917 = vmatpush1.msra.mxu0 %v1889
    %1918 = vmatprep.subr.mxu0 0.0
    %1919 = vmatpush1.msra.mxu0 %v1890
    %1920 = vmatprep.subr.mxu0 0.0
    %1921 = vmatpush1.msra.mxu0 %v1891
    %1922 = vmatprep.subr.mxu0 0.0
    %1923 = vmatpush1.msra.mxu0 %v1892
    %1924 = vmatprep.subr.mxu0 0.0
    %1925 = vmatpush1.msra.mxu0 %v1893
    %1926 = vmatprep.subr.mxu0 0.0
    %1927 = vmatpush1.msra.mxu0 %v1894
    %1928 = vmatprep.subr.mxu0 0.0
    %1929 = vmatpush1.msra.mxu0 %v1895
    %1930 = vmatprep.subr.mxu0 0.0
    %1931 = vmatpush1.msra.mxu0 %v1896
    %1932 = vmatprep.subr.mxu0 0.0
    %1933 = vmatpush1.msra.mxu0 %v1897
    %1934 = vmatprep.subr.mxu0 0.0
    %1935 = vmatpush1.msra.mxu0 %v1898
    %1936 = vmatprep.subr.mxu0 0.0
    %1937 = vmatpush1.msra.mxu0 %v1899
    %1938 = vmatprep.subr.mxu0 0.0
    %1939 = vmatpush1.msra.mxu0 %v1900
    %1940 = vmatprep.subr.mxu0 0.0
    %1941 = vmatpush1.msra.mxu0 %v1901
    %1942 = vmatprep.subr.mxu0 0.0
    %1943 = vmatpush1.msra.mxu0 %v1910
    %1944 = vmatprep.subr.mxu0 0.0
    %1945 = vmatpush1.msra.mxu0 0.0
    %1946 = vmatprep.subr.mxu0 0.0
    %1947 = vmatpush1.msra.mxu0 0.0
    %1948 = vmatprep.subr.mxu0 0.0
    %1949 = vmatpush1.msra.mxu0 0.0
    %1950 = vmatprep.subr.mxu0 0.0
    %1951 = vmatpush1.msra.mxu0 0.0
    %1952 = vmatprep.subr.mxu0 0.0
    %1953 = vmatpush1.msra.mxu0 0.0
    %1954 = vmatprep.subr.mxu0 0.0
    %1955 = vmatpush1.msra.mxu0 0.0
    %1956 = vmatprep.subr.mxu0 0.0
    %1957 = vmatpush1.msra.mxu0 0.0
    %1958 = vmatprep.subr.mxu0 0.0
    %1959 = vmatpush1.msra.mxu0 0.0
    %1960 = vmatprep.subr.mxu0 0.0
    %1961 = vmatpush1.msra.mxu0 0.0
    %1962 = vmatprep.subr.mxu0 0.0
    %1963 = vmatpush1.msra.mxu0 0.0
    %1964 = vmatprep.subr.mxu0 0.0
    %1965 = vmatpush1.msra.mxu0 0.0
    %1966 = vmatprep.subr.mxu0 0.0
    %1967 = vmatpush1.msra.mxu0 0.0
    %1968 = vmatprep.subr.mxu0 0.0
    %1969 = vmatpush1.msra.mxu0 0.0
    %1970 = vmatprep.subr.mxu0 0.0
    %1971 = vmatpush1.msra.mxu0 0.0
    %1972 = vmatprep.subr.mxu0 0.0
    %1973 = vmatpush1.msra.mxu0 0.0
    %1974 = vmatprep.subr.mxu0 0.0
    %1975 = vmatpush1.msra.mxu0 0.0
    %1976 = vmatprep.mubr.f32.mxu0 0.0
    %1977 = vmatmul.mubr.f32.gmra.mrb[0].mxu0 %v1904
    %v1978 = vpop.f32.mrb[0].mxu0
    %v1979 = vadd.f32 0.0, %v1978
    %v1980 = vpop.f32.mrb[0].mxu0
    %1981 = vmatprep.mubr.f32.mxu0 0.0
    %1982 = vmatmul.mubr.f32.gmra.mrb[0].mxu0 %v1907
    %v1983 = vpop.f32.mrb[0].mxu0
    %v1984 = vadd.f32 0.0, %v1983
    %v1985 = vpop.f32.mrb[0].mxu0
    %1986 = vdwg.mxu0
    %v1987 = vadd.f32 %v1785, %v1979
    %v1988 = vadd.f32 %v1786, %v1984
    %s1989 = scalar_lea.vmem %s5, 512
    %v1990 = vld [vmem:[%s1989] sm:$0xff]
    %v1991 = vld [vmem:[%s1989 + $0x8] sm:$0xff]
    %v1992 = vld [vmem:[%s1989 + $0x10] sm:$0xff]
    %v1993 = vld [vmem:[%s1989 + $0x18] sm:$0xff]
    %v1994 = vld [vmem:[%s1989 + $0x20] sm:$0xff]
    %v1995 = vld [vmem:[%s1989 + $0x28] sm:$0xff]
    %v1996 = vld [vmem:[%s1989 + $0x30] sm:$0xff]
    %v1997 = vld [vmem:[%s1989 + $0x38] sm:$0xff]
    %v1998 = vld [vmem:[%s1989 + $0x40] sm:$0xff]
    %v1999 = vld [vmem:[%s1989 + $0x48] sm:$0xff]
    %v2000 = vld [vmem:[%s1989 + $0x50] sm:$0xff]
    %v2001 = vld [vmem:[%s1989 + $0x58] sm:$0xff]
    %v2002 = vld [vmem:[%s1989 + $0x60] sm:$0xff]
    %v2003 = vld [vmem:[%s1989 + $0x68] sm:$0xff]
    %v2004 = vld [vmem:[%s1989 + $0x70] sm:$0xff]
    %v2005 = vld [vmem:[%s1989 + $0x78] sm:$0x3f]
    %v2007 = vsel %vm1144, %v2005, 0
    %2009 = vmatprep.subr.mxu0 0.0
    %2010 = vmatpush1.msra.mxu0 %v1990
    %2011 = vmatprep.subr.mxu0 0.0
    %2012 = vmatpush1.msra.mxu0 %v1991
    %2013 = vmatprep.subr.mxu0 0.0
    %2014 = vmatpush1.msra.mxu0 %v1992
    %2015 = vmatprep.subr.mxu0 0.0
    %2016 = vmatpush1.msra.mxu0 %v1993
    %2017 = vmatprep.subr.mxu0 0.0
    %2018 = vmatpush1.msra.mxu0 %v1994
    %2019 = vmatprep.subr.mxu0 0.0
    %2020 = vmatpush1.msra.mxu0 %v1995
    %2021 = vmatprep.subr.mxu0 0.0
    %2022 = vmatpush1.msra.mxu0 %v1996
    %2023 = vmatprep.subr.mxu0 0.0
    %2024 = vmatpush1.msra.mxu0 %v1997
    %2025 = vmatprep.subr.mxu0 0.0
    %2026 = vmatpush1.msra.mxu0 %v1998
    %2027 = vmatprep.subr.mxu0 0.0
    %2028 = vmatpush1.msra.mxu0 %v1999
    %2029 = vmatprep.subr.mxu0 0.0
    %2030 = vmatpush1.msra.mxu0 %v2000
    %2031 = vmatprep.subr.mxu0 0.0
    %2032 = vmatpush1.msra.mxu0 %v2001
    %2033 = vmatprep.subr.mxu0 0.0
    %2034 = vmatpush1.msra.mxu0 %v2002
    %2035 = vmatprep.subr.mxu0 0.0
    %2036 = vmatpush1.msra.mxu0 %v2003
    %2037 = vmatprep.subr.mxu0 0.0
    %2038 = vmatpush1.msra.mxu0 %v2004
    %2039 = vmatprep.subr.mxu0 0.0
    %2040 = vmatpush1.msra.mxu0 %v2007
    %2041 = vmatprep.subr.mxu0 0.0
    %2042 = vmatpush1.msra.mxu0 0.0
    %2043 = vmatprep.subr.mxu0 0.0
    %2044 = vmatpush1.msra.mxu0 0.0
    %2045 = vmatprep.subr.mxu0 0.0
    %2046 = vmatpush1.msra.mxu0 0.0
    %2047 = vmatprep.subr.mxu0 0.0
    %2048 = vmatpush1.msra.mxu0 0.0
    %2049 = vmatprep.subr.mxu0 0.0
    %2050 = vmatpush1.msra.mxu0 0.0
    %2051 = vmatprep.subr.mxu0 0.0
    %2052 = vmatpush1.msra.mxu0 0.0
    %2053 = vmatprep.subr.mxu0 0.0
    %2054 = vmatpush1.msra.mxu0 0.0
    %2055 = vmatprep.subr.mxu0 0.0
    %2056 = vmatpush1.msra.mxu0 0.0
    %2057 = vmatprep.subr.mxu0 0.0
    %2058 = vmatpush1.msra.mxu0 0.0
    %2059 = vmatprep.subr.mxu0 0.0
    %2060 = vmatpush1.msra.mxu0 0.0
    %2061 = vmatprep.subr.mxu0 0.0
    %2062 = vmatpush1.msra.mxu0 0.0
    %2063 = vmatprep.subr.mxu0 0.0
    %2064 = vmatpush1.msra.mxu0 0.0
    %2065 = vmatprep.subr.mxu0 0.0
    %2066 = vmatpush1.msra.mxu0 0.0
    %2067 = vmatprep.subr.mxu0 0.0
    %2068 = vmatpush1.msra.mxu0 0.0
    %2069 = vmatprep.subr.mxu0 0.0
    %2070 = vmatpush1.msra.mxu0 0.0
    %2071 = vmatprep.subr.mxu0 0.0
    %2072 = vmatpush1.msra.mxu0 0.0
    %2073 = vmatprep.mubr.f32.mxu0 0.0
    %2074 = vmatmul.mubr.f32.gmra.mrb[0].mxu0 %v1904
    %v2075 = vpop.f32.mrb[0].mxu0
    %v2076 = vadd.f32 0.0, %v2075
    %v2077 = vpop.f32.mrb[0].mxu0
    %2078 = vmatprep.mubr.f32.mxu0 0.0
    %2079 = vmatmul.mubr.f32.gmra.mrb[0].mxu0 %v1907
    %v2080 = vpop.f32.mrb[0].mxu0
    %v2081 = vadd.f32 0.0, %v2080
    %v2082 = vpop.f32.mrb[0].mxu0
    %2083 = vdwg.mxu0
    %v2084 = vadd.f32 %v1882, %v2076
    %v2085 = vadd.f32 %v1883, %v2081
    %v2086 = vmax.f32 %v1987, %v2084
    %v2087 = vmax.f32 %v1988, %v2085
    %v2088 = vld [vmem:[%s6] sm:$0x1]
    %v2090 = vlaneseq
    %v2091 = vshrl.u32 %v2090, 7
    %v2092 = vsub.s32 0, %v2091
    %v2093 = vrot.slane %v2088, %v2092
    %v2095 = vadd.f32 %v2086, %v2093
    %v2096 = vadd.f32 %v2087, %v2093
    %v2097 = vmax.f32 %v2095, 0.0
    %v2098 = vmax.f32 %v2096, 0.0
    %vm2099 = vcmask 736256
    %2100 = vst.msk [vmem:[#allocation4] sm:$0xff] %vm2099, %v2097
    %vm2101 = vcmask 730112
    %2102 = vst.msk [vmem:[#allocation4 + $0x8] sm:$0x3] %vm2101, %v2098
    %v2103 = vld [vmem:[#allocation4] ss:$2 sm:$0x1f]
    %s2104 = scalar_lea.vmem [#allocation4], 1
    %v2105 = vld [vmem:[%s2104] ss:$2 sm:$0x1f]
    %v2106 = vmax.f32 %v2103, %v2105
    %vm2107 = vcmask 733184
    %2108 = vst.msk [vmem:[#allocation5] sm:$0x1f] %vm2107, %v2106
    %v2109 = vld [vmem:[#allocation5] sm:$0x1]
    %v2110 = vld [vmem:[%s7] sm:$0xff]
    %v2111 = vld [vmem:[%s7 + $0x8] sm:$0xff]
    %v2112 = vld [vmem:[%s7 + $0x10] sm:$0xff]
    %v2113 = vld [vmem:[%s7 + $0x18] sm:$0xff]
    %v2114 = vld [vmem:[%s7 + $0x20] sm:$0xff]
    %v2115 = vld [vmem:[%s7 + $0x28] sm:$0xff]
    %v2116 = vld [vmem:[%s7 + $0x30] sm:$0xff]
    %v2117 = vld [vmem:[%s7 + $0x38] sm:$0xff]
    %v2118 = vld [vmem:[%s7 + $0x40] sm:$0xff]
    %v2119 = vld [vmem:[%s7 + $0x48] sm:$0xff]
    %v2120 = vld [vmem:[%s7 + $0x50] sm:$0xff]
    %v2121 = vld [vmem:[%s7 + $0x58] sm:$0x3]
    %v2122 = vld [vmem:[#allocation5 + $0x1] sm:$0x1]
    %s2123 = scalar_lea.vmem %s7, 96
    %v2124 = vld [vmem:[%s2123] sm:$0xff]
    %v2125 = vld [vmem:[%s2123 + $0x8] sm:$0xff]
    %v2126 = vld [vmem:[%s2123 + $0x10] sm:$0xff]
    %v2127 = vld [vmem:[%s2123 + $0x18] sm:$0xff]
    %v2128 = vld [vmem:[%s2123 + $0x20] sm:$0xff]
    %v2129 = vld [vmem:[%s2123 + $0x28] sm:$0xff]
    %v2130 = vld [vmem:[%s2123 + $0x30] sm:$0xff]
    %v2131 = vld [vmem:[%s2123 + $0x38] sm:$0xff]
    %v2132 = vld [vmem:[%s2123 + $0x40] sm:$0xff]
    %v2133 = vld [vmem:[%s2123 + $0x48] sm:$0xff]
    %v2134 = vld [vmem:[%s2123 + $0x50] sm:$0xff]
    %v2135 = vld [vmem:[%s2123 + $0x58] sm:$0x3]
    %v2137 = vsel %vm2099, %v2122, 0
    %vm2139 = vcmask 1041408
    %v2141 = vsel %vm2139, %v2135, 0
    %2143 = vmatprep.subr.mxu0 0.0
    %2144 = vmatpush1.msra.mxu0 %v2124
    %2145 = vmatprep.subr.mxu0 0.0
    %2146 = vmatpush1.msra.mxu0 %v2125
    %2147 = vmatprep.subr.mxu0 0.0
    %2148 = vmatpush1.msra.mxu0 %v2126
    %2149 = vmatprep.subr.mxu0 0.0
    %2150 = vmatpush1.msra.mxu0 %v2127
    %2151 = vmatprep.subr.mxu0 0.0
    %2152 = vmatpush1.msra.mxu0 %v2128
    %2153 = vmatprep.subr.mxu0 0.0
    %2154 = vmatpush1.msra.mxu0 %v2129
    %2155 = vmatprep.subr.mxu0 0.0
    %2156 = vmatpush1.msra.mxu0 %v2130
    %2157 = vmatprep.subr.mxu0 0.0
    %2158 = vmatpush1.msra.mxu0 %v2131
    %2159 = vmatprep.subr.mxu0 0.0
    %2160 = vmatpush1.msra.mxu0 %v2132
    %2161 = vmatprep.subr.mxu0 0.0
    %2162 = vmatpush1.msra.mxu0 %v2133
    %2163 = vmatprep.subr.mxu0 0.0
    %2164 = vmatpush1.msra.mxu0 %v2134
    %2165 = vmatprep.subr.mxu0 0.0
    %2166 = vmatpush1.msra.mxu0 %v2141
    %2167 = vmatprep.subr.mxu0 0.0
    %2168 = vmatpush1.msra.mxu0 0.0
    %2169 = vmatprep.subr.mxu0 0.0
    %2170 = vmatpush1.msra.mxu0 0.0
    %2171 = vmatprep.subr.mxu0 0.0
    %2172 = vmatpush1.msra.mxu0 0.0
    %2173 = vmatprep.subr.mxu0 0.0
    %2174 = vmatpush1.msra.mxu0 0.0
    %2175 = vmatprep.subr.mxu0 0.0
    %2176 = vmatpush1.msra.mxu0 0.0
    %2177 = vmatprep.subr.mxu0 0.0
    %2178 = vmatpush1.msra.mxu0 0.0
    %2179 = vmatprep.subr.mxu0 0.0
    %2180 = vmatpush1.msra.mxu0 0.0
    %2181 = vmatprep.subr.mxu0 0.0
    %2182 = vmatpush1.msra.mxu0 0.0
    %2183 = vmatprep.subr.mxu0 0.0
    %2184 = vmatpush1.msra.mxu0 0.0
    %2185 = vmatprep.subr.mxu0 0.0
    %2186 = vmatpush1.msra.mxu0 0.0
    %2187 = vmatprep.subr.mxu0 0.0
    %2188 = vmatpush1.msra.mxu0 0.0
    %2189 = vmatprep.subr.mxu0 0.0
    %2190 = vmatpush1.msra.mxu0 0.0
    %2191 = vmatprep.subr.mxu0 0.0
    %2192 = vmatpush1.msra.mxu0 0.0
    %2193 = vmatprep.subr.mxu0 0.0
    %2194 = vmatpush1.msra.mxu0 0.0
    %2195 = vmatprep.subr.mxu0 0.0
    %2196 = vmatpush1.msra.mxu0 0.0
    %2197 = vmatprep.subr.mxu0 0.0
    %2198 = vmatpush1.msra.mxu0 0.0
    %2199 = vmatprep.subr.mxu0 0.0
    %2200 = vmatpush1.msra.mxu0 0.0
    %2201 = vmatprep.subr.mxu0 0.0
    %2202 = vmatpush1.msra.mxu0 0.0
    %2203 = vmatprep.subr.mxu0 0.0
    %2204 = vmatpush1.msra.mxu0 0.0
    %2205 = vmatprep.subr.mxu0 0.0
    %2206 = vmatpush1.msra.mxu0 0.0
    %2207 = vmatprep.mubr.f32.mxu0 0.0
    %2208 = vmatmul.mubr.f32.gmra.mrb[0].mxu0 %v2137
    %v2209 = vpop.f32.mrb[0].mxu0
    %v2210 = vadd.f32 0.0, %v2209
    %v2211 = vpop.f32.mrb[0].mxu0
    %2212 = vdwg.mxu0
    %v2214 = vsel %vm2099, %v2109, 0
    %v2217 = vsel %vm2139, %v2121, 0
    %2219 = vmatprep.subr.mxu0 0.0
    %2220 = vmatpush1.msra.mxu0 %v2110
    %2221 = vmatprep.subr.mxu0 0.0
    %2222 = vmatpush1.msra.mxu0 %v2111
    %2223 = vmatprep.subr.mxu0 0.0
    %2224 = vmatpush1.msra.mxu0 %v2112
    %2225 = vmatprep.subr.mxu0 0.0
    %2226 = vmatpush1.msra.mxu0 %v2113
    %2227 = vmatprep.subr.mxu0 0.0
    %2228 = vmatpush1.msra.mxu0 %v2114
    %2229 = vmatprep.subr.mxu0 0.0
    %2230 = vmatpush1.msra.mxu0 %v2115
    %2231 = vmatprep.subr.mxu0 0.0
    %2232 = vmatpush1.msra.mxu0 %v2116
    %2233 = vmatprep.subr.mxu0 0.0
    %2234 = vmatpush1.msra.mxu0 %v2117
    %2235 = vmatprep.subr.mxu0 0.0
    %2236 = vmatpush1.msra.mxu0 %v2118
    %2237 = vmatprep.subr.mxu0 0.0
    %2238 = vmatpush1.msra.mxu0 %v2119
    %2239 = vmatprep.subr.mxu0 0.0
    %2240 = vmatpush1.msra.mxu0 %v2120
    %2241 = vmatprep.subr.mxu0 0.0
    %2242 = vmatpush1.msra.mxu0 %v2217
    %2243 = vmatprep.subr.mxu0 0.0
    %2244 = vmatpush1.msra.mxu0 0.0
    %2245 = vmatprep.subr.mxu0 0.0
    %2246 = vmatpush1.msra.mxu0 0.0
    %2247 = vmatprep.subr.mxu0 0.0
    %2248 = vmatpush1.msra.mxu0 0.0
    %2249 = vmatprep.subr.mxu0 0.0
    %2250 = vmatpush1.msra.mxu0 0.0
    %2251 = vmatprep.subr.mxu0 0.0
    %2252 = vmatpush1.msra.mxu0 0.0
    %2253 = vmatprep.subr.mxu0 0.0
    %2254 = vmatpush1.msra.mxu0 0.0
    %2255 = vmatprep.subr.mxu0 0.0
    %2256 = vmatpush1.msra.mxu0 0.0
    %2257 = vmatprep.subr.mxu0 0.0
    %2258 = vmatpush1.msra.mxu0 0.0
    %2259 = vmatprep.subr.mxu0 0.0
    %2260 = vmatpush1.msra.mxu0 0.0
    %2261 = vmatprep.subr.mxu0 0.0
    %2262 = vmatpush1.msra.mxu0 0.0
    %2263 = vmatprep.subr.mxu0 0.0
    %2264 = vmatpush1.msra.mxu0 0.0
    %2265 = vmatprep.subr.mxu0 0.0
    %2266 = vmatpush1.msra.mxu0 0.0
    %2267 = vmatprep.subr.mxu0 0.0
    %2268 = vmatpush1.msra.mxu0 0.0
    %2269 = vmatprep.subr.mxu0 0.0
    %2270 = vmatpush1.msra.mxu0 0.0
    %2271 = vmatprep.subr.mxu0 0.0
    %2272 = vmatpush1.msra.mxu0 0.0
    %2273 = vmatprep.subr.mxu0 0.0
    %2274 = vmatpush1.msra.mxu0 0.0
    %2275 = vmatprep.subr.mxu0 0.0
    %2276 = vmatpush1.msra.mxu0 0.0
    %2277 = vmatprep.subr.mxu0 0.0
    %2278 = vmatpush1.msra.mxu0 0.0
    %2279 = vmatprep.subr.mxu0 0.0
    %2280 = vmatpush1.msra.mxu0 0.0
    %2281 = vmatprep.subr.mxu0 0.0
    %2282 = vmatpush1.msra.mxu0 0.0
    %2283 = vmatprep.mubr.f32.mxu0 0.0
    %2284 = vmatmul.mubr.f32.gmra.mrb[0].mxu0 %v2214
    %v2285 = vpop.f32.mrb[0].mxu0
    %v2286 = vadd.f32 %v2210, %v2285
    %v2287 = vpop.f32.mrb[0].mxu0
    %2288 = vdwg.mxu0
    %v2289 = vld [vmem:[#allocation5 + $0x2] sm:$0x1]
    %s2290 = scalar_lea.vmem %s7, 192
    %v2291 = vld [vmem:[%s2290] sm:$0xff]
    %v2292 = vld [vmem:[%s2290 + $0x8] sm:$0xff]
    %v2293 = vld [vmem:[%s2290 + $0x10] sm:$0xff]
    %v2294 = vld [vmem:[%s2290 + $0x18] sm:$0xff]
    %v2295 = vld [vmem:[%s2290 + $0x20] sm:$0xff]
    %v2296 = vld [vmem:[%s2290 + $0x28] sm:$0xff]
    %v2297 = vld [vmem:[%s2290 + $0x30] sm:$0xff]
    %v2298 = vld [vmem:[%s2290 + $0x38] sm:$0xff]
    %v2299 = vld [vmem:[%s2290 + $0x40] sm:$0xff]
    %v2300 = vld [vmem:[%s2290 + $0x48] sm:$0xff]
    %v2301 = vld [vmem:[%s2290 + $0x50] sm:$0xff]
    %v2302 = vld [vmem:[%s2290 + $0x58] sm:$0x3]
    %v2304 = vsel %vm2099, %v2289, 0
    %v2307 = vsel %vm2139, %v2302, 0
    %2309 = vmatprep.subr.mxu0 0.0
    %2310 = vmatpush1.msra.mxu0 %v2291
    %2311 = vmatprep.subr.mxu0 0.0
    %2312 = vmatpush1.msra.mxu0 %v2292
    %2313 = vmatprep.subr.mxu0 0.0
    %2314 = vmatpush1.msra.mxu0 %v2293
    %2315 = vmatprep.subr.mxu0 0.0
    %2316 = vmatpush1.msra.mxu0 %v2294
    %2317 = vmatprep.subr.mxu0 0.0
    %2318 = vmatpush1.msra.mxu0 %v2295
    %2319 = vmatprep.subr.mxu0 0.0
    %2320 = vmatpush1.msra.mxu0 %v2296
    %2321 = vmatprep.subr.mxu0 0.0
    %2322 = vmatpush1.msra.mxu0 %v2297
    %2323 = vmatprep.subr.mxu0 0.0
    %2324 = vmatpush1.msra.mxu0 %v2298
    %2325 = vmatprep.subr.mxu0 0.0
    %2326 = vmatpush1.msra.mxu0 %v2299
    %2327 = vmatprep.subr.mxu0 0.0
    %2328 = vmatpush1.msra.mxu0 %v2300
    %2329 = vmatprep.subr.mxu0 0.0
    %2330 = vmatpush1.msra.mxu0 %v2301
    %2331 = vmatprep.subr.mxu0 0.0
    %2332 = vmatpush1.msra.mxu0 %v2307
    %2333 = vmatprep.subr.mxu0 0.0
    %2334 = vmatpush1.msra.mxu0 0.0
    %2335 = vmatprep.subr.mxu0 0.0
    %2336 = vmatpush1.msra.mxu0 0.0
    %2337 = vmatprep.subr.mxu0 0.0
    %2338 = vmatpush1.msra.mxu0 0.0
    %2339 = vmatprep.subr.mxu0 0.0
    %2340 = vmatpush1.msra.mxu0 0.0
    %2341 = vmatprep.subr.mxu0 0.0
    %2342 = vmatpush1.msra.mxu0 0.0
    %2343 = vmatprep.subr.mxu0 0.0
    %2344 = vmatpush1.msra.mxu0 0.0
    %2345 = vmatprep.subr.mxu0 0.0
    %2346 = vmatpush1.msra.mxu0 0.0
    %2347 = vmatprep.subr.mxu0 0.0
    %2348 = vmatpush1.msra.mxu0 0.0
    %2349 = vmatprep.subr.mxu0 0.0
    %2350 = vmatpush1.msra.mxu0 0.0
    %2351 = vmatprep.subr.mxu0 0.0
    %2352 = vmatpush1.msra.mxu0 0.0
    %2353 = vmatprep.subr.mxu0 0.0
    %2354 = vmatpush1.msra.mxu0 0.0
    %2355 = vmatprep.subr.mxu0 0.0
    %2356 = vmatpush1.msra.mxu0 0.0
    %2357 = vmatprep.subr.mxu0 0.0
    %2358 = vmatpush1.msra.mxu0 0.0
    %2359 = vmatprep.subr.mxu0 0.0
    %2360 = vmatpush1.msra.mxu0 0.0
    %2361 = vmatprep.subr.mxu0 0.0
    %2362 = vmatpush1.msra.mxu0 0.0
    %2363 = vmatprep.subr.mxu0 0.0
    %2364 = vmatpush1.msra.mxu0 0.0
    %2365 = vmatprep.subr.mxu0 0.0
    %2366 = vmatpush1.msra.mxu0 0.0
    %2367 = vmatprep.subr.mxu0 0.0
    %2368 = vmatpush1.msra.mxu0 0.0
    %2369 = vmatprep.subr.mxu0 0.0
    %2370 = vmatpush1.msra.mxu0 0.0
    %2371 = vmatprep.subr.mxu0 0.0
    %2372 = vmatpush1.msra.mxu0 0.0
    %2373 = vmatprep.mubr.f32.mxu0 0.0
    %2374 = vmatmul.mubr.f32.gmra.mrb[0].mxu0 %v2304
    %v2375 = vpop.f32.mrb[0].mxu0
    %v2376 = vadd.f32 0.0, %v2375
    %v2377 = vpop.f32.mrb[0].mxu0
    %2378 = vdwg.mxu0
    %v2379 = vadd.f32 %v2286, %v2376
    %v2380 = vld [vmem:[#allocation5 + $0x3] sm:$0x1]
    %s2381 = scalar_lea.vmem %s7, 288
    %v2382 = vld [vmem:[%s2381] sm:$0xff]
    %v2383 = vld [vmem:[%s2381 + $0x8] sm:$0xff]
    %v2384 = vld [vmem:[%s2381 + $0x10] sm:$0xff]
    %v2385 = vld [vmem:[%s2381 + $0x18] sm:$0xff]
    %v2386 = vld [vmem:[%s2381 + $0x20] sm:$0xff]
    %v2387 = vld [vmem:[%s2381 + $0x28] sm:$0xff]
    %v2388 = vld [vmem:[%s2381 + $0x30] sm:$0xff]
    %v2389 = vld [vmem:[%s2381 + $0x38] sm:$0xff]
    %v2390 = vld [vmem:[%s2381 + $0x40] sm:$0xff]
    %v2391 = vld [vmem:[%s2381 + $0x48] sm:$0xff]
    %v2392 = vld [vmem:[%s2381 + $0x50] sm:$0xff]
    %v2393 = vld [vmem:[%s2381 + $0x58] sm:$0x3]
    %v2395 = vsel %vm2099, %v2380, 0
    %v2398 = vsel %vm2139, %v2393, 0
    %2400 = vmatprep.subr.mxu0 0.0
    %2401 = vmatpush1.msra.mxu0 %v2382
    %2402 = vmatprep.subr.mxu0 0.0
    %2403 = vmatpush1.msra.mxu0 %v2383
    %2404 = vmatprep.subr.mxu0 0.0
    %2405 = vmatpush1.msra.mxu0 %v2384
    %2406 = vmatprep.subr.mxu0 0.0
    %2407 = vmatpush1.msra.mxu0 %v2385
    %2408 = vmatprep.subr.mxu0 0.0
    %2409 = vmatpush1.msra.mxu0 %v2386
    %2410 = vmatprep.subr.mxu0 0.0
    %2411 = vmatpush1.msra.mxu0 %v2387
    %2412 = vmatprep.subr.mxu0 0.0
    %2413 = vmatpush1.msra.mxu0 %v2388
    %2414 = vmatprep.subr.mxu0 0.0
    %2415 = vmatpush1.msra.mxu0 %v2389
    %2416 = vmatprep.subr.mxu0 0.0
    %2417 = vmatpush1.msra.mxu0 %v2390
    %2418 = vmatprep.subr.mxu0 0.0
    %2419 = vmatpush1.msra.mxu0 %v2391
    %2420 = vmatprep.subr.mxu0 0.0
    %2421 = vmatpush1.msra.mxu0 %v2392
    %2422 = vmatprep.subr.mxu0 0.0
    %2423 = vmatpush1.msra.mxu0 %v2398
    %2424 = vmatprep.subr.mxu0 0.0
    %2425 = vmatpush1.msra.mxu0 0.0
    %2426 = vmatprep.subr.mxu0 0.0
    %2427 = vmatpush1.msra.mxu0 0.0
    %2428 = vmatprep.subr.mxu0 0.0
    %2429 = vmatpush1.msra.mxu0 0.0
    %2430 = vmatprep.subr.mxu0 0.0
    %2431 = vmatpush1.msra.mxu0 0.0
    %2432 = vmatprep.subr.mxu0 0.0
    %2433 = vmatpush1.msra.mxu0 0.0
    %2434 = vmatprep.subr.mxu0 0.0
    %2435 = vmatpush1.msra.mxu0 0.0
    %2436 = vmatprep.subr.mxu0 0.0
    %2437 = vmatpush1.msra.mxu0 0.0
    %2438 = vmatprep.subr.mxu0 0.0
    %2439 = vmatpush1.msra.mxu0 0.0
    %2440 = vmatprep.subr.mxu0 0.0
    %2441 = vmatpush1.msra.mxu0 0.0
    %2442 = vmatprep.subr.mxu0 0.0
    %2443 = vmatpush1.msra.mxu0 0.0
    %2444 = vmatprep.subr.mxu0 0.0
    %2445 = vmatpush1.msra.mxu0 0.0
    %2446 = vmatprep.subr.mxu0 0.0
    %2447 = vmatpush1.msra.mxu0 0.0
    %2448 = vmatprep.subr.mxu0 0.0
    %2449 = vmatpush1.msra.mxu0 0.0
    %2450 = vmatprep.subr.mxu0 0.0
    %2451 = vmatpush1.msra.mxu0 0.0
    %2452 = vmatprep.subr.mxu0 0.0
    %2453 = vmatpush1.msra.mxu0 0.0
    %2454 = vmatprep.subr.mxu0 0.0
    %2455 = vmatpush1.msra.mxu0 0.0
    %2456 = vmatprep.subr.mxu0 0.0
    %2457 = vmatpush1.msra.mxu0 0.0
    %2458 = vmatprep.subr.mxu0 0.0
    %2459 = vmatpush1.msra.mxu0 0.0
    %2460 = vmatprep.subr.mxu0 0.0
    %2461 = vmatpush1.msra.mxu0 0.0
    %2462 = vmatprep.subr.mxu0 0.0
    %2463 = vmatpush1.msra.mxu0 0.0
    %2464 = vmatprep.mubr.f32.mxu0 0.0
    %2465 = vmatmul.mubr.f32.gmra.mrb[0].mxu0 %v2395
    %v2466 = vpop.f32.mrb[0].mxu0
    %v2467 = vadd.f32 0.0, %v2466
    %v2468 = vpop.f32.mrb[0].mxu0
    %2469 = vdwg.mxu0
    %v2470 = vadd.f32 %v2379, %v2467
    %v2471 = vld [vmem:[#allocation5 + $0x4] sm:$0x1]
    %s2472 = scalar_lea.vmem %s7, 384
    %v2473 = vld [vmem:[%s2472] sm:$0xff]
    %v2474 = vld [vmem:[%s2472 + $0x8] sm:$0xff]
    %v2475 = vld [vmem:[%s2472 + $0x10] sm:$0xff]
    %v2476 = vld [vmem:[%s2472 + $0x18] sm:$0xff]
    %v2477 = vld [vmem:[%s2472 + $0x20] sm:$0xff]
    %v2478 = vld [vmem:[%s2472 + $0x28] sm:$0xff]
    %v2479 = vld [vmem:[%s2472 + $0x30] sm:$0xff]
    %v2480 = vld [vmem:[%s2472 + $0x38] sm:$0xff]
    %v2481 = vld [vmem:[%s2472 + $0x40] sm:$0xff]
    %v2482 = vld [vmem:[%s2472 + $0x48] sm:$0xff]
    %v2483 = vld [vmem:[%s2472 + $0x50] sm:$0xff]
    %v2484 = vld [vmem:[%s2472 + $0x58] sm:$0x3]
    %v2486 = vsel %vm2099, %v2471, 0
    %v2489 = vsel %vm2139, %v2484, 0
    %2491 = vmatprep.subr.mxu0 0.0
    %2492 = vmatpush1.msra.mxu0 %v2473
    %2493 = vmatprep.subr.mxu0 0.0
    %2494 = vmatpush1.msra.mxu0 %v2474
    %2495 = vmatprep.subr.mxu0 0.0
    %2496 = vmatpush1.msra.mxu0 %v2475
    %2497 = vmatprep.subr.mxu0 0.0
    %2498 = vmatpush1.msra.mxu0 %v2476
    %2499 = vmatprep.subr.mxu0 0.0
    %2500 = vmatpush1.msra.mxu0 %v2477
    %2501 = vmatprep.subr.mxu0 0.0
    %2502 = vmatpush1.msra.mxu0 %v2478
    %2503 = vmatprep.subr.mxu0 0.0
    %2504 = vmatpush1.msra.mxu0 %v2479
    %2505 = vmatprep.subr.mxu0 0.0
    %2506 = vmatpush1.msra.mxu0 %v2480
    %2507 = vmatprep.subr.mxu0 0.0
    %2508 = vmatpush1.msra.mxu0 %v2481
    %2509 = vmatprep.subr.mxu0 0.0
    %2510 = vmatpush1.msra.mxu0 %v2482
    %2511 = vmatprep.subr.mxu0 0.0
    %2512 = vmatpush1.msra.mxu0 %v2483
    %2513 = vmatprep.subr.mxu0 0.0
    %2514 = vmatpush1.msra.mxu0 %v2489
    %2515 = vmatprep.subr.mxu0 0.0
    %2516 = vmatpush1.msra.mxu0 0.0
    %2517 = vmatprep.subr.mxu0 0.0
    %2518 = vmatpush1.msra.mxu0 0.0
    %2519 = vmatprep.subr.mxu0 0.0
    %2520 = vmatpush1.msra.mxu0 0.0
    %2521 = vmatprep.subr.mxu0 0.0
    %2522 = vmatpush1.msra.mxu0 0.0
    %2523 = vmatprep.subr.mxu0 0.0
    %2524 = vmatpush1.msra.mxu0 0.0
    %2525 = vmatprep.subr.mxu0 0.0
    %2526 = vmatpush1.msra.mxu0 0.0
    %2527 = vmatprep.subr.mxu0 0.0
    %2528 = vmatpush1.msra.mxu0 0.0
    %2529 = vmatprep.subr.mxu0 0.0
    %2530 = vmatpush1.msra.mxu0 0.0
    %2531 = vmatprep.subr.mxu0 0.0
    %2532 = vmatpush1.msra.mxu0 0.0
    %2533 = vmatprep.subr.mxu0 0.0
    %2534 = vmatpush1.msra.mxu0 0.0
    %2535 = vmatprep.subr.mxu0 0.0
    %2536 = vmatpush1.msra.mxu0 0.0
    %2537 = vmatprep.subr.mxu0 0.0
    %2538 = vmatpush1.msra.mxu0 0.0
    %2539 = vmatprep.subr.mxu0 0.0
    %2540 = vmatpush1.msra.mxu0 0.0
    %2541 = vmatprep.subr.mxu0 0.0
    %2542 = vmatpush1.msra.mxu0 0.0
    %2543 = vmatprep.subr.mxu0 0.0
    %2544 = vmatpush1.msra.mxu0 0.0
    %2545 = vmatprep.subr.mxu0 0.0
    %2546 = vmatpush1.msra.mxu0 0.0
    %2547 = vmatprep.subr.mxu0 0.0
    %2548 = vmatpush1.msra.mxu0 0.0
    %2549 = vmatprep.subr.mxu0 0.0
    %2550 = vmatpush1.msra.mxu0 0.0
    %2551 = vmatprep.subr.mxu0 0.0
    %2552 = vmatpush1.msra.mxu0 0.0
    %2553 = vmatprep.subr.mxu0 0.0
    %2554 = vmatpush1.msra.mxu0 0.0
    %2555 = vmatprep.mubr.f32.mxu0 0.0
    %2556 = vmatmul.mubr.f32.gmra.mrb[0].mxu0 %v2486
    %v2557 = vpop.f32.mrb[0].mxu0
    %v2558 = vadd.f32 0.0, %v2557
    %v2559 = vpop.f32.mrb[0].mxu0
    %2560 = vdwg.mxu0
    %v2561 = vadd.f32 %v2470, %v2558
    %v2562 = vld [vmem:[%s8] sm:$0x1]
    %v2563 = vadd.f32 %v2561, %v2562
    %v2564 = vmax.f32 %v2563, 0.0
    %v2565 = vld [vmem:[%s9] sm:$0xff]
    %v2566 = vld [vmem:[%s9 + $0x8] sm:$0xff]
    %v2567 = vld [vmem:[%s9 + $0x10] sm:$0xff]
    %v2568 = vld [vmem:[%s9 + $0x18] sm:$0xff]
    %v2569 = vld [vmem:[%s9 + $0x20] sm:$0xff]
    %v2570 = vld [vmem:[%s9 + $0x28] sm:$0xff]
    %v2571 = vld [vmem:[%s9 + $0x30] sm:$0xff]
    %v2572 = vld [vmem:[%s9 + $0x38] sm:$0xff]
    %v2573 = vld [vmem:[%s9 + $0x40] sm:$0xff]
    %v2574 = vld [vmem:[%s9 + $0x48] sm:$0xff]
    %v2575 = vld [vmem:[%s9 + $0x50] sm:$0xff]
    %v2576 = vld [vmem:[%s9 + $0x58] sm:$0xff]
    %v2577 = vld [vmem:[%s9 + $0x60] sm:$0xff]
    %v2578 = vld [vmem:[%s9 + $0x68] sm:$0xff]
    %v2579 = vld [vmem:[%s9 + $0x70] sm:$0xff]
    %v2580 = vld [vmem:[%s10] sm:$0x1]
    %vm2581 = vcmask 982016
    %v2583 = vsel %vm2581, %v2564, 0
    %2585 = vmatprep.subr.mxu0 0.0
    %2586 = vmatpush1.msra.mxu0 %v2565
    %2587 = vmatprep.subr.mxu0 0.0
    %2588 = vmatpush1.msra.mxu0 %v2566
    %2589 = vmatprep.subr.mxu0 0.0
    %2590 = vmatpush1.msra.mxu0 %v2567
    %2591 = vmatprep.subr.mxu0 0.0
    %2592 = vmatpush1.msra.mxu0 %v2568
    %2593 = vmatprep.subr.mxu0 0.0
    %2594 = vmatpush1.msra.mxu0 %v2569
    %2595 = vmatprep.subr.mxu0 0.0
    %2596 = vmatpush1.msra.mxu0 %v2570
    %2597 = vmatprep.subr.mxu0 0.0
    %2598 = vmatpush1.msra.mxu0 %v2571
    %2599 = vmatprep.subr.mxu0 0.0
    %2600 = vmatpush1.msra.mxu0 %v2572
    %2601 = vmatprep.subr.mxu0 0.0
    %2602 = vmatpush1.msra.mxu0 %v2573
    %2603 = vmatprep.subr.mxu0 0.0
    %2604 = vmatpush1.msra.mxu0 %v2574
    %2605 = vmatprep.subr.mxu0 0.0
    %2606 = vmatpush1.msra.mxu0 %v2575
    %2607 = vmatprep.subr.mxu0 0.0
    %2608 = vmatpush1.msra.mxu0 %v2576
    %2609 = vmatprep.subr.mxu0 0.0
    %2610 = vmatpush1.msra.mxu0 %v2577
    %2611 = vmatprep.subr.mxu0 0.0
    %2612 = vmatpush1.msra.mxu0 %v2578
    %2613 = vmatprep.subr.mxu0 0.0
    %2614 = vmatpush1.msra.mxu0 %v2579
    %2615 = vmatprep.subr.mxu0 0.0
    %2616 = vmatpush1.msra.mxu0 0.0
    %2617 = vmatprep.subr.mxu0 0.0
    %2618 = vmatpush1.msra.mxu0 0.0
    %2619 = vmatprep.subr.mxu0 0.0
    %2620 = vmatpush1.msra.mxu0 0.0
    %2621 = vmatprep.subr.mxu0 0.0
    %2622 = vmatpush1.msra.mxu0 0.0
    %2623 = vmatprep.subr.mxu0 0.0
    %2624 = vmatpush1.msra.mxu0 0.0
    %2625 = vmatprep.subr.mxu0 0.0
    %2626 = vmatpush1.msra.mxu0 0.0
    %2627 = vmatprep.subr.mxu0 0.0
    %2628 = vmatpush1.msra.mxu0 0.0
    %2629 = vmatprep.subr.mxu0 0.0
    %2630 = vmatpush1.msra.mxu0 0.0
    %2631 = vmatprep.subr.mxu0 0.0
    %2632 = vmatpush1.msra.mxu0 0.0
    %2633 = vmatprep.subr.mxu0 0.0
    %2634 = vmatpush1.msra.mxu0 0.0
    %2635 = vmatprep.subr.mxu0 0.0
    %2636 = vmatpush1.msra.mxu0 0.0
    %2637 = vmatprep.subr.mxu0 0.0
    %2638 = vmatpush1.msra.mxu0 0.0
    %2639 = vmatprep.subr.mxu0 0.0
    %2640 = vmatpush1.msra.mxu0 0.0
    %2641 = vmatprep.subr.mxu0 0.0
    %2642 = vmatpush1.msra.mxu0 0.0
    %2643 = vmatprep.subr.mxu0 0.0
    %2644 = vmatpush1.msra.mxu0 0.0
    %2645 = vmatprep.subr.mxu0 0.0
    %2646 = vmatpush1.msra.mxu0 0.0
    %2647 = vmatprep.subr.mxu0 0.0
    %2648 = vmatpush1.msra.mxu0 0.0
    %2649 = vmatprep.mubr.f32.mxu0 0.0
    %2650 = vmatmul.mubr.f32.gmra.mrb[0].mxu0 %v2583
    %v2651 = vpop.f32.mrb[0].mxu0
    %v2652 = vadd.f32 %v2580, %v2651
    %v2653 = vpop.f32.mrb[0].mxu0
    %2654 = vdwg.mxu0
    %v2655 = vmax.f32 %v2652, 0.0
    %v2656 = vld [vmem:[%s11] sm:$0xff]
    %v2657 = vld [vmem:[%s11 + $0x8] sm:$0xff]
    %v2658 = vld [vmem:[%s11 + $0x10] sm:$0xff]
    %v2659 = vld [vmem:[%s11 + $0x18] sm:$0xff]
    %v2660 = vld [vmem:[%s11 + $0x20] sm:$0xff]
    %v2661 = vld [vmem:[%s11 + $0x28] sm:$0xff]
    %v2662 = vld [vmem:[%s11 + $0x30] sm:$0xff]
    %v2663 = vld [vmem:[%s11 + $0x38] sm:$0xff]
    %v2664 = vld [vmem:[%s11 + $0x40] sm:$0xff]
    %v2665 = vld [vmem:[%s11 + $0x48] sm:$0xff]
    %v2666 = vld [vmem:[%s11 + $0x50] sm:$0xf]
    %v2667 = vld [vmem:[%s12] sm:$0x1]
    %vm2668 = vcmask 687104
    %v2670 = vsel %vm2668, %v2655, 0
    %vm2672 = vcmask 1043456
    %v2674 = vsel %vm2672, %v2666, 0
    %2676 = vmatprep.subr.mxu0 0.0
    %2677 = vmatpush1.msra.mxu0 %v2656
    %2678 = vmatprep.subr.mxu0 0.0
    %2679 = vmatpush1.msra.mxu0 %v2657
    %2680 = vmatprep.subr.mxu0 0.0
    %2681 = vmatpush1.msra.mxu0 %v2658
    %2682 = vmatprep.subr.mxu0 0.0
    %2683 = vmatpush1.msra.mxu0 %v2659
    %2684 = vmatprep.subr.mxu0 0.0
    %2685 = vmatpush1.msra.mxu0 %v2660
    %2686 = vmatprep.subr.mxu0 0.0
    %2687 = vmatpush1.msra.mxu0 %v2661
    %2688 = vmatprep.subr.mxu0 0.0
    %2689 = vmatpush1.msra.mxu0 %v2662
    %2690 = vmatprep.subr.mxu0 0.0
    %2691 = vmatpush1.msra.mxu0 %v2663
    %2692 = vmatprep.subr.mxu0 0.0
    %2693 = vmatpush1.msra.mxu0 %v2664
    %2694 = vmatprep.subr.mxu0 0.0
    %2695 = vmatpush1.msra.mxu0 %v2665
    %2696 = vmatprep.subr.mxu0 0.0
    %2697 = vmatpush1.msra.mxu0 %v2674
    %2698 = vmatprep.subr.mxu0 0.0
    %2699 = vmatpush1.msra.mxu0 0.0
    %2700 = vmatprep.subr.mxu0 0.0
    %2701 = vmatpush1.msra.mxu0 0.0
    %2702 = vmatprep.subr.mxu0 0.0
    %2703 = vmatpush1.msra.mxu0 0.0
    %2704 = vmatprep.subr.mxu0 0.0
    %2705 = vmatpush1.msra.mxu0 0.0
    %2706 = vmatprep.subr.mxu0 0.0
    %2707 = vmatpush1.msra.mxu0 0.0
    %2708 = vmatprep.subr.mxu0 0.0
    %2709 = vmatpush1.msra.mxu0 0.0
    %2710 = vmatprep.subr.mxu0 0.0
    %2711 = vmatpush1.msra.mxu0 0.0
    %2712 = vmatprep.subr.mxu0 0.0
    %2713 = vmatpush1.msra.mxu0 0.0
    %2714 = vmatprep.subr.mxu0 0.0
    %2715 = vmatpush1.msra.mxu0 0.0
    %2716 = vmatprep.subr.mxu0 0.0
    %2717 = vmatpush1.msra.mxu0 0.0
    %2718 = vmatprep.subr.mxu0 0.0
    %2719 = vmatpush1.msra.mxu0 0.0
    %2720 = vmatprep.subr.mxu0 0.0
    %2721 = vmatpush1.msra.mxu0 0.0
    %2722 = vmatprep.subr.mxu0 0.0
    %2723 = vmatpush1.msra.mxu0 0.0
    %2724 = vmatprep.subr.mxu0 0.0
    %2725 = vmatpush1.msra.mxu0 0.0
    %2726 = vmatprep.subr.mxu0 0.0
    %2727 = vmatpush1.msra.mxu0 0.0
    %2728 = vmatprep.subr.mxu0 0.0
    %2729 = vmatpush1.msra.mxu0 0.0
    %2730 = vmatprep.subr.mxu0 0.0
    %2731 = vmatpush1.msra.mxu0 0.0
    %2732 = vmatprep.subr.mxu0 0.0
    %2733 = vmatpush1.msra.mxu0 0.0
    %2734 = vmatprep.subr.mxu0 0.0
    %2735 = vmatpush1.msra.mxu0 0.0
    %2736 = vmatprep.subr.mxu0 0.0
    %2737 = vmatpush1.msra.mxu0 0.0
    %2738 = vmatprep.subr.mxu0 0.0
    %2739 = vmatpush1.msra.mxu0 0.0
    %2740 = vmatprep.mubr.f32.mxu0 0.0
    %2741 = vmatmul.mubr.f32.gmra.mrb[0].mxu0 %v2670
    %v2742 = vpop.f32.mrb[0].mxu0
    %v2743 = vadd.f32 %v2667, %v2742
    %v2744 = vpop.f32.mrb[0].mxu0
    %2745 = vdwg.mxu0
    %vm2746 = vcmask 73728
    %v2747 = vsel %vm2746, %v2743, -inf
    %2748 = vmax.xlane.f32.xlu0 %v2747
    %v2749 = vpop.xlane.xlu0 %2748
    %v2750 = vsub.f32 %v2743, %v2749
    %v2751 = vmul.f32 %v2750, 1.442695
    %v2752 = vpow.pop %v2751
    %v2753 = vsel %vm2746, %v2752, 0.0
    %2754 = vadd.xlane.f32.xlu0 %v2753
    %v2755 = vpop.xlane.xlu0 %2754
    %v2756 = vlog2.pop %v2755
    %v2757 = vmul.f32 %v2756, 0.6931472
    %v2758 = vsub.f32 %v2750, %v2757
    %2759 = vst.msk [vmem:[#allocation6] sm:$0x1] %vm2746, %v2758
    // Predicated region
    $region54: #{pytorch_cnn_forward.1} parent=1 // pred_check
      _
    $region55: #{pytorch_cnn_forward.1} parent=1 // pred_check_branch
      %2761 = sbr.rel (0) target = $region57
    $region56: #{pytorch_cnn_forward.1} parent=1 // pred_region
      %s2763 = ssub.s32 16, 16
      %2764 = vsyncadd [#allocation7], %s2763
      %s2766 = sshll.u32 [#allocation6], 4
      %s2767 = int_to_ptr.vmem [resolvable:$true] %s2766
      %2769 = dma.vmem_to_hbm [thread:$0]  %s2767, 16, %s13, [#allocation7]
    $region57: #{pytorch_cnn_forward.1} parent=1 // pred_fallthru
      _
    // Predicated region
    $region58: #{pytorch_cnn_forward.1} parent=1 // pred_check
      _
    $region59: #{pytorch_cnn_forward.1} parent=1 // pred_check_branch
      %2771 = sbr.rel (0) target = $region61
    $region60: #{pytorch_cnn_forward.1} parent=1 // pred_region
      %2772 = dma.done [#allocation7], 16
    $region61: #{pytorch_cnn_forward.1} parent=1 // pred_fallthru
      _
    %2773 = vsyncpa [#allocation7], 1

</llo_original>
